<compile_context>
chip_gen: v7x
topology: tpu7x:2x2x1
jax: 0.10.0
libtpu: 0.0.40
codegen_flags: <defaults>
</compile_context>

<pallas_src>
import functools

import jax
import jax.numpy as jnp
from jax import lax
from jax.experimental import pallas as pl
from jax.experimental.pallas import tpu as pltpu


# ------------------------------ helpers / geometry --------------------------------- #

def _round_up(x, m):
    return (x + m - 1) // m * m


def _make_geometry(cin0, ndf, resolution):
    """Geometry of the three stride-2 pad-1 convs of the `else` branch."""
    chans = [cin0, ndf, ndf * 2, ndf * 4]
    geom = []
    H = resolution
    for l in range(3):
        Hp = H + 2                                    # pad = 1
        assert Hp % 2 == 0, "padded size must be even for the space-to-depth layout"
        Ho = (Hp - 4) // 2 + 1
        Y = Hp // 2                                   # = Ho + 1
        assert Y == Ho + 1
        geom.append(dict(Y=Y, Ho=Ho, cin=chans[l], cout=chans[l + 1], bn=(l > 0)))
        H = Ho
    assert H == 4, "else-branch Disc produces a 1x1 output only for resolution == 32"
    return geom


def _junk_mask(Ho, Y, n):
    """[n*Ho*Y, 1] mask: 1 on valid (ow < Ho) rows, 0 on junk (ow == Ho) rows."""
    m = jnp.pad(jnp.ones((Ho, Ho, 1), jnp.float32), ((0, 0), (0, Y - Ho), (0, 0)))
    return jnp.tile(m.reshape(Ho * Y, 1), (n, 1))


def _space_to_depth_pad(x_nhwc, pad, rows_alloc):
    """Pad spatially, space-to-depth to [N*Y*Y, 4*C] (lanes = (p, q, c)), pad rows."""
    N, H, W, C = x_nhwc.shape
    x = jnp.pad(x_nhwc, ((0, 0), (pad, pad), (pad, pad), (0, 0)))
    Y = (H + 2 * pad) // 2
    x = x.reshape(N, Y, 2, Y, 2, C).transpose(0, 1, 3, 2, 4, 5).reshape(N * Y * Y, 4 * C)
    return jnp.pad(x, ((0, rows_alloc - N * Y * Y), (0, 0)))


def _prep_conv_weight_s2d(w_oihw):
    """[Cout, Cin, 4, 4] -> [16*Cin, Cout] with K ordered (a, b, p, q, c), ti=2a+p, tj=2b+q."""
    cout, cin, kh, kw = w_oihw.shape
    w = jnp.transpose(w_oihw, (2, 3, 1, 0))            # [ti, tj, c, cout]
    w = w.reshape(2, 2, 2, 2, cin, cout)                # [a, p, b, q, c, cout]
    w = jnp.transpose(w, (0, 2, 1, 3, 4, 5))            # [a, b, p, q, c, cout]
    return w.reshape(16 * cin, cout)


# ----------------------------------- Pallas kernel --------------------------------- #

def _disc_kernel(s1_ref, w1_ref, w2_ref, w3_ref, w4_ref, sel_ref,
                 g2_ref, b2_ref, g3_ref, b3_ref, m2_ref, m3_ref,
                 out_ref,
                 s2_ref, s3_ref, p1_ref, p2_ref, p3_ref, a1_ref, a2_ref,
                 *, geom, N):
    # Zero the padded S2D scratch buffers once; the scatters only touch the interior,
    # so the untouched rows / lane-blocks are exactly the next conv's zero padding.
    s2_ref[...] = jnp.zeros_like(s2_ref)
    s3_ref[...] = jnp.zeros_like(s3_ref)

    s_refs = [s1_ref, s2_ref, s3_ref]
    p_refs = [p1_ref, p2_ref, p3_ref]
    w_refs = [w1_ref, w2_ref, w3_ref]
    a_refs = [a1_ref, a2_ref, None]
    gb_refs = [None, (g2_ref, b2_ref), (g3_ref, b3_ref)]
    m_refs = [None, m2_ref, m3_ref]

    act3 = None
    for l, g in enumerate(geom):
        Y, Ho, cin, cout = g["Y"], g["Ho"], g["cin"], g["cout"]
        K4 = 4 * cin              # S2D channel count of this layer's input
        Mi = Ho * Y               # patch rows per image (incl. one junk col per row-group)
        s_ref, p_ref, w_ref = s_refs[l], p_refs[l], w_refs[l]

        # ---- im2col: ONE contiguous [Mi, 4*cin] block copy per (tap, image) -------- #
        for t, (a, b) in enumerate(((0, 0), (0, 1), (1, 0), (1, 1))):
            for n in range(N):
                src = n * Y * Y + a * Y + b
                p_ref[n * Mi:(n + 1) * Mi, t * K4:(t + 1) * K4] = s_ref[src:src + Mi, :]

        # ---- whole conv as ONE GEMM: [N*Mi, 16*cin] @ [16*cin, cout] ---------------- #
        v = jnp.dot(p_ref[...], w_ref[...], preferred_element_type=jnp.float32)

        # ---- fused training-mode BatchNorm (single pass) + LeakyReLU ---------------- #
        if g["bn"]:
            gam_ref, bet_ref = gb_refs[l]
            mask = m_refs[l][...]                      # [N*Mi, 1], zero on junk rows
            inv_cnt = 1.0 / float(N * Ho * Ho)
            vm = v * mask
            mean = jnp.sum(vm, axis=0, keepdims=True) * inv_cnt
            ex2 = jnp.sum(vm * v, axis=0, keepdims=True) * inv_cnt
            scale = gam_ref[...] * lax.rsqrt(ex2 - mean * mean + 1e-5)
            shift = bet_ref[...] - mean * scale
            v = v * scale + shift
        v = jnp.where(v > 0, v, 0.2 * v)

        if l < len(geom) - 1:
            # store the activation once, then repack into the next layer's S2D buffer
            a_ref = a_refs[l]
            a_ref[...] = v
            s_nxt, Y2, Cn, half = s_refs[l + 1], geom[l + 1]["Y"], cout, Ho // 2
            for n in range(N):
                for oh in range(Ho):
                    p_par = (oh + 1) % 2
                    y = (oh + 1) // 2
                    src = n * Mi + oh * Y
                    dst = n * Y2 * Y2 + y * Y2
                    # even output columns -> phase q = 1
                    s_nxt[dst:dst + half, (2 * p_par + 1) * Cn:(2 * p_par + 2) * Cn] = (
                        a_ref[pl.ds(src, half, stride=2), :])
                    # odd output columns  -> phase q = 0
                    s_nxt[dst + 1:dst + 1 + half, 2 * p_par * Cn:(2 * p_par + 1) * Cn] = (
                        a_ref[pl.ds(src + 1, half, stride=2), :])
        else:
            act3 = v

    # ---- layer 4: full-window 4x4 valid conv + sigmoid ----------------------------- #
    # w4_ref is the layer-4 filter broadcast onto the layer-3 accumulator rows (zeros
    # on junk rows); sel_ref sums rows per image: out = sigmoid(sum_{h,w,c} act3 * w4).
    prod = act3 * w4_ref[...]
    per_img = jnp.dot(sel_ref[...], prod, preferred_element_type=jnp.float32)   # [N, C]
    out_ref[...] = jax.nn.sigmoid(jnp.sum(per_img, axis=1, keepdims=True))


# ------------------------------------- JAX glue ------------------------------------- #

def disc_forward(x_nchw, params, ndf):
    """Forward pass of Disc (resolution != 64/128 branch). Input is NCHW like PyTorch."""
    N, rgb, H, W = x_nchw.shape
    assert H == W, "square inputs expected"
    rgb_pad = _round_up(rgb, 8)                 # pad RGB channels so K blocks are 32 lanes
    geom = _make_geometry(rgb_pad, ndf, H)

    Y1 = geom[0]["Y"]
    rows1 = _round_up(N * Y1 * Y1 + 1, 8)

    # NCHW -> NHWC, channel-pad, zero-pad spatially, space-to-depth (tiny XLA fusion).
    x = jnp.transpose(x_nchw, (0, 2, 3, 1)).astype(jnp.float32)
    x = jnp.pad(x, ((0, 0), (0, 0), (0, 0), (0, rgb_pad - rgb)))
    s1 = _space_to_depth_pad(x, 1, rows1)

    w1p = _prep_conv_weight_s2d(
        jnp.pad(params["w1"], ((0, 0), (0, rgb_pad - rgb), (0, 0), (0, 0))))
    w2p = _prep_conv_weight_s2d(params["w2"])
    w3p = _prep_conv_weight_s2d(params["w3"])

    # Layer-4 weight laid out on the layer-3 accumulator's (n, oh, ow[+junk]) rows.
    H4, C4, Y3 = geom[2]["Ho"], geom[2]["cout"], geom[2]["Y"]
    Mi3 = H4 * Y3
    w4_2d = jnp.transpose(params["w4"], (2, 3, 1, 0)).reshape(H4 * H4, C4)
    w4_blk = jnp.pad(w4_2d.reshape(H4, H4, C4), ((0, 0), (0, Y3 - H4), (0, 0)))
    w4j = jnp.tile(w4_blk.reshape(Mi3, C4), (N, 1))
    sel = jnp.kron(jnp.eye(N, dtype=jnp.float32), jnp.ones((1, Mi3), jnp.float32))

    mask2 = _junk_mask(geom[1]["Ho"], geom[1]["Y"], N)
    mask3 = _junk_mask(geom[2]["Ho"], geom[2]["Y"], N)

    rows2 = _round_up(N * geom[1]["Y"] ** 2 + 1, 8)
    rows3 = _round_up(N * geom[2]["Y"] ** 2 + 1, 8)
    Mj = [N * g["Ho"] * g["Y"] for g in geom]

    scratch_shapes = [
        pltpu.VMEM((rows2, 4 * geom[1]["cin"]), jnp.float32),    # S2D input of layer 2
        pltpu.VMEM((rows3, 4 * geom[2]["cin"]), jnp.float32),    # S2D input of layer 3
        pltpu.VMEM((Mj[0], 16 * geom[0]["cin"]), jnp.float32),   # patch matrix, layer 1
        pltpu.VMEM((Mj[1], 16 * geom[1]["cin"]), jnp.float32),   # patch matrix, layer 2
        pltpu.VMEM((Mj[2], 16 * geom[2]["cin"]), jnp.float32),   # patch matrix, layer 3
        pltpu.VMEM((Mj[0], geom[0]["cout"]), jnp.float32),       # activation, layer 1
        pltpu.VMEM((Mj[1], geom[1]["cout"]), jnp.float32),       # activation, layer 2
    ]

    vmem = pltpu.MemorySpace.VMEM
    kernel = functools.partial(_disc_kernel, geom=geom, N=N)
    out = pl.pallas_call(
        kernel,
        out_shape=jax.ShapeDtypeStruct((N, 1), jnp.float32),
        in_specs=[pl.BlockSpec(memory_space=vmem)] * 12,
        out_specs=pl.BlockSpec(memory_space=vmem),
        scratch_shapes=scratch_shapes,
        compiler_params=pltpu.CompilerParams(vmem_limit_bytes=32 * 1024 * 1024),
    )(s1, w1p, w2p, w3p, w4j, sel,
      params["g2"], params["b2"], params["g3"], params["b3"], mask2, mask3)

    return out.reshape(-1)       # .view(-1, 1).squeeze(1)


def init_params(key, rgb_channel, ndf):
    """Deterministic DCGAN-style init: conv ~ N(0, 0.02), gamma=1, beta=0."""
    k1, k2, k3, k4 = jax.random.split(key, 4)
    return {
        "w1": jax.random.normal(k1, (ndf, rgb_channel, 4, 4), jnp.float32) * 0.02,
        "w2": jax.random.normal(k2, (ndf * 2, ndf, 4, 4), jnp.float32) * 0.02,
        "w3": jax.random.normal(k3, (ndf * 4, ndf * 2, 4, 4), jnp.float32) * 0.02,
        "w4": jax.random.normal(k4, (1, ndf * 4, 4, 4), jnp.float32) * 0.02,
        "g2": jnp.ones((1, ndf * 2), jnp.float32),
        "b2": jnp.zeros((1, ndf * 2), jnp.float32),
        "g3": jnp.ones((1, ndf * 4), jnp.float32),
        "b3": jnp.zeros((1, ndf * 4), jnp.float32),
    }


# --------------------------------- pure-JAX reference -------------------------------- #

def _ref_forward(x_nchw, params, ndf):
    def conv(x, w, stride, pad):
        return lax.conv_general_dilated(
            x, w, (stride, stride), [(pad, pad), (pad, pad)],
            dimension_numbers=("NCHW", "OIHW", "NCHW"),
            precision=lax.Precision.HIGHEST)

    def bn_lrelu(x, g, b):
        mean = jnp.mean(x, axis=(0, 2, 3), keepdims=True)
        var = jnp.mean(jnp.square(x - mean), axis=(0, 2, 3), keepdims=True)
        x = (x - mean) * lax.rsqrt(var + 1e-5)
        x = x * g.reshape(1, -1, 1, 1) + b.reshape(1, -1, 1, 1)
        return jnp.where(x > 0, x, 0.2 * x)

    x = conv(x_nchw, params["w1"], 2, 1)
    x = jnp.where(x > 0, x, 0.2 * x)
    x = bn_lrelu(conv(x, params["w2"], 2, 1), params["g2"], params["b2"])
    x = bn_lrelu(conv(x, params["w3"], 2, 1), params["g3"], params["b3"])
    x = jax.nn.sigmoid(conv(x, params["w4"], 1, 0))
    return x.reshape(-1)


# ---------------------------------------- main --------------------------------------- #

if __name__ == "__main__":
    RGB_CHANNEL = 3
    NDF = 8            # DISCR_FEATURE_MAP_SIZE
    RESOLUTION = 32    # `else` branch of Disc.__init__
    N = 2

    key = jax.random.PRNGKey(0)
    kx, kp = jax.random.split(key)
    x = jax.random.normal(kx, (N, RGB_CHANNEL, RESOLUTION, RESOLUTION), jnp.float32)
    params = init_params(kp, RGB_CHANNEL, NDF)

    out = jax.jit(lambda x, p: disc_forward(x, p, NDF))(x, params)
    out = jax.block_until_ready(out)
    assert out.shape == (N,), out.shape

    ref = jax.block_until_ready(_ref_forward(x, params, NDF))
    assert jnp.allclose(out, ref, rtol=1e-2, atol=1e-2), (out, ref)

    print("KERNEL_OK")
</pallas_src>

<mosaic_0001>
module attributes {stable_mosaic.version = 11 : i64} {
  func.func @_disc_kernel(%arg0: memref<584x32xf32, #tpu.memory_space<vmem>>, %arg1: memref<128x8xf32, #tpu.memory_space<vmem>>, %arg2: memref<128x16xf32, #tpu.memory_space<vmem>>, %arg3: memref<256x32xf32, #tpu.memory_space<vmem>>, %arg4: memref<40x32xf32, #tpu.memory_space<vmem>>, %arg5: memref<2x40xf32, #tpu.memory_space<vmem>>, %arg6: memref<1x16xf32, #tpu.memory_space<vmem>>, %arg7: memref<1x16xf32, #tpu.memory_space<vmem>>, %arg8: memref<1x32xf32, #tpu.memory_space<vmem>>, %arg9: memref<1x32xf32, #tpu.memory_space<vmem>>, %arg10: memref<144x1xf32, #tpu.memory_space<vmem>>, %arg11: memref<40x1xf32, #tpu.memory_space<vmem>>, %arg12: memref<2x1xf32, #tpu.memory_space<vmem>>, %arg13: memref<168x32xf32, #tpu.memory_space<vmem>>, %arg14: memref<56x64xf32, #tpu.memory_space<vmem>>, %arg15: memref<544x128xf32, #tpu.memory_space<vmem>>, %arg16: memref<144x128xf32, #tpu.memory_space<vmem>>, %arg17: memref<40x256xf32, #tpu.memory_space<vmem>>, %arg18: memref<544x8xf32, #tpu.memory_space<vmem>>, %arg19: memref<144x16xf32, #tpu.memory_space<vmem>>) attributes {dimension_semantics = [], scalar_prefetch = 0 : i64, scratch_operands = 7 : i64, tpu.core_type = #tpu.core_type<tc>} {
    %cst = arith.constant 0.000000e+00 : f32
    %0 = vector.broadcast %cst : f32 to vector<168x32xf32>
    %c0 = arith.constant 0 : index
    %c0_0 = arith.constant 0 : index
    %1 = vector.load %arg13[%c0, %c0_0] : memref<168x32xf32, #tpu.memory_space<vmem>>, vector<168x32xf32>
    tpu.vector_store %arg13[%c0, %c0_0], %0 {strides = array<i32>} : memref<168x32xf32, #tpu.memory_space<vmem>>, vector<168x32xf32>,
    %cst_1 = arith.constant 0.000000e+00 : f32
    %2 = vector.broadcast %cst_1 : f32 to vector<56x64xf32>
    %c0_2 = arith.constant 0 : index
    %c0_3 = arith.constant 0 : index
    %3 = vector.load %arg14[%c0_2, %c0_3] : memref<56x64xf32, #tpu.memory_space<vmem>>, vector<56x64xf32>
    tpu.vector_store %arg14[%c0_2, %c0_3], %2 {strides = array<i32>} : memref<56x64xf32, #tpu.memory_space<vmem>>, vector<56x64xf32>,
    %c0_4 = arith.constant 0 : index
    %c0_5 = arith.constant 0 : index
    %4 = vector.load %arg0[%c0_4, %c0_5] : memref<584x32xf32, #tpu.memory_space<vmem>>, vector<272x32xf32>
    %c0_6 = arith.constant 0 : index
    %c0_7 = arith.constant 0 : index
    %5 = vector.load %arg15[%c0_6, %c0_7] : memref<544x128xf32, #tpu.memory_space<vmem>>, vector<272x32xf32>
    tpu.vector_store %arg15[%c0_6, %c0_7], %4 {strides = array<i32>} : memref<544x128xf32, #tpu.memory_space<vmem>>, vector<272x32xf32>,
    %c289 = arith.constant 289 : index
    %c0_8 = arith.constant 0 : index
    %6 = vector.load %arg0[%c289, %c0_8] : memref<584x32xf32, #tpu.memory_space<vmem>>, vector<272x32xf32>
    %c272 = arith.constant 272 : index
    %c0_9 = arith.constant 0 : index
    %7 = vector.load %arg15[%c272, %c0_9] : memref<544x128xf32, #tpu.memory_space<vmem>>, vector<272x32xf32>
    tpu.vector_store %arg15[%c272, %c0_9], %6 {strides = array<i32>} : memref<544x128xf32, #tpu.memory_space<vmem>>, vector<272x32xf32>,
    %c1 = arith.constant 1 : index
    %c0_10 = arith.constant 0 : index
    %8 = vector.load %arg0[%c1, %c0_10] : memref<584x32xf32, #tpu.memory_space<vmem>>, vector<272x32xf32>
    %c0_11 = arith.constant 0 : index
    %c32 = arith.constant 32 : index
    %9 = vector.load %arg15[%c0_11, %c32] : memref<544x128xf32, #tpu.memory_space<vmem>>, vector<272x32xf32>
    tpu.vector_store %arg15[%c0_11, %c32], %8 {strides = array<i32>} : memref<544x128xf32, #tpu.memory_space<vmem>>, vector<272x32xf32>,
    %c290 = arith.constant 290 : index
    %c0_12 = arith.constant 0 : index
    %10 = vector.load %arg0[%c290, %c0_12] : memref<584x32xf32, #tpu.memory_space<vmem>>, vector<272x32xf32>
    %c272_13 = arith.constant 272 : index
    %c32_14 = arith.constant 32 : index
    %11 = vector.load %arg15[%c272_13, %c32_14] : memref<544x128xf32, #tpu.memory_space<vmem>>, vector<272x32xf32>
    tpu.vector_store %arg15[%c272_13, %c32_14], %10 {strides = array<i32>} : memref<544x128xf32, #tpu.memory_space<vmem>>, vector<272x32xf32>,
    %c17 = arith.constant 17 : index
    %c0_15 = arith.constant 0 : index
    %12 = vector.load %arg0[%c17, %c0_15] : memref<584x32xf32, #tpu.memory_space<vmem>>, vector<272x32xf32>
    %c0_16 = arith.constant 0 : index
    %c64 = arith.constant 64 : index
    %13 = vector.load %arg15[%c0_16, %c64] : memref<544x128xf32, #tpu.memory_space<vmem>>, vector<272x32xf32>
    tpu.vector_store %arg15[%c0_16, %c64], %12 {strides = array<i32>} : memref<544x128xf32, #tpu.memory_space<vmem>>, vector<272x32xf32>,
    %c306 = arith.constant 306 : index
    %c0_17 = arith.constant 0 : index
    %14 = vector.load %arg0[%c306, %c0_17] : memref<584x32xf32, #tpu.memory_space<vmem>>, vector<272x32xf32>
    %c272_18 = arith.constant 272 : index
    %c64_19 = arith.constant 64 : index
    %15 = vector.load %arg15[%c272_18, %c64_19] : memref<544x128xf32, #tpu.memory_space<vmem>>, vector<272x32xf32>
    tpu.vector_store %arg15[%c272_18, %c64_19], %14 {strides = array<i32>} : memref<544x128xf32, #tpu.memory_space<vmem>>, vector<272x32xf32>,
    %c18 = arith.constant 18 : index
    %c0_20 = arith.constant 0 : index
    %16 = vector.load %arg0[%c18, %c0_20] : memref<584x32xf32, #tpu.memory_space<vmem>>, vector<272x32xf32>
    %c0_21 = arith.constant 0 : index
    %c96 = arith.constant 96 : index
    %17 = vector.load %arg15[%c0_21, %c96] : memref<544x128xf32, #tpu.memory_space<vmem>>, vector<272x32xf32>
    tpu.vector_store %arg15[%c0_21, %c96], %16 {strides = array<i32>} : memref<544x128xf32, #tpu.memory_space<vmem>>, vector<272x32xf32>,
    %c307 = arith.constant 307 : index
    %c0_22 = arith.constant 0 : index
    %18 = vector.load %arg0[%c307, %c0_22] : memref<584x32xf32, #tpu.memory_space<vmem>>, vector<272x32xf32>
    %c272_23 = arith.constant 272 : index
    %c96_24 = arith.constant 96 : index
    %19 = vector.load %arg15[%c272_23, %c96_24] : memref<544x128xf32, #tpu.memory_space<vmem>>, vector<272x32xf32>
    tpu.vector_store %arg15[%c272_23, %c96_24], %18 {strides = array<i32>} : memref<544x128xf32, #tpu.memory_space<vmem>>, vector<272x32xf32>,
    %c0_25 = arith.constant 0 : index
    %c0_26 = arith.constant 0 : index
    %20 = vector.load %arg15[%c0_25, %c0_26] : memref<544x128xf32, #tpu.memory_space<vmem>>, vector<544x128xf32>
    %c0_27 = arith.constant 0 : index
    %c0_28 = arith.constant 0 : index
    %21 = vector.load %arg1[%c0_27, %c0_28] : memref<128x8xf32, #tpu.memory_space<vmem>>, vector<128x8xf32>
    %cst_29 = arith.constant dense<0.000000e+00> : vector<544x8xf32>
    %22 = tpu.matmul %20, %21, %cst_29 {dimension_numbers = #tpu.dot_dimension_numbers<[1], [0], [0], [1], [0, 0, 1, 1], [], []>} : vector<544x128xf32>, vector<128x8xf32>, vector<544x8xf32> -> vector<544x8xf32>
    %cst_30 = arith.constant 0.000000e+00 : f32
    %23 = vector.broadcast %cst_30 : f32 to vector<544x8xf32>
    %24 = arith.cmpf ogt, %22, %23 : vector<544x8xf32>
    %cst_31 = arith.constant 2.000000e-01 : f32
    %25 = vector.broadcast %cst_31 : f32 to vector<544x8xf32>
    %26 = arith.mulf %25, %22 : vector<544x8xf32>
    %27 = arith.select %24, %22, %26 : vector<544x8xi1>, vector<544x8xf32>
    %c0_32 = arith.constant 0 : index
    %c0_33 = arith.constant 0 : index
    %28 = vector.load %arg18[%c0_32, %c0_33] : memref<544x8xf32, #tpu.memory_space<vmem>>, vector<544x8xf32>
    tpu.vector_store %arg18[%c0_32, %c0_33], %27 {strides = array<i32>} : memref<544x8xf32, #tpu.memory_space<vmem>>, vector<544x8xf32>,
    %c0_34 = arith.constant 0 : index
    %c0_35 = arith.constant 0 : index
    %29 = tpu.strided_load %arg18[%c0_34, %c0_35] {strides = array<i32: 2, 1>} : memref<544x8xf32, #tpu.memory_space<vmem>>, vector<8x8xf32>
    %c0_36 = arith.constant 0 : index
    %c24 = arith.constant 24 : index
    %30 = vector.load %arg13[%c0_36, %c24] : memref<168x32xf32, #tpu.memory_space<vmem>>, vector<8x8xf32>
    tpu.vector_store %arg13[%c0_36, %c24], %29 {strides = array<i32>} : memref<168x32xf32, #tpu.memory_space<vmem>>, vector<8x8xf32>,
    %c1_37 = arith.constant 1 : index
    %c0_38 = arith.constant 0 : index
    %31 = tpu.strided_load %arg18[%c1_37, %c0_38] {strides = array<i32: 2, 1>} : memref<544x8xf32, #tpu.memory_space<vmem>>, vector<8x8xf32>
    %c1_39 = arith.constant 1 : index
    %c16 = arith.constant 16 : index
    %32 = vector.load %arg13[%c1_39, %c16] : memref<168x32xf32, #tpu.memory_space<vmem>>, vector<8x8xf32>
    tpu.vector_store %arg13[%c1_39, %c16], %31 {strides = array<i32>} : memref<168x32xf32, #tpu.memory_space<vmem>>, vector<8x8xf32>,
    %c17_40 = arith.constant 17 : index
    %c0_41 = arith.constant 0 : index
    %33 = tpu.strided_load %arg18[%c17_40, %c0_41] {strides = array<i32: 2, 1>} : memref<544x8xf32, #tpu.memory_space<vmem>>, vector<8x8xf32>
    %c9 = arith.constant 9 : index
    %c8 = arith.constant 8 : index
    %34 = vector.load %arg13[%c9, %c8] : memref<168x32xf32, #tpu.memory_space<vmem>>, vector<8x8xf32>
    tpu.vector_store %arg13[%c9, %c8], %33 {strides = array<i32>} : memref<168x32xf32, #tpu.memory_space<vmem>>, vector<8x8xf32>,
    %c18_42 = arith.constant 18 : index
    %c0_43 = arith.constant 0 : index
    %35 = tpu.strided_load %arg18[%c18_42, %c0_43] {strides = array<i32: 2, 1>} : memref<544x8xf32, #tpu.memory_space<vmem>>, vector<8x8xf32>
    %c10 = arith.constant 10 : index
    %c0_44 = arith.constant 0 : index
    %36 = vector.load %arg13[%c10, %c0_44] : memref<168x32xf32, #tpu.memory_space<vmem>>, vector<8x8xf32>
    tpu.vector_store %arg13[%c10, %c0_44], %35 {strides = array<i32>} : memref<168x32xf32, #tpu.memory_space<vmem>>, vector<8x8xf32>,
    %c34 = arith.constant 34 : index
    %c0_45 = arith.constant 0 : index
    %37 = tpu.strided_load %arg18[%c34, %c0_45] {strides = array<i32: 2, 1>} : memref<544x8xf32, #tpu.memory_space<vmem>>, vector<8x8xf32>
    %c9_46 = arith.constant 9 : index
    %c24_47 = arith.constant 24 : index
    %38 = vector.load %arg13[%c9_46, %c24_47] : memref<168x32xf32, #tpu.memory_space<vmem>>, vector<8x8xf32>
    tpu.vector_store %arg13[%c9_46, %c24_47], %37 {strides = array<i32>} : memref<168x32xf32, #tpu.memory_space<vmem>>, vector<8x8xf32>,
    %c35 = arith.constant 35 : index
    %c0_48 = arith.constant 0 : index
    %39 = tpu.strided_load %arg18[%c35, %c0_48] {strides = array<i32: 2, 1>} : memref<544x8xf32, #tpu.memory_space<vmem>>, vector<8x8xf32>
    %c10_49 = arith.constant 10 : index
    %c16_50 = arith.constant 16 : index
    %40 = vector.load %arg13[%c10_49, %c16_50] : memref<168x32xf32, #tpu.memory_space<vmem>>, vector<8x8xf32>
    tpu.vector_store %arg13[%c10_49, %c16_50], %39 {strides = array<i32>} : memref<168x32xf32, #tpu.memory_space<vmem>>, vector<8x8xf32>,
    %c51 = arith.constant 51 : index
    %c0_51 = arith.constant 0 : index
    %41 = tpu.strided_load %arg18[%c51, %c0_51] {strides = array<i32: 2, 1>} : memref<544x8xf32, #tpu.memory_space<vmem>>, vector<8x8xf32>
    %c18_52 = arith.constant 18 : index
    %c8_53 = arith.constant 8 : index
    %42 = vector.load %arg13[%c18_52, %c8_53] : memref<168x32xf32, #tpu.memory_space<vmem>>, vector<8x8xf32>
    tpu.vector_store %arg13[%c18_52, %c8_53], %41 {strides = array<i32>} : memref<168x32xf32, #tpu.memory_space<vmem>>, vector<8x8xf32>,
    %c52 = arith.constant 52 : index
    %c0_54 = arith.constant 0 : index
    %43 = tpu.strided_load %arg18[%c52, %c0_54] {strides = array<i32: 2, 1>} : memref<544x8xf32, #tpu.memory_space<vmem>>, vector<8x8xf32>
    %c19 = arith.constant 19 : index
    %c0_55 = arith.constant 0 : index
    %44 = vector.load %arg13[%c19, %c0_55] : memref<168x32xf32, #tpu.memory_space<vmem>>, vector<8x8xf32>
    tpu.vector_store %arg13[%c19, %c0_55], %43 {strides = array<i32>} : memref<168x32xf32, #tpu.memory_space<vmem>>, vector<8x8xf32>,
    %c68 = arith.constant 68 : index
    %c0_56 = arith.constant 0 : index
    %45 = tpu.strided_load %arg18[%c68, %c0_56] {strides = array<i32: 2, 1>} : memref<544x8xf32, #tpu.memory_space<vmem>>, vector<8x8xf32>
    %c18_57 = arith.constant 18 : index
    %c24_58 = arith.constant 24 : index
    %46 = vector.load %arg13[%c18_57, %c24_58] : memref<168x32xf32, #tpu.memory_space<vmem>>, vector<8x8xf32>
    tpu.vector_store %arg13[%c18_57, %c24_58], %45 {strides = array<i32>} : memref<168x32xf32, #tpu.memory_space<vmem>>, vector<8x8xf32>,
    %c69 = arith.constant 69 : index
    %c0_59 = arith.constant 0 : index
    %47 = tpu.strided_load %arg18[%c69, %c0_59] {strides = array<i32: 2, 1>} : memref<544x8xf32, #tpu.memory_space<vmem>>, vector<8x8xf32>
    %c19_60 = arith.constant 19 : index
    %c16_61 = arith.constant 16 : index
    %48 = vector.load %arg13[%c19_60, %c16_61] : memref<168x32xf32, #tpu.memory_space<vmem>>, vector<8x8xf32>
    tpu.vector_store %arg13[%c19_60, %c16_61], %47 {strides = array<i32>} : memref<168x32xf32, #tpu.memory_space<vmem>>, vector<8x8xf32>,
    %c85 = arith.constant 85 : index
    %c0_62 = arith.constant 0 : index
    %49 = tpu.strided_load %arg18[%c85, %c0_62] {strides = array<i32: 2, 1>} : memref<544x8xf32, #tpu.memory_space<vmem>>, vector<8x8xf32>
    %c27 = arith.constant 27 : index
    %c8_63 = arith.constant 8 : index
    %50 = vector.load %arg13[%c27, %c8_63] : memref<168x32xf32, #tpu.memory_space<vmem>>, vector<8x8xf32>
    tpu.vector_store %arg13[%c27, %c8_63], %49 {strides = array<i32>} : memref<168x32xf32, #tpu.memory_space<vmem>>, vector<8x8xf32>,
    %c86 = arith.constant 86 : index
    %c0_64 = arith.constant 0 : index
    %51 = tpu.strided_load %arg18[%c86, %c0_64] {strides = array<i32: 2, 1>} : memref<544x8xf32, #tpu.memory_space<vmem>>, vector<8x8xf32>
    %c28 = arith.constant 28 : index
    %c0_65 = arith.constant 0 : index
    %52 = vector.load %arg13[%c28, %c0_65] : memref<168x32xf32, #tpu.memory_space<vmem>>, vector<8x8xf32>
    tpu.vector_store %arg13[%c28, %c0_65], %51 {strides = array<i32>} : memref<168x32xf32, #tpu.memory_space<vmem>>, vector<8x8xf32>,
    %c102 = arith.constant 102 : index
    %c0_66 = arith.constant 0 : index
    %53 = tpu.strided_load %arg18[%c102, %c0_66] {strides = array<i32: 2, 1>} : memref<544x8xf32, #tpu.memory_space<vmem>>, vector<8x8xf32>
    %c27_67 = arith.constant 27 : index
    %c24_68 = arith.constant 24 : index
    %54 = vector.load %arg13[%c27_67, %c24_68] : memref<168x32xf32, #tpu.memory_space<vmem>>, vector<8x8xf32>
    tpu.vector_store %arg13[%c27_67, %c24_68], %53 {strides = array<i32>} : memref<168x32xf32, #tpu.memory_space<vmem>>, vector<8x8xf32>,
    %c103 = arith.constant 103 : index
    %c0_69 = arith.constant 0 : index
    %55 = tpu.strided_load %arg18[%c103, %c0_69] {strides = array<i32: 2, 1>} : memref<544x8xf32, #tpu.memory_space<vmem>>, vector<8x8xf32>
    %c28_70 = arith.constant 28 : index
    %c16_71 = arith.constant 16 : index
    %56 = vector.load %arg13[%c28_70, %c16_71] : memref<168x32xf32, #tpu.memory_space<vmem>>, vector<8x8xf32>
    tpu.vector_store %arg13[%c28_70, %c16_71], %55 {strides = array<i32>} : memref<168x32xf32, #tpu.memory_space<vmem>>, vector<8x8xf32>,
    %c119 = arith.constant 119 : index
    %c0_72 = arith.constant 0 : index
    %57 = tpu.strided_load %arg18[%c119, %c0_72] {strides = array<i32: 2, 1>} : memref<544x8xf32, #tpu.memory_space<vmem>>, vector<8x8xf32>
    %c36 = arith.constant 36 : index
    %c8_73 = arith.constant 8 : index
    %58 = vector.load %arg13[%c36, %c8_73] : memref<168x32xf32, #tpu.memory_space<vmem>>, vector<8x8xf32>
    tpu.vector_store %arg13[%c36, %c8_73], %57 {strides = array<i32>} : memref<168x32xf32, #tpu.memory_space<vmem>>, vector<8x8xf32>,
    %c120 = arith.constant 120 : index
    %c0_74 = arith.constant 0 : index
    %59 = tpu.strided_load %arg18[%c120, %c0_74] {strides = array<i32: 2, 1>} : memref<544x8xf32, #tpu.memory_space<vmem>>, vector<8x8xf32>
    %c37 = arith.constant 37 : index
    %c0_75 = arith.constant 0 : index
    %60 = vector.load %arg13[%c37, %c0_75] : memref<168x32xf32, #tpu.memory_space<vmem>>, vector<8x8xf32>
    tpu.vector_store %arg13[%c37, %c0_75], %59 {strides = array<i32>} : memref<168x32xf32, #tpu.memory_space<vmem>>, vector<8x8xf32>,
    %c136 = arith.constant 136 : index
    %c0_76 = arith.constant 0 : index
    %61 = tpu.strided_load %arg18[%c136, %c0_76] {strides = array<i32: 2, 1>} : memref<544x8xf32, #tpu.memory_space<vmem>>, vector<8x8xf32>
    %c36_77 = arith.constant 36 : index
    %c24_78 = arith.constant 24 : index
    %62 = vector.load %arg13[%c36_77, %c24_78] : memref<168x32xf32, #tpu.memory_space<vmem>>, vector<8x8xf32>
    tpu.vector_store %arg13[%c36_77, %c24_78], %61 {strides = array<i32>} : memref<168x32xf32, #tpu.memory_space<vmem>>, vector<8x8xf32>,
    %c137 = arith.constant 137 : index
    %c0_79 = arith.constant 0 : index
    %63 = tpu.strided_load %arg18[%c137, %c0_79] {strides = array<i32: 2, 1>} : memref<544x8xf32, #tpu.memory_space<vmem>>, vector<8x8xf32>
    %c37_80 = arith.constant 37 : index
    %c16_81 = arith.constant 16 : index
    %64 = vector.load %arg13[%c37_80, %c16_81] : memref<168x32xf32, #tpu.memory_space<vmem>>, vector<8x8xf32>
    tpu.vector_store %arg13[%c37_80, %c16_81], %63 {strides = array<i32>} : memref<168x32xf32, #tpu.memory_space<vmem>>, vector<8x8xf32>,
    %c153 = arith.constant 153 : index
    %c0_82 = arith.constant 0 : index
    %65 = tpu.strided_load %arg18[%c153, %c0_82] {strides = array<i32: 2, 1>} : memref<544x8xf32, #tpu.memory_space<vmem>>, vector<8x8xf32>
    %c45 = arith.constant 45 : index
    %c8_83 = arith.constant 8 : index
    %66 = vector.load %arg13[%c45, %c8_83] : memref<168x32xf32, #tpu.memory_space<vmem>>, vector<8x8xf32>
    tpu.vector_store %arg13[%c45, %c8_83], %65 {strides = array<i32>} : memref<168x32xf32, #tpu.memory_space<vmem>>, vector<8x8xf32>,
    %c154 = arith.constant 154 : index
    %c0_84 = arith.constant 0 : index
    %67 = tpu.strided_load %arg18[%c154, %c0_84] {strides = array<i32: 2, 1>} : memref<544x8xf32, #tpu.memory_space<vmem>>, vector<8x8xf32>
    %c46 = arith.constant 46 : index
    %c0_85 = arith.constant 0 : index
    %68 = vector.load %arg13[%c46, %c0_85] : memref<168x32xf32, #tpu.memory_space<vmem>>, vector<8x8xf32>
    tpu.vector_store %arg13[%c46, %c0_85], %67 {strides = array<i32>} : memref<168x32xf32, #tpu.memory_space<vmem>>, vector<8x8xf32>,
    %c170 = arith.constant 170 : index
    %c0_86 = arith.constant 0 : index
    %69 = tpu.strided_load %arg18[%c170, %c0_86] {strides = array<i32: 2, 1>} : memref<544x8xf32, #tpu.memory_space<vmem>>, vector<8x8xf32>
    %c45_87 = arith.constant 45 : index
    %c24_88 = arith.constant 24 : index
    %70 = vector.load %arg13[%c45_87, %c24_88] : memref<168x32xf32, #tpu.memory_space<vmem>>, vector<8x8xf32>
    tpu.vector_store %arg13[%c45_87, %c24_88], %69 {strides = array<i32>} : memref<168x32xf32, #tpu.memory_space<vmem>>, vector<8x8xf32>,
    %c171 = arith.constant 171 : index
    %c0_89 = arith.constant 0 : index
    %71 = tpu.strided_load %arg18[%c171, %c0_89] {strides = array<i32: 2, 1>} : memref<544x8xf32, #tpu.memory_space<vmem>>, vector<8x8xf32>
    %c46_90 = arith.constant 46 : index
    %c16_91 = arith.constant 16 : index
    %72 = vector.load %arg13[%c46_90, %c16_91] : memref<168x32xf32, #tpu.memory_space<vmem>>, vector<8x8xf32>
    tpu.vector_store %arg13[%c46_90, %c16_91], %71 {strides = array<i32>} : memref<168x32xf32, #tpu.memory_space<vmem>>, vector<8x8xf32>,
    %c187 = arith.constant 187 : index
    %c0_92 = arith.constant 0 : index
    %73 = tpu.strided_load %arg18[%c187, %c0_92] {strides = array<i32: 2, 1>} : memref<544x8xf32, #tpu.memory_space<vmem>>, vector<8x8xf32>
    %c54 = arith.constant 54 : index
    %c8_93 = arith.constant 8 : index
    %74 = vector.load %arg13[%c54, %c8_93] : memref<168x32xf32, #tpu.memory_space<vmem>>, vector<8x8xf32>
    tpu.vector_store %arg13[%c54, %c8_93], %73 {strides = array<i32>} : memref<168x32xf32, #tpu.memory_space<vmem>>, vector<8x8xf32>,
    %c188 = arith.constant 188 : index
    %c0_94 = arith.constant 0 : index
    %75 = tpu.strided_load %arg18[%c188, %c0_94] {strides = array<i32: 2, 1>} : memref<544x8xf32, #tpu.memory_space<vmem>>, vector<8x8xf32>
    %c55 = arith.constant 55 : index
    %c0_95 = arith.constant 0 : index
    %76 = vector.load %arg13[%c55, %c0_95] : memref<168x32xf32, #tpu.memory_space<vmem>>, vector<8x8xf32>
    tpu.vector_store %arg13[%c55, %c0_95], %75 {strides = array<i32>} : memref<168x32xf32, #tpu.memory_space<vmem>>, vector<8x8xf32>,
    %c204 = arith.constant 204 : index
    %c0_96 = arith.constant 0 : index
    %77 = tpu.strided_load %arg18[%c204, %c0_96] {strides = array<i32: 2, 1>} : memref<544x8xf32, #tpu.memory_space<vmem>>, vector<8x8xf32>
    %c54_97 = arith.constant 54 : index
    %c24_98 = arith.constant 24 : index
    %78 = vector.load %arg13[%c54_97, %c24_98] : memref<168x32xf32, #tpu.memory_space<vmem>>, vector<8x8xf32>
    tpu.vector_store %arg13[%c54_97, %c24_98], %77 {strides = array<i32>} : memref<168x32xf32, #tpu.memory_space<vmem>>, vector<8x8xf32>,
    %c205 = arith.constant 205 : index
    %c0_99 = arith.constant 0 : index
    %79 = tpu.strided_load %arg18[%c205, %c0_99] {strides = array<i32: 2, 1>} : memref<544x8xf32, #tpu.memory_space<vmem>>, vector<8x8xf32>
    %c55_100 = arith.constant 55 : index
    %c16_101 = arith.constant 16 : index
    %80 = vector.load %arg13[%c55_100, %c16_101] : memref<168x32xf32, #tpu.memory_space<vmem>>, vector<8x8xf32>
    tpu.vector_store %arg13[%c55_100, %c16_101], %79 {strides = array<i32>} : memref<168x32xf32, #tpu.memory_space<vmem>>, vector<8x8xf32>,
    %c221 = arith.constant 221 : index
    %c0_102 = arith.constant 0 : index
    %81 = tpu.strided_load %arg18[%c221, %c0_102] {strides = array<i32: 2, 1>} : memref<544x8xf32, #tpu.memory_space<vmem>>, vector<8x8xf32>
    %c63 = arith.constant 63 : index
    %c8_103 = arith.constant 8 : index
    %82 = vector.load %arg13[%c63, %c8_103] : memref<168x32xf32, #tpu.memory_space<vmem>>, vector<8x8xf32>
    tpu.vector_store %arg13[%c63, %c8_103], %81 {strides = array<i32>} : memref<168x32xf32, #tpu.memory_space<vmem>>, vector<8x8xf32>,
    %c222 = arith.constant 222 : index
    %c0_104 = arith.constant 0 : index
    %83 = tpu.strided_load %arg18[%c222, %c0_104] {strides = array<i32: 2, 1>} : memref<544x8xf32, #tpu.memory_space<vmem>>, vector<8x8xf32>
    %c64_105 = arith.constant 64 : index
    %c0_106 = arith.constant 0 : index
    %84 = vector.load %arg13[%c64_105, %c0_106] : memref<168x32xf32, #tpu.memory_space<vmem>>, vector<8x8xf32>
    tpu.vector_store %arg13[%c64_105, %c0_106], %83 {strides = array<i32>} : memref<168x32xf32, #tpu.memory_space<vmem>>, vector<8x8xf32>,
    %c238 = arith.constant 238 : index
    %c0_107 = arith.constant 0 : index
    %85 = tpu.strided_load %arg18[%c238, %c0_107] {strides = array<i32: 2, 1>} : memref<544x8xf32, #tpu.memory_space<vmem>>, vector<8x8xf32>
    %c63_108 = arith.constant 63 : index
    %c24_109 = arith.constant 24 : index
    %86 = vector.load %arg13[%c63_108, %c24_109] : memref<168x32xf32, #tpu.memory_space<vmem>>, vector<8x8xf32>
    tpu.vector_store %arg13[%c63_108, %c24_109], %85 {strides = array<i32>} : memref<168x32xf32, #tpu.memory_space<vmem>>, vector<8x8xf32>,
    %c239 = arith.constant 239 : index
    %c0_110 = arith.constant 0 : index
    %87 = tpu.strided_load %arg18[%c239, %c0_110] {strides = array<i32: 2, 1>} : memref<544x8xf32, #tpu.memory_space<vmem>>, vector<8x8xf32>
    %c64_111 = arith.constant 64 : index
    %c16_112 = arith.constant 16 : index
    %88 = vector.load %arg13[%c64_111, %c16_112] : memref<168x32xf32, #tpu.memory_space<vmem>>, vector<8x8xf32>
    tpu.vector_store %arg13[%c64_111, %c16_112], %87 {strides = array<i32>} : memref<168x32xf32, #tpu.memory_space<vmem>>, vector<8x8xf32>,
    %c255 = arith.constant 255 : index
    %c0_113 = arith.constant 0 : index
    %89 = tpu.strided_load %arg18[%c255, %c0_113] {strides = array<i32: 2, 1>} : memref<544x8xf32, #tpu.memory_space<vmem>>, vector<8x8xf32>
    %c72 = arith.constant 72 : index
    %c8_114 = arith.constant 8 : index
    %90 = vector.load %arg13[%c72, %c8_114] : memref<168x32xf32, #tpu.memory_space<vmem>>, vector<8x8xf32>
    tpu.vector_store %arg13[%c72, %c8_114], %89 {strides = array<i32>} : memref<168x32xf32, #tpu.memory_space<vmem>>, vector<8x8xf32>,
    %c256 = arith.constant 256 : index
    %c0_115 = arith.constant 0 : index
    %91 = tpu.strided_load %arg18[%c256, %c0_115] {strides = array<i32: 2, 1>} : memref<544x8xf32, #tpu.memory_space<vmem>>, vector<8x8xf32>
    %c73 = arith.constant 73 : index
    %c0_116 = arith.constant 0 : index
    %92 = vector.load %arg13[%c73, %c0_116] : memref<168x32xf32, #tpu.memory_space<vmem>>, vector<8x8xf32>
    tpu.vector_store %arg13[%c73, %c0_116], %91 {strides = array<i32>} : memref<168x32xf32, #tpu.memory_space<vmem>>, vector<8x8xf32>,
    %c272_117 = arith.constant 272 : index
    %c0_118 = arith.constant 0 : index
    %93 = tpu.strided_load %arg18[%c272_117, %c0_118] {strides = array<i32: 2, 1>} : memref<544x8xf32, #tpu.memory_space<vmem>>, vector<8x8xf32>
    %c81 = arith.constant 81 : index
    %c24_119 = arith.constant 24 : index
    %94 = vector.load %arg13[%c81, %c24_119] : memref<168x32xf32, #tpu.memory_space<vmem>>, vector<8x8xf32>
    tpu.vector_store %arg13[%c81, %c24_119], %93 {strides = array<i32>} : memref<168x32xf32, #tpu.memory_space<vmem>>, vector<8x8xf32>,
    %c273 = arith.constant 273 : index
    %c0_120 = arith.constant 0 : index
    %95 = tpu.strided_load %arg18[%c273, %c0_120] {strides = array<i32: 2, 1>} : memref<544x8xf32, #tpu.memory_space<vmem>>, vector<8x8xf32>
    %c82 = arith.constant 82 : index
    %c16_121 = arith.constant 16 : index
    %96 = vector.load %arg13[%c82, %c16_121] : memref<168x32xf32, #tpu.memory_space<vmem>>, vector<8x8xf32>
    tpu.vector_store %arg13[%c82, %c16_121], %95 {strides = array<i32>} : memref<168x32xf32, #tpu.memory_space<vmem>>, vector<8x8xf32>,
    %c289_122 = arith.constant 289 : index
    %c0_123 = arith.constant 0 : index
    %97 = tpu.strided_load %arg18[%c289_122, %c0_123] {strides = array<i32: 2, 1>} : memref<544x8xf32, #tpu.memory_space<vmem>>, vector<8x8xf32>
    %c90 = arith.constant 90 : index
    %c8_124 = arith.constant 8 : index
    %98 = vector.load %arg13[%c90, %c8_124] : memref<168x32xf32, #tpu.memory_space<vmem>>, vector<8x8xf32>
    tpu.vector_store %arg13[%c90, %c8_124], %97 {strides = array<i32>} : memref<168x32xf32, #tpu.memory_space<vmem>>, vector<8x8xf32>,
    %c290_125 = arith.constant 290 : index
    %c0_126 = arith.constant 0 : index
    %99 = tpu.strided_load %arg18[%c290_125, %c0_126] {strides = array<i32: 2, 1>} : memref<544x8xf32, #tpu.memory_space<vmem>>, vector<8x8xf32>
    %c91 = arith.constant 91 : index
    %c0_127 = arith.constant 0 : index
    %100 = vector.load %arg13[%c91, %c0_127] : memref<168x32xf32, #tpu.memory_space<vmem>>, vector<8x8xf32>
    tpu.vector_store %arg13[%c91, %c0_127], %99 {strides = array<i32>} : memref<168x32xf32, #tpu.memory_space<vmem>>, vector<8x8xf32>,
    %c306_128 = arith.constant 306 : index
    %c0_129 = arith.constant 0 : index
    %101 = tpu.strided_load %arg18[%c306_128, %c0_129] {strides = array<i32: 2, 1>} : memref<544x8xf32, #tpu.memory_space<vmem>>, vector<8x8xf32>
    %c90_130 = arith.constant 90 : index
    %c24_131 = arith.constant 24 : index
    %102 = vector.load %arg13[%c90_130, %c24_131] : memref<168x32xf32, #tpu.memory_space<vmem>>, vector<8x8xf32>
    tpu.vector_store %arg13[%c90_130, %c24_131], %101 {strides = array<i32>} : memref<168x32xf32, #tpu.memory_space<vmem>>, vector<8x8xf32>,
    %c307_132 = arith.constant 307 : index
    %c0_133 = arith.constant 0 : index
    %103 = tpu.strided_load %arg18[%c307_132, %c0_133] {strides = array<i32: 2, 1>} : memref<544x8xf32, #tpu.memory_space<vmem>>, vector<8x8xf32>
    %c91_134 = arith.constant 91 : index
    %c16_135 = arith.constant 16 : index
    %104 = vector.load %arg13[%c91_134, %c16_135] : memref<168x32xf32, #tpu.memory_space<vmem>>, vector<8x8xf32>
    tpu.vector_store %arg13[%c91_134, %c16_135], %103 {strides = array<i32>} : memref<168x32xf32, #tpu.memory_space<vmem>>, vector<8x8xf32>,
    %c323 = arith.constant 323 : index
    %c0_136 = arith.constant 0 : index
    %105 = tpu.strided_load %arg18[%c323, %c0_136] {strides = array<i32: 2, 1>} : memref<544x8xf32, #tpu.memory_space<vmem>>, vector<8x8xf32>
    %c99 = arith.constant 99 : index
    %c8_137 = arith.constant 8 : index
    %106 = vector.load %arg13[%c99, %c8_137] : memref<168x32xf32, #tpu.memory_space<vmem>>, vector<8x8xf32>
    tpu.vector_store %arg13[%c99, %c8_137], %105 {strides = array<i32>} : memref<168x32xf32, #tpu.memory_space<vmem>>, vector<8x8xf32>,
    %c324 = arith.constant 324 : index
    %c0_138 = arith.constant 0 : index
    %107 = tpu.strided_load %arg18[%c324, %c0_138] {strides = array<i32: 2, 1>} : memref<544x8xf32, #tpu.memory_space<vmem>>, vector<8x8xf32>
    %c100 = arith.constant 100 : index
    %c0_139 = arith.constant 0 : index
    %108 = vector.load %arg13[%c100, %c0_139] : memref<168x32xf32, #tpu.memory_space<vmem>>, vector<8x8xf32>
    tpu.vector_store %arg13[%c100, %c0_139], %107 {strides = array<i32>} : memref<168x32xf32, #tpu.memory_space<vmem>>, vector<8x8xf32>,
    %c340 = arith.constant 340 : index
    %c0_140 = arith.constant 0 : index
    %109 = tpu.strided_load %arg18[%c340, %c0_140] {strides = array<i32: 2, 1>} : memref<544x8xf32, #tpu.memory_space<vmem>>, vector<8x8xf32>
    %c99_141 = arith.constant 99 : index
    %c24_142 = arith.constant 24 : index
    %110 = vector.load %arg13[%c99_141, %c24_142] : memref<168x32xf32, #tpu.memory_space<vmem>>, vector<8x8xf32>
    tpu.vector_store %arg13[%c99_141, %c24_142], %109 {strides = array<i32>} : memref<168x32xf32, #tpu.memory_space<vmem>>, vector<8x8xf32>,
    %c341 = arith.constant 341 : index
    %c0_143 = arith.constant 0 : index
    %111 = tpu.strided_load %arg18[%c341, %c0_143] {strides = array<i32: 2, 1>} : memref<544x8xf32, #tpu.memory_space<vmem>>, vector<8x8xf32>
    %c100_144 = arith.constant 100 : index
    %c16_145 = arith.constant 16 : index
    %112 = vector.load %arg13[%c100_144, %c16_145] : memref<168x32xf32, #tpu.memory_space<vmem>>, vector<8x8xf32>
    tpu.vector_store %arg13[%c100_144, %c16_145], %111 {strides = array<i32>} : memref<168x32xf32, #tpu.memory_space<vmem>>, vector<8x8xf32>,
    %c357 = arith.constant 357 : index
    %c0_146 = arith.constant 0 : index
    %113 = tpu.strided_load %arg18[%c357, %c0_146] {strides = array<i32: 2, 1>} : memref<544x8xf32, #tpu.memory_space<vmem>>, vector<8x8xf32>
    %c108 = arith.constant 108 : index
    %c8_147 = arith.constant 8 : index
    %114 = vector.load %arg13[%c108, %c8_147] : memref<168x32xf32, #tpu.memory_space<vmem>>, vector<8x8xf32>
    tpu.vector_store %arg13[%c108, %c8_147], %113 {strides = array<i32>} : memref<168x32xf32, #tpu.memory_space<vmem>>, vector<8x8xf32>,
    %c358 = arith.constant 358 : index
    %c0_148 = arith.constant 0 : index
    %115 = tpu.strided_load %arg18[%c358, %c0_148] {strides = array<i32: 2, 1>} : memref<544x8xf32, #tpu.memory_space<vmem>>, vector<8x8xf32>
    %c109 = arith.constant 109 : index
    %c0_149 = arith.constant 0 : index
    %116 = vector.load %arg13[%c109, %c0_149] : memref<168x32xf32, #tpu.memory_space<vmem>>, vector<8x8xf32>
    tpu.vector_store %arg13[%c109, %c0_149], %115 {strides = array<i32>} : memref<168x32xf32, #tpu.memory_space<vmem>>, vector<8x8xf32>,
    %c374 = arith.constant 374 : index
    %c0_150 = arith.constant 0 : index
    %117 = tpu.strided_load %arg18[%c374, %c0_150] {strides = array<i32: 2, 1>} : memref<544x8xf32, #tpu.memory_space<vmem>>, vector<8x8xf32>
    %c108_151 = arith.constant 108 : index
    %c24_152 = arith.constant 24 : index
    %118 = vector.load %arg13[%c108_151, %c24_152] : memref<168x32xf32, #tpu.memory_space<vmem>>, vector<8x8xf32>
    tpu.vector_store %arg13[%c108_151, %c24_152], %117 {strides = array<i32>} : memref<168x32xf32, #tpu.memory_space<vmem>>, vector<8x8xf32>,
    %c375 = arith.constant 375 : index
    %c0_153 = arith.constant 0 : index
    %119 = tpu.strided_load %arg18[%c375, %c0_153] {strides = array<i32: 2, 1>} : memref<544x8xf32, #tpu.memory_space<vmem>>, vector<8x8xf32>
    %c109_154 = arith.constant 109 : index
    %c16_155 = arith.constant 16 : index
    %120 = vector.load %arg13[%c109_154, %c16_155] : memref<168x32xf32, #tpu.memory_space<vmem>>, vector<8x8xf32>
    tpu.vector_store %arg13[%c109_154, %c16_155], %119 {strides = array<i32>} : memref<168x32xf32, #tpu.memory_space<vmem>>, vector<8x8xf32>,
    %c391 = arith.constant 391 : index
    %c0_156 = arith.constant 0 : index
    %121 = tpu.strided_load %arg18[%c391, %c0_156] {strides = array<i32: 2, 1>} : memref<544x8xf32, #tpu.memory_space<vmem>>, vector<8x8xf32>
    %c117 = arith.constant 117 : index
    %c8_157 = arith.constant 8 : index
    %122 = vector.load %arg13[%c117, %c8_157] : memref<168x32xf32, #tpu.memory_space<vmem>>, vector<8x8xf32>
    tpu.vector_store %arg13[%c117, %c8_157], %121 {strides = array<i32>} : memref<168x32xf32, #tpu.memory_space<vmem>>, vector<8x8xf32>,
    %c392 = arith.constant 392 : index
    %c0_158 = arith.constant 0 : index
    %123 = tpu.strided_load %arg18[%c392, %c0_158] {strides = array<i32: 2, 1>} : memref<544x8xf32, #tpu.memory_space<vmem>>, vector<8x8xf32>
    %c118 = arith.constant 118 : index
    %c0_159 = arith.constant 0 : index
    %124 = vector.load %arg13[%c118, %c0_159] : memref<168x32xf32, #tpu.memory_space<vmem>>, vector<8x8xf32>
    tpu.vector_store %arg13[%c118, %c0_159], %123 {strides = array<i32>} : memref<168x32xf32, #tpu.memory_space<vmem>>, vector<8x8xf32>,
    %c408 = arith.constant 408 : index
    %c0_160 = arith.constant 0 : index
    %125 = tpu.strided_load %arg18[%c408, %c0_160] {strides = array<i32: 2, 1>} : memref<544x8xf32, #tpu.memory_space<vmem>>, vector<8x8xf32>
    %c117_161 = arith.constant 117 : index
    %c24_162 = arith.constant 24 : index
    %126 = vector.load %arg13[%c117_161, %c24_162] : memref<168x32xf32, #tpu.memory_space<vmem>>, vector<8x8xf32>
    tpu.vector_store %arg13[%c117_161, %c24_162], %125 {strides = array<i32>} : memref<168x32xf32, #tpu.memory_space<vmem>>, vector<8x8xf32>,
    %c409 = arith.constant 409 : index
    %c0_163 = arith.constant 0 : index
    %127 = tpu.strided_load %arg18[%c409, %c0_163] {strides = array<i32: 2, 1>} : memref<544x8xf32, #tpu.memory_space<vmem>>, vector<8x8xf32>
    %c118_164 = arith.constant 118 : index
    %c16_165 = arith.constant 16 : index
    %128 = vector.load %arg13[%c118_164, %c16_165] : memref<168x32xf32, #tpu.memory_space<vmem>>, vector<8x8xf32>
    tpu.vector_store %arg13[%c118_164, %c16_165], %127 {strides = array<i32>} : memref<168x32xf32, #tpu.memory_space<vmem>>, vector<8x8xf32>,
    %c425 = arith.constant 425 : index
    %c0_166 = arith.constant 0 : index
    %129 = tpu.strided_load %arg18[%c425, %c0_166] {strides = array<i32: 2, 1>} : memref<544x8xf32, #tpu.memory_space<vmem>>, vector<8x8xf32>
    %c126 = arith.constant 126 : index
    %c8_167 = arith.constant 8 : index
    %130 = vector.load %arg13[%c126, %c8_167] : memref<168x32xf32, #tpu.memory_space<vmem>>, vector<8x8xf32>
    tpu.vector_store %arg13[%c126, %c8_167], %129 {strides = array<i32>} : memref<168x32xf32, #tpu.memory_space<vmem>>, vector<8x8xf32>,
    %c426 = arith.constant 426 : index
    %c0_168 = arith.constant 0 : index
    %131 = tpu.strided_load %arg18[%c426, %c0_168] {strides = array<i32: 2, 1>} : memref<544x8xf32, #tpu.memory_space<vmem>>, vector<8x8xf32>
    %c127 = arith.constant 127 : index
    %c0_169 = arith.constant 0 : index
    %132 = vector.load %arg13[%c127, %c0_169] : memref<168x32xf32, #tpu.memory_space<vmem>>, vector<8x8xf32>
    tpu.vector_store %arg13[%c127, %c0_169], %131 {strides = array<i32>} : memref<168x32xf32, #tpu.memory_space<vmem>>, vector<8x8xf32>,
    %c442 = arith.constant 442 : index
    %c0_170 = arith.constant 0 : index
    %133 = tpu.strided_load %arg18[%c442, %c0_170] {strides = array<i32: 2, 1>} : memref<544x8xf32, #tpu.memory_space<vmem>>, vector<8x8xf32>
    %c126_171 = arith.constant 126 : index
    %c24_172 = arith.constant 24 : index
    %134 = vector.load %arg13[%c126_171, %c24_172] : memref<168x32xf32, #tpu.memory_space<vmem>>, vector<8x8xf32>
    tpu.vector_store %arg13[%c126_171, %c24_172], %133 {strides = array<i32>} : memref<168x32xf32, #tpu.memory_space<vmem>>, vector<8x8xf32>,
    %c443 = arith.constant 443 : index
    %c0_173 = arith.constant 0 : index
    %135 = tpu.strided_load %arg18[%c443, %c0_173] {strides = array<i32: 2, 1>} : memref<544x8xf32, #tpu.memory_space<vmem>>, vector<8x8xf32>
    %c127_174 = arith.constant 127 : index
    %c16_175 = arith.constant 16 : index
    %136 = vector.load %arg13[%c127_174, %c16_175] : memref<168x32xf32, #tpu.memory_space<vmem>>, vector<8x8xf32>
    tpu.vector_store %arg13[%c127_174, %c16_175], %135 {strides = array<i32>} : memref<168x32xf32, #tpu.memory_space<vmem>>, vector<8x8xf32>,
    %c459 = arith.constant 459 : index
    %c0_176 = arith.constant 0 : index
    %137 = tpu.strided_load %arg18[%c459, %c0_176] {strides = array<i32: 2, 1>} : memref<544x8xf32, #tpu.memory_space<vmem>>, vector<8x8xf32>
    %c135 = arith.constant 135 : index
    %c8_177 = arith.constant 8 : index
    %138 = vector.load %arg13[%c135, %c8_177] : memref<168x32xf32, #tpu.memory_space<vmem>>, vector<8x8xf32>
    tpu.vector_store %arg13[%c135, %c8_177], %137 {strides = array<i32>} : memref<168x32xf32, #tpu.memory_space<vmem>>, vector<8x8xf32>,
    %c460 = arith.constant 460 : index
    %c0_178 = arith.constant 0 : index
    %139 = tpu.strided_load %arg18[%c460, %c0_178] {strides = array<i32: 2, 1>} : memref<544x8xf32, #tpu.memory_space<vmem>>, vector<8x8xf32>
    %c136_179 = arith.constant 136 : index
    %c0_180 = arith.constant 0 : index
    %140 = vector.load %arg13[%c136_179, %c0_180] : memref<168x32xf32, #tpu.memory_space<vmem>>, vector<8x8xf32>
    tpu.vector_store %arg13[%c136_179, %c0_180], %139 {strides = array<i32>} : memref<168x32xf32, #tpu.memory_space<vmem>>, vector<8x8xf32>,
    %c476 = arith.constant 476 : index
    %c0_181 = arith.constant 0 : index
    %141 = tpu.strided_load %arg18[%c476, %c0_181] {strides = array<i32: 2, 1>} : memref<544x8xf32, #tpu.memory_space<vmem>>, vector<8x8xf32>
    %c135_182 = arith.constant 135 : index
    %c24_183 = arith.constant 24 : index
    %142 = vector.load %arg13[%c135_182, %c24_183] : memref<168x32xf32, #tpu.memory_space<vmem>>, vector<8x8xf32>
    tpu.vector_store %arg13[%c135_182, %c24_183], %141 {strides = array<i32>} : memref<168x32xf32, #tpu.memory_space<vmem>>, vector<8x8xf32>,
    %c477 = arith.constant 477 : index
    %c0_184 = arith.constant 0 : index
    %143 = tpu.strided_load %arg18[%c477, %c0_184] {strides = array<i32: 2, 1>} : memref<544x8xf32, #tpu.memory_space<vmem>>, vector<8x8xf32>
    %c136_185 = arith.constant 136 : index
    %c16_186 = arith.constant 16 : index
    %144 = vector.load %arg13[%c136_185, %c16_186] : memref<168x32xf32, #tpu.memory_space<vmem>>, vector<8x8xf32>
    tpu.vector_store %arg13[%c136_185, %c16_186], %143 {strides = array<i32>} : memref<168x32xf32, #tpu.memory_space<vmem>>, vector<8x8xf32>,
    %c493 = arith.constant 493 : index
    %c0_187 = arith.constant 0 : index
    %145 = tpu.strided_load %arg18[%c493, %c0_187] {strides = array<i32: 2, 1>} : memref<544x8xf32, #tpu.memory_space<vmem>>, vector<8x8xf32>
    %c144 = arith.constant 144 : index
    %c8_188 = arith.constant 8 : index
    %146 = vector.load %arg13[%c144, %c8_188] : memref<168x32xf32, #tpu.memory_space<vmem>>, vector<8x8xf32>
    tpu.vector_store %arg13[%c144, %c8_188], %145 {strides = array<i32>} : memref<168x32xf32, #tpu.memory_space<vmem>>, vector<8x8xf32>,
    %c494 = arith.constant 494 : index
    %c0_189 = arith.constant 0 : index
    %147 = tpu.strided_load %arg18[%c494, %c0_189] {strides = array<i32: 2, 1>} : memref<544x8xf32, #tpu.memory_space<vmem>>, vector<8x8xf32>
    %c145 = arith.constant 145 : index
    %c0_190 = arith.constant 0 : index
    %148 = vector.load %arg13[%c145, %c0_190] : memref<168x32xf32, #tpu.memory_space<vmem>>, vector<8x8xf32>
    tpu.vector_store %arg13[%c145, %c0_190], %147 {strides = array<i32>} : memref<168x32xf32, #tpu.memory_space<vmem>>, vector<8x8xf32>,
    %c510 = arith.constant 510 : index
    %c0_191 = arith.constant 0 : index
    %149 = tpu.strided_load %arg18[%c510, %c0_191] {strides = array<i32: 2, 1>} : memref<544x8xf32, #tpu.memory_space<vmem>>, vector<8x8xf32>
    %c144_192 = arith.constant 144 : index
    %c24_193 = arith.constant 24 : index
    %150 = vector.load %arg13[%c144_192, %c24_193] : memref<168x32xf32, #tpu.memory_space<vmem>>, vector<8x8xf32>
    tpu.vector_store %arg13[%c144_192, %c24_193], %149 {strides = array<i32>} : memref<168x32xf32, #tpu.memory_space<vmem>>, vector<8x8xf32>,
    %c511 = arith.constant 511 : index
    %c0_194 = arith.constant 0 : index
    %151 = tpu.strided_load %arg18[%c511, %c0_194] {strides = array<i32: 2, 1>} : memref<544x8xf32, #tpu.memory_space<vmem>>, vector<8x8xf32>
    %c145_195 = arith.constant 145 : index
    %c16_196 = arith.constant 16 : index
    %152 = vector.load %arg13[%c145_195, %c16_196] : memref<168x32xf32, #tpu.memory_space<vmem>>, vector<8x8xf32>
    tpu.vector_store %arg13[%c145_195, %c16_196], %151 {strides = array<i32>} : memref<168x32xf32, #tpu.memory_space<vmem>>, vector<8x8xf32>,
    %c527 = arith.constant 527 : index
    %c0_197 = arith.constant 0 : index
    %153 = tpu.strided_load %arg18[%c527, %c0_197] {strides = array<i32: 2, 1>} : memref<544x8xf32, #tpu.memory_space<vmem>>, vector<8x8xf32>
    %c153_198 = arith.constant 153 : index
    %c8_199 = arith.constant 8 : index
    %154 = vector.load %arg13[%c153_198, %c8_199] : memref<168x32xf32, #tpu.memory_space<vmem>>, vector<8x8xf32>
    tpu.vector_store %arg13[%c153_198, %c8_199], %153 {strides = array<i32>} : memref<168x32xf32, #tpu.memory_space<vmem>>, vector<8x8xf32>,
    %c528 = arith.constant 528 : index
    %c0_200 = arith.constant 0 : index
    %155 = tpu.strided_load %arg18[%c528, %c0_200] {strides = array<i32: 2, 1>} : memref<544x8xf32, #tpu.memory_space<vmem>>, vector<8x8xf32>
    %c154_201 = arith.constant 154 : index
    %c0_202 = arith.constant 0 : index
    %156 = vector.load %arg13[%c154_201, %c0_202] : memref<168x32xf32, #tpu.memory_space<vmem>>, vector<8x8xf32>
    tpu.vector_store %arg13[%c154_201, %c0_202], %155 {strides = array<i32>} : memref<168x32xf32, #tpu.memory_space<vmem>>, vector<8x8xf32>,
    %c0_203 = arith.constant 0 : index
    %c0_204 = arith.constant 0 : index
    %157 = vector.load %arg13[%c0_203, %c0_204] : memref<168x32xf32, #tpu.memory_space<vmem>>, vector<72x32xf32>
    %c0_205 = arith.constant 0 : index
    %c0_206 = arith.constant 0 : index
    %158 = vector.load %arg16[%c0_205, %c0_206] : memref<144x128xf32, #tpu.memory_space<vmem>>, vector<72x32xf32>
    tpu.vector_store %arg16[%c0_205, %c0_206], %157 {strides = array<i32>} : memref<144x128xf32, #tpu.memory_space<vmem>>, vector<72x32xf32>,
    %c81_207 = arith.constant 81 : index
    %c0_208 = arith.constant 0 : index
    %159 = vector.load %arg13[%c81_207, %c0_208] : memref<168x32xf32, #tpu.memory_space<vmem>>, vector<72x32xf32>
    %c72_209 = arith.constant 72 : index
    %c0_210 = arith.constant 0 : index
    %160 = vector.load %arg16[%c72_209, %c0_210] : memref<144x128xf32, #tpu.memory_space<vmem>>, vector<72x32xf32>
    tpu.vector_store %arg16[%c72_209, %c0_210], %159 {strides = array<i32>} : memref<144x128xf32, #tpu.memory_space<vmem>>, vector<72x32xf32>,
    %c1_211 = arith.constant 1 : index
    %c0_212 = arith.constant 0 : index
    %161 = vector.load %arg13[%c1_211, %c0_212] : memref<168x32xf32, #tpu.memory_space<vmem>>, vector<72x32xf32>
    %c0_213 = arith.constant 0 : index
    %c32_214 = arith.constant 32 : index
    %162 = vector.load %arg16[%c0_213, %c32_214] : memref<144x128xf32, #tpu.memory_space<vmem>>, vector<72x32xf32>
    tpu.vector_store %arg16[%c0_213, %c32_214], %161 {strides = array<i32>} : memref<144x128xf32, #tpu.memory_space<vmem>>, vector<72x32xf32>,
    %c82_215 = arith.constant 82 : index
    %c0_216 = arith.constant 0 : index
    %163 = vector.load %arg13[%c82_215, %c0_216] : memref<168x32xf32, #tpu.memory_space<vmem>>, vector<72x32xf32>
    %c72_217 = arith.constant 72 : index
    %c32_218 = arith.constant 32 : index
    %164 = vector.load %arg16[%c72_217, %c32_218] : memref<144x128xf32, #tpu.memory_space<vmem>>, vector<72x32xf32>
    tpu.vector_store %arg16[%c72_217, %c32_218], %163 {strides = array<i32>} : memref<144x128xf32, #tpu.memory_space<vmem>>, vector<72x32xf32>,
    %c9_219 = arith.constant 9 : index
    %c0_220 = arith.constant 0 : index
    %165 = vector.load %arg13[%c9_219, %c0_220] : memref<168x32xf32, #tpu.memory_space<vmem>>, vector<72x32xf32>
    %c0_221 = arith.constant 0 : index
    %c64_222 = arith.constant 64 : index
    %166 = vector.load %arg16[%c0_221, %c64_222] : memref<144x128xf32, #tpu.memory_space<vmem>>, vector<72x32xf32>
    tpu.vector_store %arg16[%c0_221, %c64_222], %165 {strides = array<i32>} : memref<144x128xf32, #tpu.memory_space<vmem>>, vector<72x32xf32>,
    %c90_223 = arith.constant 90 : index
    %c0_224 = arith.constant 0 : index
    %167 = vector.load %arg13[%c90_223, %c0_224] : memref<168x32xf32, #tpu.memory_space<vmem>>, vector<72x32xf32>
    %c72_225 = arith.constant 72 : index
    %c64_226 = arith.constant 64 : index
    %168 = vector.load %arg16[%c72_225, %c64_226] : memref<144x128xf32, #tpu.memory_space<vmem>>, vector<72x32xf32>
    tpu.vector_store %arg16[%c72_225, %c64_226], %167 {strides = array<i32>} : memref<144x128xf32, #tpu.memory_space<vmem>>, vector<72x32xf32>,
    %c10_227 = arith.constant 10 : index
    %c0_228 = arith.constant 0 : index
    %169 = vector.load %arg13[%c10_227, %c0_228] : memref<168x32xf32, #tpu.memory_space<vmem>>, vector<72x32xf32>
    %c0_229 = arith.constant 0 : index
    %c96_230 = arith.constant 96 : index
    %170 = vector.load %arg16[%c0_229, %c96_230] : memref<144x128xf32, #tpu.memory_space<vmem>>, vector<72x32xf32>
    tpu.vector_store %arg16[%c0_229, %c96_230], %169 {strides = array<i32>} : memref<144x128xf32, #tpu.memory_space<vmem>>, vector<72x32xf32>,
    %c91_231 = arith.constant 91 : index
    %c0_232 = arith.constant 0 : index
    %171 = vector.load %arg13[%c91_231, %c0_232] : memref<168x32xf32, #tpu.memory_space<vmem>>, vector<72x32xf32>
    %c72_233 = arith.constant 72 : index
    %c96_234 = arith.constant 96 : index
    %172 = vector.load %arg16[%c72_233, %c96_234] : memref<144x128xf32, #tpu.memory_space<vmem>>, vector<72x32xf32>
    tpu.vector_store %arg16[%c72_233, %c96_234], %171 {strides = array<i32>} : memref<144x128xf32, #tpu.memory_space<vmem>>, vector<72x32xf32>,
    %c0_235 = arith.constant 0 : index
    %c0_236 = arith.constant 0 : index
    %173 = vector.load %arg16[%c0_235, %c0_236] : memref<144x128xf32, #tpu.memory_space<vmem>>, vector<144x128xf32>
    %c0_237 = arith.constant 0 : index
    %c0_238 = arith.constant 0 : index
    %174 = vector.load %arg2[%c0_237, %c0_238] : memref<128x16xf32, #tpu.memory_space<vmem>>, vector<128x16xf32>
    %cst_239 = arith.constant dense<0.000000e+00> : vector<144x16xf32>
    %175 = tpu.matmul %173, %174, %cst_239 {dimension_numbers = #tpu.dot_dimension_numbers<[1], [0], [0], [1], [0, 0, 1, 1], [], []>} : vector<144x128xf32>, vector<128x16xf32>, vector<144x16xf32> -> vector<144x16xf32>
    %c0_240 = arith.constant 0 : index
    %c0_241 = arith.constant 0 : index
    %176 = vector.load %arg10[%c0_240, %c0_241] : memref<144x1xf32, #tpu.memory_space<vmem>>, vector<144x1xf32>
    %177 = vector.broadcast %176 : vector<144x1xf32> to vector<144x16xf32>
    %178 = arith.mulf %175, %177 : vector<144x16xf32>
    %cst_242 = arith.constant dense<0.000000e+00> : vector<16xf32>
    %179 = vector.multi_reduction <add>, %178, %cst_242 [0] : vector<144x16xf32> to vector<16xf32>
    %180 = vector.shape_cast %179 : vector<16xf32> to vector<1x16xf32>
    %cst_243 = arith.constant 7.812500e-03 : f32
    %181 = vector.broadcast %cst_243 : f32 to vector<1x16xf32>
    %182 = arith.mulf %180, %181 : vector<1x16xf32>
    %183 = arith.mulf %178, %175 : vector<144x16xf32>
    %cst_244 = arith.constant dense<0.000000e+00> : vector<16xf32>
    %184 = vector.multi_reduction <add>, %183, %cst_244 [0] : vector<144x16xf32> to vector<16xf32>
    %185 = vector.shape_cast %184 : vector<16xf32> to vector<1x16xf32>
    %cst_245 = arith.constant 7.812500e-03 : f32
    %186 = vector.broadcast %cst_245 : f32 to vector<1x16xf32>
    %187 = arith.mulf %185, %186 : vector<1x16xf32>
    %c0_246 = arith.constant 0 : index
    %c0_247 = arith.constant 0 : index
    %188 = vector.load %arg6[%c0_246, %c0_247] : memref<1x16xf32, #tpu.memory_space<vmem>>, vector<1x16xf32>
    %189 = arith.mulf %182, %182 : vector<1x16xf32>
    %190 = arith.subf %187, %189 : vector<1x16xf32>
    %cst_248 = arith.constant 9.99999974E-6 : f32
    %191 = vector.broadcast %cst_248 : f32 to vector<1x16xf32>
    %192 = arith.addf %190, %191 : vector<1x16xf32>
    %193 = math.rsqrt %192 : vector<1x16xf32>
    %194 = arith.mulf %188, %193 : vector<1x16xf32>
    %c0_249 = arith.constant 0 : index
    %c0_250 = arith.constant 0 : index
    %195 = vector.load %arg7[%c0_249, %c0_250] : memref<1x16xf32, #tpu.memory_space<vmem>>, vector<1x16xf32>
    %196 = arith.mulf %182, %194 : vector<1x16xf32>
    %197 = arith.subf %195, %196 : vector<1x16xf32>
    %198 = vector.broadcast %194 : vector<1x16xf32> to vector<144x16xf32>
    %199 = arith.mulf %175, %198 : vector<144x16xf32>
    %200 = vector.broadcast %197 : vector<1x16xf32> to vector<144x16xf32>
    %201 = arith.addf %199, %200 : vector<144x16xf32>
    %cst_251 = arith.constant 0.000000e+00 : f32
    %202 = vector.broadcast %cst_251 : f32 to vector<144x16xf32>
    %203 = arith.cmpf ogt, %201, %202 : vector<144x16xf32>
    %cst_252 = arith.constant 2.000000e-01 : f32
    %204 = vector.broadcast %cst_252 : f32 to vector<144x16xf32>
    %205 = arith.mulf %204, %201 : vector<144x16xf32>
    %206 = arith.select %203, %201, %205 : vector<144x16xi1>, vector<144x16xf32>
    %c0_253 = arith.constant 0 : index
    %c0_254 = arith.constant 0 : index
    %207 = vector.load %arg19[%c0_253, %c0_254] : memref<144x16xf32, #tpu.memory_space<vmem>>, vector<144x16xf32>
    tpu.vector_store %arg19[%c0_253, %c0_254], %206 {strides = array<i32>} : memref<144x16xf32, #tpu.memory_space<vmem>>, vector<144x16xf32>,
    %c0_255 = arith.constant 0 : index
    %c0_256 = arith.constant 0 : index
    %208 = tpu.strided_load %arg19[%c0_255, %c0_256] {strides = array<i32: 2, 1>} : memref<144x16xf32, #tpu.memory_space<vmem>>, vector<4x16xf32>
    %c0_257 = arith.constant 0 : index
    %c48 = arith.constant 48 : index
    %209 = vector.load %arg14[%c0_257, %c48] : memref<56x64xf32, #tpu.memory_space<vmem>>, vector<4x16xf32>
    tpu.vector_store %arg14[%c0_257, %c48], %208 {strides = array<i32>} : memref<56x64xf32, #tpu.memory_space<vmem>>, vector<4x16xf32>,
    %c1_258 = arith.constant 1 : index
    %c0_259 = arith.constant 0 : index
    %210 = tpu.strided_load %arg19[%c1_258, %c0_259] {strides = array<i32: 2, 1>} : memref<144x16xf32, #tpu.memory_space<vmem>>, vector<4x16xf32>
    %c1_260 = arith.constant 1 : index
    %c32_261 = arith.constant 32 : index
    %211 = vector.load %arg14[%c1_260, %c32_261] : memref<56x64xf32, #tpu.memory_space<vmem>>, vector<4x16xf32>
    tpu.vector_store %arg14[%c1_260, %c32_261], %210 {strides = array<i32>} : memref<56x64xf32, #tpu.memory_space<vmem>>, vector<4x16xf32>,
    %c9_262 = arith.constant 9 : index
    %c0_263 = arith.constant 0 : index
    %212 = tpu.strided_load %arg19[%c9_262, %c0_263] {strides = array<i32: 2, 1>} : memref<144x16xf32, #tpu.memory_space<vmem>>, vector<4x16xf32>
    %c5 = arith.constant 5 : index
    %c16_264 = arith.constant 16 : index
    %213 = vector.load %arg14[%c5, %c16_264] : memref<56x64xf32, #tpu.memory_space<vmem>>, vector<4x16xf32>
    tpu.vector_store %arg14[%c5, %c16_264], %212 {strides = array<i32>} : memref<56x64xf32, #tpu.memory_space<vmem>>, vector<4x16xf32>,
    %c10_265 = arith.constant 10 : index
    %c0_266 = arith.constant 0 : index
    %214 = tpu.strided_load %arg19[%c10_265, %c0_266] {strides = array<i32: 2, 1>} : memref<144x16xf32, #tpu.memory_space<vmem>>, vector<4x16xf32>
    %c6 = arith.constant 6 : index
    %c0_267 = arith.constant 0 : index
    %215 = vector.load %arg14[%c6, %c0_267] : memref<56x64xf32, #tpu.memory_space<vmem>>, vector<4x16xf32>
    tpu.vector_store %arg14[%c6, %c0_267], %214 {strides = array<i32>} : memref<56x64xf32, #tpu.memory_space<vmem>>, vector<4x16xf32>,
    %c18_268 = arith.constant 18 : index
    %c0_269 = arith.constant 0 : index
    %216 = tpu.strided_load %arg19[%c18_268, %c0_269] {strides = array<i32: 2, 1>} : memref<144x16xf32, #tpu.memory_space<vmem>>, vector<4x16xf32>
    %c5_270 = arith.constant 5 : index
    %c48_271 = arith.constant 48 : index
    %217 = vector.load %arg14[%c5_270, %c48_271] : memref<56x64xf32, #tpu.memory_space<vmem>>, vector<4x16xf32>
    tpu.vector_store %arg14[%c5_270, %c48_271], %216 {strides = array<i32>} : memref<56x64xf32, #tpu.memory_space<vmem>>, vector<4x16xf32>,
    %c19_272 = arith.constant 19 : index
    %c0_273 = arith.constant 0 : index
    %218 = tpu.strided_load %arg19[%c19_272, %c0_273] {strides = array<i32: 2, 1>} : memref<144x16xf32, #tpu.memory_space<vmem>>, vector<4x16xf32>
    %c6_274 = arith.constant 6 : index
    %c32_275 = arith.constant 32 : index
    %219 = vector.load %arg14[%c6_274, %c32_275] : memref<56x64xf32, #tpu.memory_space<vmem>>, vector<4x16xf32>
    tpu.vector_store %arg14[%c6_274, %c32_275], %218 {strides = array<i32>} : memref<56x64xf32, #tpu.memory_space<vmem>>, vector<4x16xf32>,
    %c27_276 = arith.constant 27 : index
    %c0_277 = arith.constant 0 : index
    %220 = tpu.strided_load %arg19[%c27_276, %c0_277] {strides = array<i32: 2, 1>} : memref<144x16xf32, #tpu.memory_space<vmem>>, vector<4x16xf32>
    %c10_278 = arith.constant 10 : index
    %c16_279 = arith.constant 16 : index
    %221 = vector.load %arg14[%c10_278, %c16_279] : memref<56x64xf32, #tpu.memory_space<vmem>>, vector<4x16xf32>
    tpu.vector_store %arg14[%c10_278, %c16_279], %220 {strides = array<i32>} : memref<56x64xf32, #tpu.memory_space<vmem>>, vector<4x16xf32>,
    %c28_280 = arith.constant 28 : index
    %c0_281 = arith.constant 0 : index
    %222 = tpu.strided_load %arg19[%c28_280, %c0_281] {strides = array<i32: 2, 1>} : memref<144x16xf32, #tpu.memory_space<vmem>>, vector<4x16xf32>
    %c11 = arith.constant 11 : index
    %c0_282 = arith.constant 0 : index
    %223 = vector.load %arg14[%c11, %c0_282] : memref<56x64xf32, #tpu.memory_space<vmem>>, vector<4x16xf32>
    tpu.vector_store %arg14[%c11, %c0_282], %222 {strides = array<i32>} : memref<56x64xf32, #tpu.memory_space<vmem>>, vector<4x16xf32>,
    %c36_283 = arith.constant 36 : index
    %c0_284 = arith.constant 0 : index
    %224 = tpu.strided_load %arg19[%c36_283, %c0_284] {strides = array<i32: 2, 1>} : memref<144x16xf32, #tpu.memory_space<vmem>>, vector<4x16xf32>
    %c10_285 = arith.constant 10 : index
    %c48_286 = arith.constant 48 : index
    %225 = vector.load %arg14[%c10_285, %c48_286] : memref<56x64xf32, #tpu.memory_space<vmem>>, vector<4x16xf32>
    tpu.vector_store %arg14[%c10_285, %c48_286], %224 {strides = array<i32>} : memref<56x64xf32, #tpu.memory_space<vmem>>, vector<4x16xf32>,
    %c37_287 = arith.constant 37 : index
    %c0_288 = arith.constant 0 : index
    %226 = tpu.strided_load %arg19[%c37_287, %c0_288] {strides = array<i32: 2, 1>} : memref<144x16xf32, #tpu.memory_space<vmem>>, vector<4x16xf32>
    %c11_289 = arith.constant 11 : index
    %c32_290 = arith.constant 32 : index
    %227 = vector.load %arg14[%c11_289, %c32_290] : memref<56x64xf32, #tpu.memory_space<vmem>>, vector<4x16xf32>
    tpu.vector_store %arg14[%c11_289, %c32_290], %226 {strides = array<i32>} : memref<56x64xf32, #tpu.memory_space<vmem>>, vector<4x16xf32>,
    %c45_291 = arith.constant 45 : index
    %c0_292 = arith.constant 0 : index
    %228 = tpu.strided_load %arg19[%c45_291, %c0_292] {strides = array<i32: 2, 1>} : memref<144x16xf32, #tpu.memory_space<vmem>>, vector<4x16xf32>
    %c15 = arith.constant 15 : index
    %c16_293 = arith.constant 16 : index
    %229 = vector.load %arg14[%c15, %c16_293] : memref<56x64xf32, #tpu.memory_space<vmem>>, vector<4x16xf32>
    tpu.vector_store %arg14[%c15, %c16_293], %228 {strides = array<i32>} : memref<56x64xf32, #tpu.memory_space<vmem>>, vector<4x16xf32>,
    %c46_294 = arith.constant 46 : index
    %c0_295 = arith.constant 0 : index
    %230 = tpu.strided_load %arg19[%c46_294, %c0_295] {strides = array<i32: 2, 1>} : memref<144x16xf32, #tpu.memory_space<vmem>>, vector<4x16xf32>
    %c16_296 = arith.constant 16 : index
    %c0_297 = arith.constant 0 : index
    %231 = vector.load %arg14[%c16_296, %c0_297] : memref<56x64xf32, #tpu.memory_space<vmem>>, vector<4x16xf32>
    tpu.vector_store %arg14[%c16_296, %c0_297], %230 {strides = array<i32>} : memref<56x64xf32, #tpu.memory_space<vmem>>, vector<4x16xf32>,
    %c54_298 = arith.constant 54 : index
    %c0_299 = arith.constant 0 : index
    %232 = tpu.strided_load %arg19[%c54_298, %c0_299] {strides = array<i32: 2, 1>} : memref<144x16xf32, #tpu.memory_space<vmem>>, vector<4x16xf32>
    %c15_300 = arith.constant 15 : index
    %c48_301 = arith.constant 48 : index
    %233 = vector.load %arg14[%c15_300, %c48_301] : memref<56x64xf32, #tpu.memory_space<vmem>>, vector<4x16xf32>
    tpu.vector_store %arg14[%c15_300, %c48_301], %232 {strides = array<i32>} : memref<56x64xf32, #tpu.memory_space<vmem>>, vector<4x16xf32>,
    %c55_302 = arith.constant 55 : index
    %c0_303 = arith.constant 0 : index
    %234 = tpu.strided_load %arg19[%c55_302, %c0_303] {strides = array<i32: 2, 1>} : memref<144x16xf32, #tpu.memory_space<vmem>>, vector<4x16xf32>
    %c16_304 = arith.constant 16 : index
    %c32_305 = arith.constant 32 : index
    %235 = vector.load %arg14[%c16_304, %c32_305] : memref<56x64xf32, #tpu.memory_space<vmem>>, vector<4x16xf32>
    tpu.vector_store %arg14[%c16_304, %c32_305], %234 {strides = array<i32>} : memref<56x64xf32, #tpu.memory_space<vmem>>, vector<4x16xf32>,
    %c63_306 = arith.constant 63 : index
    %c0_307 = arith.constant 0 : index
    %236 = tpu.strided_load %arg19[%c63_306, %c0_307] {strides = array<i32: 2, 1>} : memref<144x16xf32, #tpu.memory_space<vmem>>, vector<4x16xf32>
    %c20 = arith.constant 20 : index
    %c16_308 = arith.constant 16 : index
    %237 = vector.load %arg14[%c20, %c16_308] : memref<56x64xf32, #tpu.memory_space<vmem>>, vector<4x16xf32>
    tpu.vector_store %arg14[%c20, %c16_308], %236 {strides = array<i32>} : memref<56x64xf32, #tpu.memory_space<vmem>>, vector<4x16xf32>,
    %c64_309 = arith.constant 64 : index
    %c0_310 = arith.constant 0 : index
    %238 = tpu.strided_load %arg19[%c64_309, %c0_310] {strides = array<i32: 2, 1>} : memref<144x16xf32, #tpu.memory_space<vmem>>, vector<4x16xf32>
    %c21 = arith.constant 21 : index
    %c0_311 = arith.constant 0 : index
    %239 = vector.load %arg14[%c21, %c0_311] : memref<56x64xf32, #tpu.memory_space<vmem>>, vector<4x16xf32>
    tpu.vector_store %arg14[%c21, %c0_311], %238 {strides = array<i32>} : memref<56x64xf32, #tpu.memory_space<vmem>>, vector<4x16xf32>,
    %c72_312 = arith.constant 72 : index
    %c0_313 = arith.constant 0 : index
    %240 = tpu.strided_load %arg19[%c72_312, %c0_313] {strides = array<i32: 2, 1>} : memref<144x16xf32, #tpu.memory_space<vmem>>, vector<4x16xf32>
    %c25 = arith.constant 25 : index
    %c48_314 = arith.constant 48 : index
    %241 = vector.load %arg14[%c25, %c48_314] : memref<56x64xf32, #tpu.memory_space<vmem>>, vector<4x16xf32>
    tpu.vector_store %arg14[%c25, %c48_314], %240 {strides = array<i32>} : memref<56x64xf32, #tpu.memory_space<vmem>>, vector<4x16xf32>,
    %c73_315 = arith.constant 73 : index
    %c0_316 = arith.constant 0 : index
    %242 = tpu.strided_load %arg19[%c73_315, %c0_316] {strides = array<i32: 2, 1>} : memref<144x16xf32, #tpu.memory_space<vmem>>, vector<4x16xf32>
    %c26 = arith.constant 26 : index
    %c32_317 = arith.constant 32 : index
    %243 = vector.load %arg14[%c26, %c32_317] : memref<56x64xf32, #tpu.memory_space<vmem>>, vector<4x16xf32>
    tpu.vector_store %arg14[%c26, %c32_317], %242 {strides = array<i32>} : memref<56x64xf32, #tpu.memory_space<vmem>>, vector<4x16xf32>,
    %c81_318 = arith.constant 81 : index
    %c0_319 = arith.constant 0 : index
    %244 = tpu.strided_load %arg19[%c81_318, %c0_319] {strides = array<i32: 2, 1>} : memref<144x16xf32, #tpu.memory_space<vmem>>, vector<4x16xf32>
    %c30 = arith.constant 30 : index
    %c16_320 = arith.constant 16 : index
    %245 = vector.load %arg14[%c30, %c16_320] : memref<56x64xf32, #tpu.memory_space<vmem>>, vector<4x16xf32>
    tpu.vector_store %arg14[%c30, %c16_320], %244 {strides = array<i32>} : memref<56x64xf32, #tpu.memory_space<vmem>>, vector<4x16xf32>,
    %c82_321 = arith.constant 82 : index
    %c0_322 = arith.constant 0 : index
    %246 = tpu.strided_load %arg19[%c82_321, %c0_322] {strides = array<i32: 2, 1>} : memref<144x16xf32, #tpu.memory_space<vmem>>, vector<4x16xf32>
    %c31 = arith.constant 31 : index
    %c0_323 = arith.constant 0 : index
    %247 = vector.load %arg14[%c31, %c0_323] : memref<56x64xf32, #tpu.memory_space<vmem>>, vector<4x16xf32>
    tpu.vector_store %arg14[%c31, %c0_323], %246 {strides = array<i32>} : memref<56x64xf32, #tpu.memory_space<vmem>>, vector<4x16xf32>,
    %c90_324 = arith.constant 90 : index
    %c0_325 = arith.constant 0 : index
    %248 = tpu.strided_load %arg19[%c90_324, %c0_325] {strides = array<i32: 2, 1>} : memref<144x16xf32, #tpu.memory_space<vmem>>, vector<4x16xf32>
    %c30_326 = arith.constant 30 : index
    %c48_327 = arith.constant 48 : index
    %249 = vector.load %arg14[%c30_326, %c48_327] : memref<56x64xf32, #tpu.memory_space<vmem>>, vector<4x16xf32>
    tpu.vector_store %arg14[%c30_326, %c48_327], %248 {strides = array<i32>} : memref<56x64xf32, #tpu.memory_space<vmem>>, vector<4x16xf32>,
    %c91_328 = arith.constant 91 : index
    %c0_329 = arith.constant 0 : index
    %250 = tpu.strided_load %arg19[%c91_328, %c0_329] {strides = array<i32: 2, 1>} : memref<144x16xf32, #tpu.memory_space<vmem>>, vector<4x16xf32>
    %c31_330 = arith.constant 31 : index
    %c32_331 = arith.constant 32 : index
    %251 = vector.load %arg14[%c31_330, %c32_331] : memref<56x64xf32, #tpu.memory_space<vmem>>, vector<4x16xf32>
    tpu.vector_store %arg14[%c31_330, %c32_331], %250 {strides = array<i32>} : memref<56x64xf32, #tpu.memory_space<vmem>>, vector<4x16xf32>,
    %c99_332 = arith.constant 99 : index
    %c0_333 = arith.constant 0 : index
    %252 = tpu.strided_load %arg19[%c99_332, %c0_333] {strides = array<i32: 2, 1>} : memref<144x16xf32, #tpu.memory_space<vmem>>, vector<4x16xf32>
    %c35_334 = arith.constant 35 : index
    %c16_335 = arith.constant 16 : index
    %253 = vector.load %arg14[%c35_334, %c16_335] : memref<56x64xf32, #tpu.memory_space<vmem>>, vector<4x16xf32>
    tpu.vector_store %arg14[%c35_334, %c16_335], %252 {strides = array<i32>} : memref<56x64xf32, #tpu.memory_space<vmem>>, vector<4x16xf32>,
    %c100_336 = arith.constant 100 : index
    %c0_337 = arith.constant 0 : index
    %254 = tpu.strided_load %arg19[%c100_336, %c0_337] {strides = array<i32: 2, 1>} : memref<144x16xf32, #tpu.memory_space<vmem>>, vector<4x16xf32>
    %c36_338 = arith.constant 36 : index
    %c0_339 = arith.constant 0 : index
    %255 = vector.load %arg14[%c36_338, %c0_339] : memref<56x64xf32, #tpu.memory_space<vmem>>, vector<4x16xf32>
    tpu.vector_store %arg14[%c36_338, %c0_339], %254 {strides = array<i32>} : memref<56x64xf32, #tpu.memory_space<vmem>>, vector<4x16xf32>,
    %c108_340 = arith.constant 108 : index
    %c0_341 = arith.constant 0 : index
    %256 = tpu.strided_load %arg19[%c108_340, %c0_341] {strides = array<i32: 2, 1>} : memref<144x16xf32, #tpu.memory_space<vmem>>, vector<4x16xf32>
    %c35_342 = arith.constant 35 : index
    %c48_343 = arith.constant 48 : index
    %257 = vector.load %arg14[%c35_342, %c48_343] : memref<56x64xf32, #tpu.memory_space<vmem>>, vector<4x16xf32>
    tpu.vector_store %arg14[%c35_342, %c48_343], %256 {strides = array<i32>} : memref<56x64xf32, #tpu.memory_space<vmem>>, vector<4x16xf32>,
    %c109_344 = arith.constant 109 : index
    %c0_345 = arith.constant 0 : index
    %258 = tpu.strided_load %arg19[%c109_344, %c0_345] {strides = array<i32: 2, 1>} : memref<144x16xf32, #tpu.memory_space<vmem>>, vector<4x16xf32>
    %c36_346 = arith.constant 36 : index
    %c32_347 = arith.constant 32 : index
    %259 = vector.load %arg14[%c36_346, %c32_347] : memref<56x64xf32, #tpu.memory_space<vmem>>, vector<4x16xf32>
    tpu.vector_store %arg14[%c36_346, %c32_347], %258 {strides = array<i32>} : memref<56x64xf32, #tpu.memory_space<vmem>>, vector<4x16xf32>,
    %c117_348 = arith.constant 117 : index
    %c0_349 = arith.constant 0 : index
    %260 = tpu.strided_load %arg19[%c117_348, %c0_349] {strides = array<i32: 2, 1>} : memref<144x16xf32, #tpu.memory_space<vmem>>, vector<4x16xf32>
    %c40 = arith.constant 40 : index
    %c16_350 = arith.constant 16 : index
    %261 = vector.load %arg14[%c40, %c16_350] : memref<56x64xf32, #tpu.memory_space<vmem>>, vector<4x16xf32>
    tpu.vector_store %arg14[%c40, %c16_350], %260 {strides = array<i32>} : memref<56x64xf32, #tpu.memory_space<vmem>>, vector<4x16xf32>,
    %c118_351 = arith.constant 118 : index
    %c0_352 = arith.constant 0 : index
    %262 = tpu.strided_load %arg19[%c118_351, %c0_352] {strides = array<i32: 2, 1>} : memref<144x16xf32, #tpu.memory_space<vmem>>, vector<4x16xf32>
    %c41 = arith.constant 41 : index
    %c0_353 = arith.constant 0 : index
    %263 = vector.load %arg14[%c41, %c0_353] : memref<56x64xf32, #tpu.memory_space<vmem>>, vector<4x16xf32>
    tpu.vector_store %arg14[%c41, %c0_353], %262 {strides = array<i32>} : memref<56x64xf32, #tpu.memory_space<vmem>>, vector<4x16xf32>,
    %c126_354 = arith.constant 126 : index
    %c0_355 = arith.constant 0 : index
    %264 = tpu.strided_load %arg19[%c126_354, %c0_355] {strides = array<i32: 2, 1>} : memref<144x16xf32, #tpu.memory_space<vmem>>, vector<4x16xf32>
    %c40_356 = arith.constant 40 : index
    %c48_357 = arith.constant 48 : index
    %265 = vector.load %arg14[%c40_356, %c48_357] : memref<56x64xf32, #tpu.memory_space<vmem>>, vector<4x16xf32>
    tpu.vector_store %arg14[%c40_356, %c48_357], %264 {strides = array<i32>} : memref<56x64xf32, #tpu.memory_space<vmem>>, vector<4x16xf32>,
    %c127_358 = arith.constant 127 : index
    %c0_359 = arith.constant 0 : index
    %266 = tpu.strided_load %arg19[%c127_358, %c0_359] {strides = array<i32: 2, 1>} : memref<144x16xf32, #tpu.memory_space<vmem>>, vector<4x16xf32>
    %c41_360 = arith.constant 41 : index
    %c32_361 = arith.constant 32 : index
    %267 = vector.load %arg14[%c41_360, %c32_361] : memref<56x64xf32, #tpu.memory_space<vmem>>, vector<4x16xf32>
    tpu.vector_store %arg14[%c41_360, %c32_361], %266 {strides = array<i32>} : memref<56x64xf32, #tpu.memory_space<vmem>>, vector<4x16xf32>,
    %c135_362 = arith.constant 135 : index
    %c0_363 = arith.constant 0 : index
    %268 = tpu.strided_load %arg19[%c135_362, %c0_363] {strides = array<i32: 2, 1>} : memref<144x16xf32, #tpu.memory_space<vmem>>, vector<4x16xf32>
    %c45_364 = arith.constant 45 : index
    %c16_365 = arith.constant 16 : index
    %269 = vector.load %arg14[%c45_364, %c16_365] : memref<56x64xf32, #tpu.memory_space<vmem>>, vector<4x16xf32>
    tpu.vector_store %arg14[%c45_364, %c16_365], %268 {strides = array<i32>} : memref<56x64xf32, #tpu.memory_space<vmem>>, vector<4x16xf32>,
    %c136_366 = arith.constant 136 : index
    %c0_367 = arith.constant 0 : index
    %270 = tpu.strided_load %arg19[%c136_366, %c0_367] {strides = array<i32: 2, 1>} : memref<144x16xf32, #tpu.memory_space<vmem>>, vector<4x16xf32>
    %c46_368 = arith.constant 46 : index
    %c0_369 = arith.constant 0 : index
    %271 = vector.load %arg14[%c46_368, %c0_369] : memref<56x64xf32, #tpu.memory_space<vmem>>, vector<4x16xf32>
    tpu.vector_store %arg14[%c46_368, %c0_369], %270 {strides = array<i32>} : memref<56x64xf32, #tpu.memory_space<vmem>>, vector<4x16xf32>,
    %c0_370 = arith.constant 0 : index
    %c0_371 = arith.constant 0 : index
    %272 = vector.load %arg14[%c0_370, %c0_371] : memref<56x64xf32, #tpu.memory_space<vmem>>, vector<20x64xf32>
    %c0_372 = arith.constant 0 : index
    %c0_373 = arith.constant 0 : index
    %273 = vector.load %arg17[%c0_372, %c0_373] : memref<40x256xf32, #tpu.memory_space<vmem>>, vector<20x64xf32>
    tpu.vector_store %arg17[%c0_372, %c0_373], %272 {strides = array<i32>} : memref<40x256xf32, #tpu.memory_space<vmem>>, vector<20x64xf32>,
    %c25_374 = arith.constant 25 : index
    %c0_375 = arith.constant 0 : index
    %274 = vector.load %arg14[%c25_374, %c0_375] : memref<56x64xf32, #tpu.memory_space<vmem>>, vector<20x64xf32>
    %c20_376 = arith.constant 20 : index
    %c0_377 = arith.constant 0 : index
    %275 = vector.load %arg17[%c20_376, %c0_377] : memref<40x256xf32, #tpu.memory_space<vmem>>, vector<20x64xf32>
    tpu.vector_store %arg17[%c20_376, %c0_377], %274 {strides = array<i32>} : memref<40x256xf32, #tpu.memory_space<vmem>>, vector<20x64xf32>,
    %c1_378 = arith.constant 1 : index
    %c0_379 = arith.constant 0 : index
    %276 = vector.load %arg14[%c1_378, %c0_379] : memref<56x64xf32, #tpu.memory_space<vmem>>, vector<20x64xf32>
    %c0_380 = arith.constant 0 : index
    %c64_381 = arith.constant 64 : index
    %277 = vector.load %arg17[%c0_380, %c64_381] : memref<40x256xf32, #tpu.memory_space<vmem>>, vector<20x64xf32>
    tpu.vector_store %arg17[%c0_380, %c64_381], %276 {strides = array<i32>} : memref<40x256xf32, #tpu.memory_space<vmem>>, vector<20x64xf32>,
    %c26_382 = arith.constant 26 : index
    %c0_383 = arith.constant 0 : index
    %278 = vector.load %arg14[%c26_382, %c0_383] : memref<56x64xf32, #tpu.memory_space<vmem>>, vector<20x64xf32>
    %c20_384 = arith.constant 20 : index
    %c64_385 = arith.constant 64 : index
    %279 = vector.load %arg17[%c20_384, %c64_385] : memref<40x256xf32, #tpu.memory_space<vmem>>, vector<20x64xf32>
    tpu.vector_store %arg17[%c20_384, %c64_385], %278 {strides = array<i32>} : memref<40x256xf32, #tpu.memory_space<vmem>>, vector<20x64xf32>,
    %c5_386 = arith.constant 5 : index
    %c0_387 = arith.constant 0 : index
    %280 = vector.load %arg14[%c5_386, %c0_387] : memref<56x64xf32, #tpu.memory_space<vmem>>, vector<20x64xf32>
    %c0_388 = arith.constant 0 : index
    %c128 = arith.constant 128 : index
    %281 = vector.load %arg17[%c0_388, %c128] : memref<40x256xf32, #tpu.memory_space<vmem>>, vector<20x64xf32>
    tpu.vector_store %arg17[%c0_388, %c128], %280 {strides = array<i32>} : memref<40x256xf32, #tpu.memory_space<vmem>>, vector<20x64xf32>,
    %c30_389 = arith.constant 30 : index
    %c0_390 = arith.constant 0 : index
    %282 = vector.load %arg14[%c30_389, %c0_390] : memref<56x64xf32, #tpu.memory_space<vmem>>, vector<20x64xf32>
    %c20_391 = arith.constant 20 : index
    %c128_392 = arith.constant 128 : index
    %283 = vector.load %arg17[%c20_391, %c128_392] : memref<40x256xf32, #tpu.memory_space<vmem>>, vector<20x64xf32>
    tpu.vector_store %arg17[%c20_391, %c128_392], %282 {strides = array<i32>} : memref<40x256xf32, #tpu.memory_space<vmem>>, vector<20x64xf32>,
    %c6_393 = arith.constant 6 : index
    %c0_394 = arith.constant 0 : index
    %284 = vector.load %arg14[%c6_393, %c0_394] : memref<56x64xf32, #tpu.memory_space<vmem>>, vector<20x64xf32>
    %c0_395 = arith.constant 0 : index
    %c192 = arith.constant 192 : index
    %285 = vector.load %arg17[%c0_395, %c192] : memref<40x256xf32, #tpu.memory_space<vmem>>, vector<20x64xf32>
    tpu.vector_store %arg17[%c0_395, %c192], %284 {strides = array<i32>} : memref<40x256xf32, #tpu.memory_space<vmem>>, vector<20x64xf32>,
    %c31_396 = arith.constant 31 : index
    %c0_397 = arith.constant 0 : index
    %286 = vector.load %arg14[%c31_396, %c0_397] : memref<56x64xf32, #tpu.memory_space<vmem>>, vector<20x64xf32>
    %c20_398 = arith.constant 20 : index
    %c192_399 = arith.constant 192 : index
    %287 = vector.load %arg17[%c20_398, %c192_399] : memref<40x256xf32, #tpu.memory_space<vmem>>, vector<20x64xf32>
    tpu.vector_store %arg17[%c20_398, %c192_399], %286 {strides = array<i32>} : memref<40x256xf32, #tpu.memory_space<vmem>>, vector<20x64xf32>,
    %c0_400 = arith.constant 0 : index
    %c0_401 = arith.constant 0 : index
    %288 = vector.load %arg17[%c0_400, %c0_401] : memref<40x256xf32, #tpu.memory_space<vmem>>, vector<40x256xf32>
    %c0_402 = arith.constant 0 : index
    %c0_403 = arith.constant 0 : index
    %289 = vector.load %arg3[%c0_402, %c0_403] : memref<256x32xf32, #tpu.memory_space<vmem>>, vector<256x32xf32>
    %cst_404 = arith.constant dense<0.000000e+00> : vector<40x32xf32>
    %290 = tpu.matmul %288, %289, %cst_404 {dimension_numbers = #tpu.dot_dimension_numbers<[1], [0], [0], [1], [0, 0, 1, 1], [], []>} : vector<40x256xf32>, vector<256x32xf32>, vector<40x32xf32> -> vector<40x32xf32>
    %c0_405 = arith.constant 0 : index
    %c0_406 = arith.constant 0 : index
    %291 = vector.load %arg11[%c0_405, %c0_406] : memref<40x1xf32, #tpu.memory_space<vmem>>, vector<40x1xf32>
    %292 = vector.broadcast %291 : vector<40x1xf32> to vector<40x32xf32>
    %293 = arith.mulf %290, %292 : vector<40x32xf32>
    %cst_407 = arith.constant dense<0.000000e+00> : vector<32xf32>
    %294 = vector.multi_reduction <add>, %293, %cst_407 [0] : vector<40x32xf32> to vector<32xf32>
    %295 = vector.shape_cast %294 : vector<32xf32> to vector<1x32xf32>
    %cst_408 = arith.constant 3.125000e-02 : f32
    %296 = vector.broadcast %cst_408 : f32 to vector<1x32xf32>
    %297 = arith.mulf %295, %296 : vector<1x32xf32>
    %298 = arith.mulf %293, %290 : vector<40x32xf32>
    %cst_409 = arith.constant dense<0.000000e+00> : vector<32xf32>
    %299 = vector.multi_reduction <add>, %298, %cst_409 [0] : vector<40x32xf32> to vector<32xf32>
    %300 = vector.shape_cast %299 : vector<32xf32> to vector<1x32xf32>
    %cst_410 = arith.constant 3.125000e-02 : f32
    %301 = vector.broadcast %cst_410 : f32 to vector<1x32xf32>
    %302 = arith.mulf %300, %301 : vector<1x32xf32>
    %c0_411 = arith.constant 0 : index
    %c0_412 = arith.constant 0 : index
    %303 = vector.load %arg8[%c0_411, %c0_412] : memref<1x32xf32, #tpu.memory_space<vmem>>, vector<1x32xf32>
    %304 = arith.mulf %297, %297 : vector<1x32xf32>
    %305 = arith.subf %302, %304 : vector<1x32xf32>
    %cst_413 = arith.constant 9.99999974E-6 : f32
    %306 = vector.broadcast %cst_413 : f32 to vector<1x32xf32>
    %307 = arith.addf %305, %306 : vector<1x32xf32>
    %308 = math.rsqrt %307 : vector<1x32xf32>
    %309 = arith.mulf %303, %308 : vector<1x32xf32>
    %c0_414 = arith.constant 0 : index
    %c0_415 = arith.constant 0 : index
    %310 = vector.load %arg9[%c0_414, %c0_415] : memref<1x32xf32, #tpu.memory_space<vmem>>, vector<1x32xf32>
    %311 = arith.mulf %297, %309 : vector<1x32xf32>
    %312 = arith.subf %310, %311 : vector<1x32xf32>
    %313 = vector.broadcast %309 : vector<1x32xf32> to vector<40x32xf32>
    %314 = arith.mulf %290, %313 : vector<40x32xf32>
    %315 = vector.broadcast %312 : vector<1x32xf32> to vector<40x32xf32>
    %316 = arith.addf %314, %315 : vector<40x32xf32>
    %cst_416 = arith.constant 0.000000e+00 : f32
    %317 = vector.broadcast %cst_416 : f32 to vector<40x32xf32>
    %318 = arith.cmpf ogt, %316, %317 : vector<40x32xf32>
    %cst_417 = arith.constant 2.000000e-01 : f32
    %319 = vector.broadcast %cst_417 : f32 to vector<40x32xf32>
    %320 = arith.mulf %319, %316 : vector<40x32xf32>
    %321 = arith.select %318, %316, %320 : vector<40x32xi1>, vector<40x32xf32>
    %c0_418 = arith.constant 0 : index
    %c0_419 = arith.constant 0 : index
    %322 = vector.load %arg4[%c0_418, %c0_419] : memref<40x32xf32, #tpu.memory_space<vmem>>, vector<40x32xf32>
    %323 = arith.mulf %321, %322 : vector<40x32xf32>
    %c0_420 = arith.constant 0 : index
    %c0_421 = arith.constant 0 : index
    %324 = vector.load %arg5[%c0_420, %c0_421] : memref<2x40xf32, #tpu.memory_space<vmem>>, vector<2x40xf32>
    %cst_422 = arith.constant dense<0.000000e+00> : vector<2x32xf32>
    %325 = tpu.matmul %324, %323, %cst_422 {dimension_numbers = #tpu.dot_dimension_numbers<[1], [0], [0], [1], [0, 0, 1, 1], [], []>} : vector<2x40xf32>, vector<40x32xf32>, vector<2x32xf32> -> vector<2x32xf32>
    %cst_423 = arith.constant dense<0.000000e+00> : vector<2xf32>
    %326 = vector.multi_reduction <add>, %325, %cst_423 [1] : vector<2x32xf32> to vector<2xf32>
    %327 = vector.shape_cast %326 : vector<2xf32> to vector<2x1xf32>
    %328 = arith.negf %327 : vector<2x1xf32>
    %329 = math.exp %328 : vector<2x1xf32>
    %cst_424 = arith.constant 1.000000e+00 : f32
    %330 = vector.broadcast %cst_424 : f32 to vector<2x1xf32>
    %331 = arith.addf %330, %329 : vector<2x1xf32>
    %332 = arith.divf %330, %331 : vector<2x1xf32>
    %c0_425 = arith.constant 0 : index
    %c0_426 = arith.constant 0 : index
    %333 = vector.load %arg12[%c0_425, %c0_426] : memref<2x1xf32, #tpu.memory_space<vmem>>, vector<2x1xf32>
    tpu.vector_store %arg12[%c0_425, %c0_426], %332 {strides = array<i32>} : memref<2x1xf32, #tpu.memory_space<vmem>>, vector<2x1xf32>,
    return
  }
}

</mosaic_0001>

<llo_original>
// kernel: tile.15
$region0: #{tile.15}
  %s0 = inlined_call_operand.vmem [shape: f32[2,20,32], index: 0, kind: input, shape index: {}]
  %s1 = inlined_call_operand.vmem [shape: f32[40,32], index: 1, kind: output, shape index: {}]
  %v2 = vld [vmem:[%s0] sm:$0xff]
  %vm3 = vcmask 261120
  %4 = vst.msk [vmem:[%s1] sm:$0xff] %vm3, %v2
  %s5 = scalar_lea.vmem %s0, 8
  %v6 = vld [vmem:[%s5] sm:$0xff]
  %vm7 = vcmask 261120
  %s8 = scalar_lea.vmem %s1, 8
  %9 = vst.msk [vmem:[%s8] sm:$0xff] %vm7, %v6
  %s10 = scalar_lea.vmem %s0, 16
  %v11 = vld [vmem:[%s10] sm:$0xf]
  %vm12 = vcmask 261120
  %s13 = scalar_lea.vmem %s1, 16
  %14 = vst.msk [vmem:[%s13] sm:$0xf] %vm12, %v11
  %s15 = scalar_lea.vmem %s0, 24
  %v16 = vld [vmem:[%s15] sm:$0xff]
  %vm17 = vcmask 261120
  %s18 = scalar_lea.vmem %s1, 20
  %19 = vst.msk [vmem:[%s18] sm:$0xff] %vm17, %v16
  %s20 = scalar_lea.vmem %s0, 32
  %v21 = vld [vmem:[%s20] sm:$0xff]
  %vm22 = vcmask 261120
  %s23 = scalar_lea.vmem %s1, 28
  %24 = vst.msk [vmem:[%s23] sm:$0xff] %vm22, %v21
  %s25 = scalar_lea.vmem %s0, 40
  %v26 = vld [vmem:[%s25] sm:$0xf]
  %vm27 = vcmask 261120
  %s28 = scalar_lea.vmem %s1, 36
  %29 = vst.msk [vmem:[%s28] sm:$0xf] %vm27, %v26

// kernel: _lambda_.1
$region0: #{_lambda_.1}
  #allocation0 [shape = 'u32[]', space=smem, size = 0x4, offset = 0x4, fixed_abs, tag = 'smem constant byte address 0x4 - core index']
  #allocation1 [shape = 'u32[144,128]{1,0:T(1,128)}', space=vmem, size = 0x12000, scoped, tag = 'internal scratch']
  #allocation2 [shape = 'f32[168,32]{1,0:T(8,128)}', space=vmem, size = 0x15000, scoped, tag = 'scratch operand']
  #allocation3 [shape = 'f32[56,64]{1,0:T(8,128)}', space=vmem, size = 0x7000, scoped, tag = 'scratch operand']
  #allocation4 [shape = 'f32[544,128]{1,0:T(8,128)}', space=vmem, size = 0x44000, scoped, tag = 'scratch operand']
  #allocation5 [shape = 'f32[144,128]{1,0:T(8,128)}', space=vmem, size = 0x12000, scoped, tag = 'scratch operand']
  #allocation6 [shape = 'f32[40,256]{1,0:T(8,128)}', space=vmem, size = 0xa000, scoped, tag = 'scratch operand']
  #allocation7 [shape = 'f32[544,8]{1,0:T(8,128)}', space=vmem, size = 0x44000, scoped, tag = 'scratch operand']
  #allocation8 [shape = 'f32[144,16]{1,0:T(8,128)}', space=vmem, size = 0x12000, scoped, tag = 'scratch operand']
  %s0 = inlined_call_operand.vmem [shape: f32[584,32], index: 0, kind: input, shape index: {}]
  %s1 = inlined_call_operand.vmem [shape: f32[128,8], index: 1, kind: input, shape index: {}]
  %s2 = inlined_call_operand.vmem [shape: f32[128,16], index: 2, kind: input, shape index: {}]
  %s3 = inlined_call_operand.vmem [shape: f32[256,32], index: 3, kind: input, shape index: {}]
  %s4 = inlined_call_operand.vmem [shape: f32[40,32], index: 4, kind: input, shape index: {}]
  %s5 = inlined_call_operand.vmem [shape: f32[2,40], index: 5, kind: input, shape index: {}]
  %s6 = inlined_call_operand.vmem [shape: f32[1,16], index: 6, kind: input, shape index: {}]
  %s7 = inlined_call_operand.vmem [shape: f32[1,16], index: 7, kind: input, shape index: {}]
  %s8 = inlined_call_operand.vmem [shape: f32[1,32], index: 8, kind: input, shape index: {}]
  %s9 = inlined_call_operand.vmem [shape: f32[1,32], index: 9, kind: input, shape index: {}]
  %s10 = inlined_call_operand.vmem [shape: f32[144,1], index: 10, kind: input, shape index: {}]
  %s11 = inlined_call_operand.vmem [shape: f32[40,1], index: 11, kind: input, shape index: {}]
  %s12 = inlined_call_operand.vmem [shape: f32[2,1], index: 12, kind: output, shape index: {}]
  %s13 = sld [smem:[#allocation0]]
  $region58: #{_lambda_.1} parent=0
    _
  %s15 = ssub.s32 1, %s13
  %s16 = scalar_select 0, %s15, %s13
  // Predicated region
  $region2: #{_lambda_.1} parent=0 // pred_check
    _
  $region3: #{_lambda_.1} parent=0 // pred_check_branch
    %18 = sbr.rel (0) target = $region5
  $region4: #{_lambda_.1} parent=0 // pred_region
    _
  $region5: #{_lambda_.1} parent=0 // pred_fallthru
    _
  // Predicated region
  $region6: #{_lambda_.1} parent=0 // pred_check
    _
  $region7: #{_lambda_.1} parent=0 // pred_check_branch
    %20 = sbr.rel (0) target = $region9
  $region8: #{_lambda_.1} parent=0 // pred_region
    _
  $region9: #{_lambda_.1} parent=0 // pred_fallthru
    _
  // Predicated region
  $region10: #{_lambda_.1} parent=0 // pred_check
    _
  $region11: #{_lambda_.1} parent=0 // pred_check_branch
    %22 = sbr.rel (0) target = $region13
  $region12: #{_lambda_.1} parent=0 // pred_region
    _
  $region13: #{_lambda_.1} parent=0 // pred_fallthru
    _
  // Predicated region
  $region14: #{_lambda_.1} parent=0 // pred_check
    _
  $region15: #{_lambda_.1} parent=0 // pred_check_branch
    %24 = sbr.rel (0) target = $region17
  $region16: #{_lambda_.1} parent=0 // pred_region
    _
  $region17: #{_lambda_.1} parent=0 // pred_fallthru
    _
  // Predicated region
  $region18: #{_lambda_.1} parent=0 // pred_check
    _
  $region19: #{_lambda_.1} parent=0 // pred_check_branch
    %26 = sbr.rel (0) target = $region21
  $region20: #{_lambda_.1} parent=0 // pred_region
    _
  $region21: #{_lambda_.1} parent=0 // pred_fallthru
    _
  // Predicated region
  $region22: #{_lambda_.1} parent=0 // pred_check
    _
  $region23: #{_lambda_.1} parent=0 // pred_check_branch
    %28 = sbr.rel (0) target = $region25
  $region24: #{_lambda_.1} parent=0 // pred_region
    _
  $region25: #{_lambda_.1} parent=0 // pred_fallthru
    _
  // Predicated region
  $region26: #{_lambda_.1} parent=0 // pred_check
    _
  $region27: #{_lambda_.1} parent=0 // pred_check_branch
    %30 = sbr.rel (0) target = $region29
  $region28: #{_lambda_.1} parent=0 // pred_region
    _
  $region29: #{_lambda_.1} parent=0 // pred_fallthru
    _
  // Predicated region
  $region30: #{_lambda_.1} parent=0 // pred_check
    _
  $region31: #{_lambda_.1} parent=0 // pred_check_branch
    %32 = sbr.rel (0) target = $region33
  $region32: #{_lambda_.1} parent=0 // pred_region
    _
  $region33: #{_lambda_.1} parent=0 // pred_fallthru
    _
  // Predicated region
  $region34: #{_lambda_.1} parent=0 // pred_check
    _
  $region35: #{_lambda_.1} parent=0 // pred_check_branch
    %34 = sbr.rel (0) target = $region37
  $region36: #{_lambda_.1} parent=0 // pred_region
    _
  $region37: #{_lambda_.1} parent=0 // pred_fallthru
    _
  // Predicated region
  $region38: #{_lambda_.1} parent=0 // pred_check
    _
  $region39: #{_lambda_.1} parent=0 // pred_check_branch
    %36 = sbr.rel (0) target = $region41
  $region40: #{_lambda_.1} parent=0 // pred_region
    _
  $region41: #{_lambda_.1} parent=0 // pred_fallthru
    _
  // Predicated region
  $region42: #{_lambda_.1} parent=0 // pred_check
    _
  $region43: #{_lambda_.1} parent=0 // pred_check_branch
    %38 = sbr.rel (0) target = $region45
  $region44: #{_lambda_.1} parent=0 // pred_region
    _
  $region45: #{_lambda_.1} parent=0 // pred_fallthru
    _
  // Predicated region
  $region46: #{_lambda_.1} parent=0 // pred_check
    _
  $region47: #{_lambda_.1} parent=0 // pred_check_branch
    %40 = sbr.rel (0) target = $region49
  $region48: #{_lambda_.1} parent=0 // pred_region
    _
  $region49: #{_lambda_.1} parent=0 // pred_fallthru
    _
  %vm41 = vcmask 261120
  %42 = vst.msk [vmem:[#allocation2] sm:$0xff] %vm41, 0.0
  %43 = vst.msk [vmem:[#allocation2 + $0x8] sm:$0xff] %vm41, 0.0
  %44 = vst.msk [vmem:[#allocation2 + $0x10] sm:$0xff] %vm41, 0.0
  %45 = vst.msk [vmem:[#allocation2 + $0x18] sm:$0xff] %vm41, 0.0
  %46 = vst.msk [vmem:[#allocation2 + $0x20] sm:$0xff] %vm41, 0.0
  %47 = vst.msk [vmem:[#allocation2 + $0x28] sm:$0xff] %vm41, 0.0
  %48 = vst.msk [vmem:[#allocation2 + $0x30] sm:$0xff] %vm41, 0.0
  %49 = vst.msk [vmem:[#allocation2 + $0x38] sm:$0xff] %vm41, 0.0
  %50 = vst.msk [vmem:[#allocation2 + $0x40] sm:$0xff] %vm41, 0.0
  %51 = vst.msk [vmem:[#allocation2 + $0x48] sm:$0xff] %vm41, 0.0
  %52 = vst.msk [vmem:[#allocation2 + $0x50] sm:$0xff] %vm41, 0.0
  %53 = vst.msk [vmem:[#allocation2 + $0x58] sm:$0xff] %vm41, 0.0
  %54 = vst.msk [vmem:[#allocation2 + $0x60] sm:$0xff] %vm41, 0.0
  %55 = vst.msk [vmem:[#allocation2 + $0x68] sm:$0xff] %vm41, 0.0
  %56 = vst.msk [vmem:[#allocation2 + $0x70] sm:$0xff] %vm41, 0.0
  %57 = vst.msk [vmem:[#allocation2 + $0x78] sm:$0xff] %vm41, 0.0
  %58 = vst.msk [vmem:[#allocation2 + $0x80] sm:$0xff] %vm41, 0.0
  %59 = vst.msk [vmem:[#allocation2 + $0x88] sm:$0xff] %vm41, 0.0
  %60 = vst.msk [vmem:[#allocation2 + $0x90] sm:$0xff] %vm41, 0.0
  %61 = vst.msk [vmem:[#allocation2 + $0x98] sm:$0xff] %vm41, 0.0
  %62 = vst.msk [vmem:[#allocation2 + $0xa0] sm:$0xff] %vm41, 0.0
  %vm63 = vcmask 523264
  %64 = vst.msk [vmem:[#allocation3] sm:$0xff] %vm63, 0.0
  %65 = vst.msk [vmem:[#allocation3 + $0x8] sm:$0xff] %vm63, 0.0
  %66 = vst.msk [vmem:[#allocation3 + $0x10] sm:$0xff] %vm63, 0.0
  %67 = vst.msk [vmem:[#allocation3 + $0x18] sm:$0xff] %vm63, 0.0
  %68 = vst.msk [vmem:[#allocation3 + $0x20] sm:$0xff] %vm63, 0.0
  %69 = vst.msk [vmem:[#allocation3 + $0x28] sm:$0xff] %vm63, 0.0
  %70 = vst.msk [vmem:[#allocation3 + $0x30] sm:$0xff] %vm63, 0.0
  %v71 = vld [vmem:[%s0] sm:$0xff]
  %v72 = vld [vmem:[%s0 + $0x8] sm:$0xff]
  %v73 = vld [vmem:[%s0 + $0x10] sm:$0xff]
  %v74 = vld [vmem:[%s0 + $0x18] sm:$0xff]
  %v75 = vld [vmem:[%s0 + $0x20] sm:$0xff]
  %v76 = vld [vmem:[%s0 + $0x28] sm:$0xff]
  %v77 = vld [vmem:[%s0 + $0x30] sm:$0xff]
  %v78 = vld [vmem:[%s0 + $0x38] sm:$0xff]
  %v79 = vld [vmem:[%s0 + $0x40] sm:$0xff]
  %v80 = vld [vmem:[%s0 + $0x48] sm:$0xff]
  %v81 = vld [vmem:[%s0 + $0x50] sm:$0xff]
  %v82 = vld [vmem:[%s0 + $0x58] sm:$0xff]
  %v83 = vld [vmem:[%s0 + $0x60] sm:$0xff]
  %v84 = vld [vmem:[%s0 + $0x68] sm:$0xff]
  %v85 = vld [vmem:[%s0 + $0x70] sm:$0xff]
  %v86 = vld [vmem:[%s0 + $0x78] sm:$0xff]
  %v87 = vld [vmem:[%s0 + $0x80] sm:$0xff]
  %v88 = vld [vmem:[%s0 + $0x88] sm:$0xff]
  %v89 = vld [vmem:[%s0 + $0x90] sm:$0xff]
  %v90 = vld [vmem:[%s0 + $0x98] sm:$0xff]
  %v91 = vld [vmem:[%s0 + $0xa0] sm:$0xff]
  %v92 = vld [vmem:[%s0 + $0xa8] sm:$0xff]
  %v93 = vld [vmem:[%s0 + $0xb0] sm:$0xff]
  %v94 = vld [vmem:[%s0 + $0xb8] sm:$0xff]
  %v95 = vld [vmem:[%s0 + $0xc0] sm:$0xff]
  %v96 = vld [vmem:[%s0 + $0xc8] sm:$0xff]
  %v97 = vld [vmem:[%s0 + $0xd0] sm:$0xff]
  %v98 = vld [vmem:[%s0 + $0xd8] sm:$0xff]
  %v99 = vld [vmem:[%s0 + $0xe0] sm:$0xff]
  %v100 = vld [vmem:[%s0 + $0xe8] sm:$0xff]
  %v101 = vld [vmem:[%s0 + $0xf0] sm:$0xff]
  %v102 = vld [vmem:[%s0 + $0xf8] sm:$0xff]
  %v103 = vld [vmem:[%s0 + $0x100] sm:$0xff]
  %v104 = vld [vmem:[%s0 + $0x108] sm:$0xff]
  %105 = vst.msk [vmem:[#allocation4] sm:$0xff] %vm41, %v71
  %106 = vst.msk [vmem:[#allocation4 + $0x8] sm:$0xff] %vm41, %v72
  %107 = vst.msk [vmem:[#allocation4 + $0x10] sm:$0xff] %vm41, %v73
  %108 = vst.msk [vmem:[#allocation4 + $0x18] sm:$0xff] %vm41, %v74
  %109 = vst.msk [vmem:[#allocation4 + $0x20] sm:$0xff] %vm41, %v75
  %110 = vst.msk [vmem:[#allocation4 + $0x28] sm:$0xff] %vm41, %v76
  %111 = vst.msk [vmem:[#allocation4 + $0x30] sm:$0xff] %vm41, %v77
  %112 = vst.msk [vmem:[#allocation4 + $0x38] sm:$0xff] %vm41, %v78
  %113 = vst.msk [vmem:[#allocation4 + $0x40] sm:$0xff] %vm41, %v79
  %114 = vst.msk [vmem:[#allocation4 + $0x48] sm:$0xff] %vm41, %v80
  %115 = vst.msk [vmem:[#allocation4 + $0x50] sm:$0xff] %vm41, %v81
  %116 = vst.msk [vmem:[#allocation4 + $0x58] sm:$0xff] %vm41, %v82
  %117 = vst.msk [vmem:[#allocation4 + $0x60] sm:$0xff] %vm41, %v83
  %118 = vst.msk [vmem:[#allocation4 + $0x68] sm:$0xff] %vm41, %v84
  %119 = vst.msk [vmem:[#allocation4 + $0x70] sm:$0xff] %vm41, %v85
  %120 = vst.msk [vmem:[#allocation4 + $0x78] sm:$0xff] %vm41, %v86
  %121 = vst.msk [vmem:[#allocation4 + $0x80] sm:$0xff] %vm41, %v87
  %122 = vst.msk [vmem:[#allocation4 + $0x88] sm:$0xff] %vm41, %v88
  %123 = vst.msk [vmem:[#allocation4 + $0x90] sm:$0xff] %vm41, %v89
  %124 = vst.msk [vmem:[#allocation4 + $0x98] sm:$0xff] %vm41, %v90
  %125 = vst.msk [vmem:[#allocation4 + $0xa0] sm:$0xff] %vm41, %v91
  %126 = vst.msk [vmem:[#allocation4 + $0xa8] sm:$0xff] %vm41, %v92
  %127 = vst.msk [vmem:[#allocation4 + $0xb0] sm:$0xff] %vm41, %v93
  %128 = vst.msk [vmem:[#allocation4 + $0xb8] sm:$0xff] %vm41, %v94
  %129 = vst.msk [vmem:[#allocation4 + $0xc0] sm:$0xff] %vm41, %v95
  %130 = vst.msk [vmem:[#allocation4 + $0xc8] sm:$0xff] %vm41, %v96
  %131 = vst.msk [vmem:[#allocation4 + $0xd0] sm:$0xff] %vm41, %v97
  %132 = vst.msk [vmem:[#allocation4 + $0xd8] sm:$0xff] %vm41, %v98
  %133 = vst.msk [vmem:[#allocation4 + $0xe0] sm:$0xff] %vm41, %v99
  %134 = vst.msk [vmem:[#allocation4 + $0xe8] sm:$0xff] %vm41, %v100
  %135 = vst.msk [vmem:[#allocation4 + $0xf0] sm:$0xff] %vm41, %v101
  %136 = vst.msk [vmem:[#allocation4 + $0xf8] sm:$0xff] %vm41, %v102
  %137 = vst.msk [vmem:[#allocation4 + $0x100] sm:$0xff] %vm41, %v103
  %138 = vst.msk [vmem:[#allocation4 + $0x108] sm:$0xff] %vm41, %v104
  %v139 = vld [vmem:[%s0 + $0x121] sm:$0xff]
  %v140 = vld [vmem:[%s0 + $0x129] sm:$0xff]
  %v141 = vld [vmem:[%s0 + $0x131] sm:$0xff]
  %v142 = vld [vmem:[%s0 + $0x139] sm:$0xff]
  %v143 = vld [vmem:[%s0 + $0x141] sm:$0xff]
  %v144 = vld [vmem:[%s0 + $0x149] sm:$0xff]
  %v145 = vld [vmem:[%s0 + $0x151] sm:$0xff]
  %v146 = vld [vmem:[%s0 + $0x159] sm:$0xff]
  %v147 = vld [vmem:[%s0 + $0x161] sm:$0xff]
  %v148 = vld [vmem:[%s0 + $0x169] sm:$0xff]
  %v149 = vld [vmem:[%s0 + $0x171] sm:$0xff]
  %v150 = vld [vmem:[%s0 + $0x179] sm:$0xff]
  %v151 = vld [vmem:[%s0 + $0x181] sm:$0xff]
  %v152 = vld [vmem:[%s0 + $0x189] sm:$0xff]
  %v153 = vld [vmem:[%s0 + $0x191] sm:$0xff]
  %v154 = vld [vmem:[%s0 + $0x199] sm:$0xff]
  %v155 = vld [vmem:[%s0 + $0x1a1] sm:$0xff]
  %v156 = vld [vmem:[%s0 + $0x1a9] sm:$0xff]
  %v157 = vld [vmem:[%s0 + $0x1b1] sm:$0xff]
  %v158 = vld [vmem:[%s0 + $0x1b9] sm:$0xff]
  %v159 = vld [vmem:[%s0 + $0x1c1] sm:$0xff]
  %v160 = vld [vmem:[%s0 + $0x1c9] sm:$0xff]
  %v161 = vld [vmem:[%s0 + $0x1d1] sm:$0xff]
  %v162 = vld [vmem:[%s0 + $0x1d9] sm:$0xff]
  %v163 = vld [vmem:[%s0 + $0x1e1] sm:$0xff]
  %v164 = vld [vmem:[%s0 + $0x1e9] sm:$0xff]
  %v165 = vld [vmem:[%s0 + $0x1f1] sm:$0xff]
  %v166 = vld [vmem:[%s0 + $0x1f9] sm:$0xff]
  %v167 = vld [vmem:[%s0 + $0x201] sm:$0xff]
  %v168 = vld [vmem:[%s0 + $0x209] sm:$0xff]
  %v169 = vld [vmem:[%s0 + $0x211] sm:$0xff]
  %v170 = vld [vmem:[%s0 + $0x219] sm:$0xff]
  %v171 = vld [vmem:[%s0 + $0x221] sm:$0xff]
  %v172 = vld [vmem:[%s0 + $0x229] sm:$0xff]
  %173 = vst.msk [vmem:[#allocation4 + $0x110] sm:$0xff] %vm41, %v139
  %174 = vst.msk [vmem:[#allocation4 + $0x118] sm:$0xff] %vm41, %v140
  %175 = vst.msk [vmem:[#allocation4 + $0x120] sm:$0xff] %vm41, %v141
  %176 = vst.msk [vmem:[#allocation4 + $0x128] sm:$0xff] %vm41, %v142
  %177 = vst.msk [vmem:[#allocation4 + $0x130] sm:$0xff] %vm41, %v143
  %178 = vst.msk [vmem:[#allocation4 + $0x138] sm:$0xff] %vm41, %v144
  %179 = vst.msk [vmem:[#allocation4 + $0x140] sm:$0xff] %vm41, %v145
  %180 = vst.msk [vmem:[#allocation4 + $0x148] sm:$0xff] %vm41, %v146
  %181 = vst.msk [vmem:[#allocation4 + $0x150] sm:$0xff] %vm41, %v147
  %182 = vst.msk [vmem:[#allocation4 + $0x158] sm:$0xff] %vm41, %v148
  %183 = vst.msk [vmem:[#allocation4 + $0x160] sm:$0xff] %vm41, %v149
  %184 = vst.msk [vmem:[#allocation4 + $0x168] sm:$0xff] %vm41, %v150
  %185 = vst.msk [vmem:[#allocation4 + $0x170] sm:$0xff] %vm41, %v151
  %186 = vst.msk [vmem:[#allocation4 + $0x178] sm:$0xff] %vm41, %v152
  %187 = vst.msk [vmem:[#allocation4 + $0x180] sm:$0xff] %vm41, %v153
  %188 = vst.msk [vmem:[#allocation4 + $0x188] sm:$0xff] %vm41, %v154
  %189 = vst.msk [vmem:[#allocation4 + $0x190] sm:$0xff] %vm41, %v155
  %190 = vst.msk [vmem:[#allocation4 + $0x198] sm:$0xff] %vm41, %v156
  %191 = vst.msk [vmem:[#allocation4 + $0x1a0] sm:$0xff] %vm41, %v157
  %192 = vst.msk [vmem:[#allocation4 + $0x1a8] sm:$0xff] %vm41, %v158
  %193 = vst.msk [vmem:[#allocation4 + $0x1b0] sm:$0xff] %vm41, %v159
  %194 = vst.msk [vmem:[#allocation4 + $0x1b8] sm:$0xff] %vm41, %v160
  %195 = vst.msk [vmem:[#allocation4 + $0x1c0] sm:$0xff] %vm41, %v161
  %196 = vst.msk [vmem:[#allocation4 + $0x1c8] sm:$0xff] %vm41, %v162
  %197 = vst.msk [vmem:[#allocation4 + $0x1d0] sm:$0xff] %vm41, %v163
  %198 = vst.msk [vmem:[#allocation4 + $0x1d8] sm:$0xff] %vm41, %v164
  %199 = vst.msk [vmem:[#allocation4 + $0x1e0] sm:$0xff] %vm41, %v165
  %200 = vst.msk [vmem:[#allocation4 + $0x1e8] sm:$0xff] %vm41, %v166
  %201 = vst.msk [vmem:[#allocation4 + $0x1f0] sm:$0xff] %vm41, %v167
  %202 = vst.msk [vmem:[#allocation4 + $0x1f8] sm:$0xff] %vm41, %v168
  %203 = vst.msk [vmem:[#allocation4 + $0x200] sm:$0xff] %vm41, %v169
  %204 = vst.msk [vmem:[#allocation4 + $0x208] sm:$0xff] %vm41, %v170
  %205 = vst.msk [vmem:[#allocation4 + $0x210] sm:$0xff] %vm41, %v171
  %206 = vst.msk [vmem:[#allocation4 + $0x218] sm:$0xff] %vm41, %v172
  %v207 = vld [vmem:[%s0 + $0x1] sm:$0xff]
  %v208 = vld [vmem:[%s0 + $0x9] sm:$0xff]
  %v209 = vld [vmem:[%s0 + $0x11] sm:$0xff]
  %v210 = vld [vmem:[%s0 + $0x19] sm:$0xff]
  %v211 = vld [vmem:[%s0 + $0x21] sm:$0xff]
  %v212 = vld [vmem:[%s0 + $0x29] sm:$0xff]
  %v213 = vld [vmem:[%s0 + $0x31] sm:$0xff]
  %v214 = vld [vmem:[%s0 + $0x39] sm:$0xff]
  %v215 = vld [vmem:[%s0 + $0x41] sm:$0xff]
  %v216 = vld [vmem:[%s0 + $0x49] sm:$0xff]
  %v217 = vld [vmem:[%s0 + $0x51] sm:$0xff]
  %v218 = vld [vmem:[%s0 + $0x59] sm:$0xff]
  %v219 = vld [vmem:[%s0 + $0x61] sm:$0xff]
  %v220 = vld [vmem:[%s0 + $0x69] sm:$0xff]
  %v221 = vld [vmem:[%s0 + $0x71] sm:$0xff]
  %v222 = vld [vmem:[%s0 + $0x79] sm:$0xff]
  %v223 = vld [vmem:[%s0 + $0x81] sm:$0xff]
  %v224 = vld [vmem:[%s0 + $0x89] sm:$0xff]
  %v225 = vld [vmem:[%s0 + $0x91] sm:$0xff]
  %v226 = vld [vmem:[%s0 + $0x99] sm:$0xff]
  %v227 = vld [vmem:[%s0 + $0xa1] sm:$0xff]
  %v228 = vld [vmem:[%s0 + $0xa9] sm:$0xff]
  %v229 = vld [vmem:[%s0 + $0xb1] sm:$0xff]
  %v230 = vld [vmem:[%s0 + $0xb9] sm:$0xff]
  %v231 = vld [vmem:[%s0 + $0xc1] sm:$0xff]
  %v232 = vld [vmem:[%s0 + $0xc9] sm:$0xff]
  %v233 = vld [vmem:[%s0 + $0xd1] sm:$0xff]
  %v234 = vld [vmem:[%s0 + $0xd9] sm:$0xff]
  %v235 = vld [vmem:[%s0 + $0xe1] sm:$0xff]
  %v236 = vld [vmem:[%s0 + $0xe9] sm:$0xff]
  %v237 = vld [vmem:[%s0 + $0xf1] sm:$0xff]
  %v238 = vld [vmem:[%s0 + $0xf9] sm:$0xff]
  %v239 = vld [vmem:[%s0 + $0x101] sm:$0xff]
  %v240 = vld [vmem:[%s0 + $0x109] sm:$0xff]
  %275 = vrot.lane.b32.xlu0 %v207, 32
  %v276 = vpop.permute.xlu0 %275
  %277 = vrot.lane.b32.xlu0 %v208, 32
  %v278 = vpop.permute.xlu0 %277
  %279 = vrot.lane.b32.xlu0 %v209, 32
  %v280 = vpop.permute.xlu0 %279
  %281 = vrot.lane.b32.xlu0 %v210, 32
  %v282 = vpop.permute.xlu0 %281
  %283 = vrot.lane.b32.xlu0 %v211, 32
  %v284 = vpop.permute.xlu0 %283
  %285 = vrot.lane.b32.xlu0 %v212, 32
  %v286 = vpop.permute.xlu0 %285
  %287 = vrot.lane.b32.xlu0 %v213, 32
  %v288 = vpop.permute.xlu0 %287
  %289 = vrot.lane.b32.xlu0 %v214, 32
  %v290 = vpop.permute.xlu0 %289
  %291 = vrot.lane.b32.xlu0 %v215, 32
  %v292 = vpop.permute.xlu0 %291
  %293 = vrot.lane.b32.xlu0 %v216, 32
  %v294 = vpop.permute.xlu0 %293
  %295 = vrot.lane.b32.xlu0 %v217, 32
  %v296 = vpop.permute.xlu0 %295
  %297 = vrot.lane.b32.xlu0 %v218, 32
  %v298 = vpop.permute.xlu0 %297
  %299 = vrot.lane.b32.xlu0 %v219, 32
  %v300 = vpop.permute.xlu0 %299
  %301 = vrot.lane.b32.xlu0 %v220, 32
  %v302 = vpop.permute.xlu0 %301
  %303 = vrot.lane.b32.xlu0 %v221, 32
  %v304 = vpop.permute.xlu0 %303
  %305 = vrot.lane.b32.xlu0 %v222, 32
  %v306 = vpop.permute.xlu0 %305
  %307 = vrot.lane.b32.xlu0 %v223, 32
  %v308 = vpop.permute.xlu0 %307
  %309 = vrot.lane.b32.xlu0 %v224, 32
  %v310 = vpop.permute.xlu0 %309
  %311 = vrot.lane.b32.xlu0 %v225, 32
  %v312 = vpop.permute.xlu0 %311
  %313 = vrot.lane.b32.xlu0 %v226, 32
  %v314 = vpop.permute.xlu0 %313
  %315 = vrot.lane.b32.xlu0 %v227, 32
  %v316 = vpop.permute.xlu0 %315
  %317 = vrot.lane.b32.xlu0 %v228, 32
  %v318 = vpop.permute.xlu0 %317
  %319 = vrot.lane.b32.xlu0 %v229, 32
  %v320 = vpop.permute.xlu0 %319
  %321 = vrot.lane.b32.xlu0 %v230, 32
  %v322 = vpop.permute.xlu0 %321
  %323 = vrot.lane.b32.xlu0 %v231, 32
  %v324 = vpop.permute.xlu0 %323
  %325 = vrot.lane.b32.xlu0 %v232, 32
  %v326 = vpop.permute.xlu0 %325
  %327 = vrot.lane.b32.xlu0 %v233, 32
  %v328 = vpop.permute.xlu0 %327
  %329 = vrot.lane.b32.xlu0 %v234, 32
  %v330 = vpop.permute.xlu0 %329
  %331 = vrot.lane.b32.xlu0 %v235, 32
  %v332 = vpop.permute.xlu0 %331
  %333 = vrot.lane.b32.xlu0 %v236, 32
  %v334 = vpop.permute.xlu0 %333
  %335 = vrot.lane.b32.xlu0 %v237, 32
  %v336 = vpop.permute.xlu0 %335
  %337 = vrot.lane.b32.xlu0 %v238, 32
  %v338 = vpop.permute.xlu0 %337
  %339 = vrot.lane.b32.xlu0 %v239, 32
  %v340 = vpop.permute.xlu0 %339
  %341 = vrot.lane.b32.xlu0 %v240, 32
  %v342 = vpop.permute.xlu0 %341
  %vm377 = vcmask 523520
  %378 = vst.msk [vmem:[#allocation4] sm:$0xff] %vm377, %v276
  %379 = vst.msk [vmem:[#allocation4 + $0x8] sm:$0xff] %vm377, %v278
  %380 = vst.msk [vmem:[#allocation4 + $0x10] sm:$0xff] %vm377, %v280
  %381 = vst.msk [vmem:[#allocation4 + $0x18] sm:$0xff] %vm377, %v282
  %382 = vst.msk [vmem:[#allocation4 + $0x20] sm:$0xff] %vm377, %v284
  %383 = vst.msk [vmem:[#allocation4 + $0x28] sm:$0xff] %vm377, %v286
  %384 = vst.msk [vmem:[#allocation4 + $0x30] sm:$0xff] %vm377, %v288
  %385 = vst.msk [vmem:[#allocation4 + $0x38] sm:$0xff] %vm377, %v290
  %386 = vst.msk [vmem:[#allocation4 + $0x40] sm:$0xff] %vm377, %v292
  %387 = vst.msk [vmem:[#allocation4 + $0x48] sm:$0xff] %vm377, %v294
  %388 = vst.msk [vmem:[#allocation4 + $0x50] sm:$0xff] %vm377, %v296
  %389 = vst.msk [vmem:[#allocation4 + $0x58] sm:$0xff] %vm377, %v298
  %390 = vst.msk [vmem:[#allocation4 + $0x60] sm:$0xff] %vm377, %v300
  %391 = vst.msk [vmem:[#allocation4 + $0x68] sm:$0xff] %vm377, %v302
  %392 = vst.msk [vmem:[#allocation4 + $0x70] sm:$0xff] %vm377, %v304
  %393 = vst.msk [vmem:[#allocation4 + $0x78] sm:$0xff] %vm377, %v306
  %394 = vst.msk [vmem:[#allocation4 + $0x80] sm:$0xff] %vm377, %v308
  %395 = vst.msk [vmem:[#allocation4 + $0x88] sm:$0xff] %vm377, %v310
  %396 = vst.msk [vmem:[#allocation4 + $0x90] sm:$0xff] %vm377, %v312
  %397 = vst.msk [vmem:[#allocation4 + $0x98] sm:$0xff] %vm377, %v314
  %398 = vst.msk [vmem:[#allocation4 + $0xa0] sm:$0xff] %vm377, %v316
  %399 = vst.msk [vmem:[#allocation4 + $0xa8] sm:$0xff] %vm377, %v318
  %400 = vst.msk [vmem:[#allocation4 + $0xb0] sm:$0xff] %vm377, %v320
  %401 = vst.msk [vmem:[#allocation4 + $0xb8] sm:$0xff] %vm377, %v322
  %402 = vst.msk [vmem:[#allocation4 + $0xc0] sm:$0xff] %vm377, %v324
  %403 = vst.msk [vmem:[#allocation4 + $0xc8] sm:$0xff] %vm377, %v326
  %404 = vst.msk [vmem:[#allocation4 + $0xd0] sm:$0xff] %vm377, %v328
  %405 = vst.msk [vmem:[#allocation4 + $0xd8] sm:$0xff] %vm377, %v330
  %406 = vst.msk [vmem:[#allocation4 + $0xe0] sm:$0xff] %vm377, %v332
  %407 = vst.msk [vmem:[#allocation4 + $0xe8] sm:$0xff] %vm377, %v334
  %408 = vst.msk [vmem:[#allocation4 + $0xf0] sm:$0xff] %vm377, %v336
  %409 = vst.msk [vmem:[#allocation4 + $0xf8] sm:$0xff] %vm377, %v338
  %410 = vst.msk [vmem:[#allocation4 + $0x100] sm:$0xff] %vm377, %v340
  %411 = vst.msk [vmem:[#allocation4 + $0x108] sm:$0xff] %vm377, %v342
  %v412 = vld [vmem:[%s0 + $0x122] sm:$0xff]
  %v413 = vld [vmem:[%s0 + $0x12a] sm:$0xff]
  %v414 = vld [vmem:[%s0 + $0x132] sm:$0xff]
  %v415 = vld [vmem:[%s0 + $0x13a] sm:$0xff]
  %v416 = vld [vmem:[%s0 + $0x142] sm:$0xff]
  %v417 = vld [vmem:[%s0 + $0x14a] sm:$0xff]
  %v418 = vld [vmem:[%s0 + $0x152] sm:$0xff]
  %v419 = vld [vmem:[%s0 + $0x15a] sm:$0xff]
  %v420 = vld [vmem:[%s0 + $0x162] sm:$0xff]
  %v421 = vld [vmem:[%s0 + $0x16a] sm:$0xff]
  %v422 = vld [vmem:[%s0 + $0x172] sm:$0xff]
  %v423 = vld [vmem:[%s0 + $0x17a] sm:$0xff]
  %v424 = vld [vmem:[%s0 + $0x182] sm:$0xff]
  %v425 = vld [vmem:[%s0 + $0x18a] sm:$0xff]
  %v426 = vld [vmem:[%s0 + $0x192] sm:$0xff]
  %v427 = vld [vmem:[%s0 + $0x19a] sm:$0xff]
  %v428 = vld [vmem:[%s0 + $0x1a2] sm:$0xff]
  %v429 = vld [vmem:[%s0 + $0x1aa] sm:$0xff]
  %v430 = vld [vmem:[%s0 + $0x1b2] sm:$0xff]
  %v431 = vld [vmem:[%s0 + $0x1ba] sm:$0xff]
  %v432 = vld [vmem:[%s0 + $0x1c2] sm:$0xff]
  %v433 = vld [vmem:[%s0 + $0x1ca] sm:$0xff]
  %v434 = vld [vmem:[%s0 + $0x1d2] sm:$0xff]
  %v435 = vld [vmem:[%s0 + $0x1da] sm:$0xff]
  %v436 = vld [vmem:[%s0 + $0x1e2] sm:$0xff]
  %v437 = vld [vmem:[%s0 + $0x1ea] sm:$0xff]
  %v438 = vld [vmem:[%s0 + $0x1f2] sm:$0xff]
  %v439 = vld [vmem:[%s0 + $0x1fa] sm:$0xff]
  %v440 = vld [vmem:[%s0 + $0x202] sm:$0xff]
  %v441 = vld [vmem:[%s0 + $0x20a] sm:$0xff]
  %v442 = vld [vmem:[%s0 + $0x212] sm:$0xff]
  %v443 = vld [vmem:[%s0 + $0x21a] sm:$0xff]
  %v444 = vld [vmem:[%s0 + $0x222] sm:$0xff]
  %v445 = vld [vmem:[%s0 + $0x22a] sm:$0xff]
  %480 = vrot.lane.b32.xlu0 %v412, 32
  %v481 = vpop.permute.xlu0 %480
  %482 = vrot.lane.b32.xlu0 %v413, 32
  %v483 = vpop.permute.xlu0 %482
  %484 = vrot.lane.b32.xlu0 %v414, 32
  %v485 = vpop.permute.xlu0 %484
  %486 = vrot.lane.b32.xlu0 %v415, 32
  %v487 = vpop.permute.xlu0 %486
  %488 = vrot.lane.b32.xlu0 %v416, 32
  %v489 = vpop.permute.xlu0 %488
  %490 = vrot.lane.b32.xlu0 %v417, 32
  %v491 = vpop.permute.xlu0 %490
  %492 = vrot.lane.b32.xlu0 %v418, 32
  %v493 = vpop.permute.xlu0 %492
  %494 = vrot.lane.b32.xlu0 %v419, 32
  %v495 = vpop.permute.xlu0 %494
  %496 = vrot.lane.b32.xlu0 %v420, 32
  %v497 = vpop.permute.xlu0 %496
  %498 = vrot.lane.b32.xlu0 %v421, 32
  %v499 = vpop.permute.xlu0 %498
  %500 = vrot.lane.b32.xlu0 %v422, 32
  %v501 = vpop.permute.xlu0 %500
  %502 = vrot.lane.b32.xlu0 %v423, 32
  %v503 = vpop.permute.xlu0 %502
  %504 = vrot.lane.b32.xlu0 %v424, 32
  %v505 = vpop.permute.xlu0 %504
  %506 = vrot.lane.b32.xlu0 %v425, 32
  %v507 = vpop.permute.xlu0 %506
  %508 = vrot.lane.b32.xlu0 %v426, 32
  %v509 = vpop.permute.xlu0 %508
  %510 = vrot.lane.b32.xlu0 %v427, 32
  %v511 = vpop.permute.xlu0 %510
  %512 = vrot.lane.b32.xlu0 %v428, 32
  %v513 = vpop.permute.xlu0 %512
  %514 = vrot.lane.b32.xlu0 %v429, 32
  %v515 = vpop.permute.xlu0 %514
  %516 = vrot.lane.b32.xlu0 %v430, 32
  %v517 = vpop.permute.xlu0 %516
  %518 = vrot.lane.b32.xlu0 %v431, 32
  %v519 = vpop.permute.xlu0 %518
  %520 = vrot.lane.b32.xlu0 %v432, 32
  %v521 = vpop.permute.xlu0 %520
  %522 = vrot.lane.b32.xlu0 %v433, 32
  %v523 = vpop.permute.xlu0 %522
  %524 = vrot.lane.b32.xlu0 %v434, 32
  %v525 = vpop.permute.xlu0 %524
  %526 = vrot.lane.b32.xlu0 %v435, 32
  %v527 = vpop.permute.xlu0 %526
  %528 = vrot.lane.b32.xlu0 %v436, 32
  %v529 = vpop.permute.xlu0 %528
  %530 = vrot.lane.b32.xlu0 %v437, 32
  %v531 = vpop.permute.xlu0 %530
  %532 = vrot.lane.b32.xlu0 %v438, 32
  %v533 = vpop.permute.xlu0 %532
  %534 = vrot.lane.b32.xlu0 %v439, 32
  %v535 = vpop.permute.xlu0 %534
  %536 = vrot.lane.b32.xlu0 %v440, 32
  %v537 = vpop.permute.xlu0 %536
  %538 = vrot.lane.b32.xlu0 %v441, 32
  %v539 = vpop.permute.xlu0 %538
  %540 = vrot.lane.b32.xlu0 %v442, 32
  %v541 = vpop.permute.xlu0 %540
  %542 = vrot.lane.b32.xlu0 %v443, 32
  %v543 = vpop.permute.xlu0 %542
  %544 = vrot.lane.b32.xlu0 %v444, 32
  %v545 = vpop.permute.xlu0 %544
  %546 = vrot.lane.b32.xlu0 %v445, 32
  %v547 = vpop.permute.xlu0 %546
  %582 = vst.msk [vmem:[#allocation4 + $0x110] sm:$0xff] %vm377, %v481
  %583 = vst.msk [vmem:[#allocation4 + $0x118] sm:$0xff] %vm377, %v483
  %584 = vst.msk [vmem:[#allocation4 + $0x120] sm:$0xff] %vm377, %v485
  %585 = vst.msk [vmem:[#allocation4 + $0x128] sm:$0xff] %vm377, %v487
  %586 = vst.msk [vmem:[#allocation4 + $0x130] sm:$0xff] %vm377, %v489
  %587 = vst.msk [vmem:[#allocation4 + $0x138] sm:$0xff] %vm377, %v491
  %588 = vst.msk [vmem:[#allocation4 + $0x140] sm:$0xff] %vm377, %v493
  %589 = vst.msk [vmem:[#allocation4 + $0x148] sm:$0xff] %vm377, %v495
  %590 = vst.msk [vmem:[#allocation4 + $0x150] sm:$0xff] %vm377, %v497
  %591 = vst.msk [vmem:[#allocation4 + $0x158] sm:$0xff] %vm377, %v499
  %592 = vst.msk [vmem:[#allocation4 + $0x160] sm:$0xff] %vm377, %v501
  %593 = vst.msk [vmem:[#allocation4 + $0x168] sm:$0xff] %vm377, %v503
  %594 = vst.msk [vmem:[#allocation4 + $0x170] sm:$0xff] %vm377, %v505
  %595 = vst.msk [vmem:[#allocation4 + $0x178] sm:$0xff] %vm377, %v507
  %596 = vst.msk [vmem:[#allocation4 + $0x180] sm:$0xff] %vm377, %v509
  %597 = vst.msk [vmem:[#allocation4 + $0x188] sm:$0xff] %vm377, %v511
  %598 = vst.msk [vmem:[#allocation4 + $0x190] sm:$0xff] %vm377, %v513
  %599 = vst.msk [vmem:[#allocation4 + $0x198] sm:$0xff] %vm377, %v515
  %600 = vst.msk [vmem:[#allocation4 + $0x1a0] sm:$0xff] %vm377, %v517
  %601 = vst.msk [vmem:[#allocation4 + $0x1a8] sm:$0xff] %vm377, %v519
  %602 = vst.msk [vmem:[#allocation4 + $0x1b0] sm:$0xff] %vm377, %v521
  %603 = vst.msk [vmem:[#allocation4 + $0x1b8] sm:$0xff] %vm377, %v523
  %604 = vst.msk [vmem:[#allocation4 + $0x1c0] sm:$0xff] %vm377, %v525
  %605 = vst.msk [vmem:[#allocation4 + $0x1c8] sm:$0xff] %vm377, %v527
  %606 = vst.msk [vmem:[#allocation4 + $0x1d0] sm:$0xff] %vm377, %v529
  %607 = vst.msk [vmem:[#allocation4 + $0x1d8] sm:$0xff] %vm377, %v531
  %608 = vst.msk [vmem:[#allocation4 + $0x1e0] sm:$0xff] %vm377, %v533
  %609 = vst.msk [vmem:[#allocation4 + $0x1e8] sm:$0xff] %vm377, %v535
  %610 = vst.msk [vmem:[#allocation4 + $0x1f0] sm:$0xff] %vm377, %v537
  %611 = vst.msk [vmem:[#allocation4 + $0x1f8] sm:$0xff] %vm377, %v539
  %612 = vst.msk [vmem:[#allocation4 + $0x200] sm:$0xff] %vm377, %v541
  %613 = vst.msk [vmem:[#allocation4 + $0x208] sm:$0xff] %vm377, %v543
  %614 = vst.msk [vmem:[#allocation4 + $0x210] sm:$0xff] %vm377, %v545
  %615 = vst.msk [vmem:[#allocation4 + $0x218] sm:$0xff] %vm377, %v547
  %v616 = vld [vmem:[%s0 + $0x11] sm:$0xff]
  %v617 = vld [vmem:[%s0 + $0x19] sm:$0xff]
  %v618 = vld [vmem:[%s0 + $0x21] sm:$0xff]
  %v619 = vld [vmem:[%s0 + $0x29] sm:$0xff]
  %v620 = vld [vmem:[%s0 + $0x31] sm:$0xff]
  %v621 = vld [vmem:[%s0 + $0x39] sm:$0xff]
  %v622 = vld [vmem:[%s0 + $0x41] sm:$0xff]
  %v623 = vld [vmem:[%s0 + $0x49] sm:$0xff]
  %v624 = vld [vmem:[%s0 + $0x51] sm:$0xff]
  %v625 = vld [vmem:[%s0 + $0x59] sm:$0xff]
  %v626 = vld [vmem:[%s0 + $0x61] sm:$0xff]
  %v627 = vld [vmem:[%s0 + $0x69] sm:$0xff]
  %v628 = vld [vmem:[%s0 + $0x71] sm:$0xff]
  %v629 = vld [vmem:[%s0 + $0x79] sm:$0xff]
  %v630 = vld [vmem:[%s0 + $0x81] sm:$0xff]
  %v631 = vld [vmem:[%s0 + $0x89] sm:$0xff]
  %v632 = vld [vmem:[%s0 + $0x91] sm:$0xff]
  %v633 = vld [vmem:[%s0 + $0x99] sm:$0xff]
  %v634 = vld [vmem:[%s0 + $0xa1] sm:$0xff]
  %v635 = vld [vmem:[%s0 + $0xa9] sm:$0xff]
  %v636 = vld [vmem:[%s0 + $0xb1] sm:$0xff]
  %v637 = vld [vmem:[%s0 + $0xb9] sm:$0xff]
  %v638 = vld [vmem:[%s0 + $0xc1] sm:$0xff]
  %v639 = vld [vmem:[%s0 + $0xc9] sm:$0xff]
  %v640 = vld [vmem:[%s0 + $0xd1] sm:$0xff]
  %v641 = vld [vmem:[%s0 + $0xd9] sm:$0xff]
  %v642 = vld [vmem:[%s0 + $0xe1] sm:$0xff]
  %v643 = vld [vmem:[%s0 + $0xe9] sm:$0xff]
  %v644 = vld [vmem:[%s0 + $0xf1] sm:$0xff]
  %v645 = vld [vmem:[%s0 + $0xf9] sm:$0xff]
  %v646 = vld [vmem:[%s0 + $0x101] sm:$0xff]
  %v647 = vld [vmem:[%s0 + $0x109] sm:$0xff]
  %v648 = vld [vmem:[%s0 + $0x111] sm:$0xff]
  %v649 = vld [vmem:[%s0 + $0x119] sm:$0xff]
  %684 = vrot.lane.b32.xlu0 %v616, 64
  %v685 = vpop.permute.xlu0 %684
  %686 = vrot.lane.b32.xlu0 %v617, 64
  %v687 = vpop.permute.xlu0 %686
  %688 = vrot.lane.b32.xlu0 %v618, 64
  %v689 = vpop.permute.xlu0 %688
  %690 = vrot.lane.b32.xlu0 %v619, 64
  %v691 = vpop.permute.xlu0 %690
  %692 = vrot.lane.b32.xlu0 %v620, 64
  %v693 = vpop.permute.xlu0 %692
  %694 = vrot.lane.b32.xlu0 %v621, 64
  %v695 = vpop.permute.xlu0 %694
  %696 = vrot.lane.b32.xlu0 %v622, 64
  %v697 = vpop.permute.xlu0 %696
  %698 = vrot.lane.b32.xlu0 %v623, 64
  %v699 = vpop.permute.xlu0 %698
  %700 = vrot.lane.b32.xlu0 %v624, 64
  %v701 = vpop.permute.xlu0 %700
  %702 = vrot.lane.b32.xlu0 %v625, 64
  %v703 = vpop.permute.xlu0 %702
  %704 = vrot.lane.b32.xlu0 %v626, 64
  %v705 = vpop.permute.xlu0 %704
  %706 = vrot.lane.b32.xlu0 %v627, 64
  %v707 = vpop.permute.xlu0 %706
  %708 = vrot.lane.b32.xlu0 %v628, 64
  %v709 = vpop.permute.xlu0 %708
  %710 = vrot.lane.b32.xlu0 %v629, 64
  %v711 = vpop.permute.xlu0 %710
  %712 = vrot.lane.b32.xlu0 %v630, 64
  %v713 = vpop.permute.xlu0 %712
  %714 = vrot.lane.b32.xlu0 %v631, 64
  %v715 = vpop.permute.xlu0 %714
  %716 = vrot.lane.b32.xlu0 %v632, 64
  %v717 = vpop.permute.xlu0 %716
  %718 = vrot.lane.b32.xlu0 %v633, 64
  %v719 = vpop.permute.xlu0 %718
  %720 = vrot.lane.b32.xlu0 %v634, 64
  %v721 = vpop.permute.xlu0 %720
  %722 = vrot.lane.b32.xlu0 %v635, 64
  %v723 = vpop.permute.xlu0 %722
  %724 = vrot.lane.b32.xlu0 %v636, 64
  %v725 = vpop.permute.xlu0 %724
  %726 = vrot.lane.b32.xlu0 %v637, 64
  %v727 = vpop.permute.xlu0 %726
  %728 = vrot.lane.b32.xlu0 %v638, 64
  %v729 = vpop.permute.xlu0 %728
  %730 = vrot.lane.b32.xlu0 %v639, 64
  %v731 = vpop.permute.xlu0 %730
  %732 = vrot.lane.b32.xlu0 %v640, 64
  %v733 = vpop.permute.xlu0 %732
  %734 = vrot.lane.b32.xlu0 %v641, 64
  %v735 = vpop.permute.xlu0 %734
  %736 = vrot.lane.b32.xlu0 %v642, 64
  %v737 = vpop.permute.xlu0 %736
  %738 = vrot.lane.b32.xlu0 %v643, 64
  %v739 = vpop.permute.xlu0 %738
  %740 = vrot.lane.b32.xlu0 %v644, 64
  %v741 = vpop.permute.xlu0 %740
  %742 = vrot.lane.b32.xlu0 %v645, 64
  %v743 = vpop.permute.xlu0 %742
  %744 = vrot.lane.b32.xlu0 %v646, 64
  %v745 = vpop.permute.xlu0 %744
  %746 = vrot.lane.b32.xlu0 %v647, 64
  %v747 = vpop.permute.xlu0 %746
  %748 = vrot.lane.b32.xlu0 %v648, 64
  %v749 = vpop.permute.xlu0 %748
  %750 = vrot.lane.b32.xlu0 %v649, 64
  %v751 = vpop.permute.xlu0 %750
  %vm786 = vcmask 785920
  %787 = vst.msk [vmem:[#allocation4] sm:$0xff] %vm786, %v685
  %788 = vst.msk [vmem:[#allocation4 + $0x8] sm:$0xff] %vm786, %v687
  %789 = vst.msk [vmem:[#allocation4 + $0x10] sm:$0xff] %vm786, %v689
  %790 = vst.msk [vmem:[#allocation4 + $0x18] sm:$0xff] %vm786, %v691
  %791 = vst.msk [vmem:[#allocation4 + $0x20] sm:$0xff] %vm786, %v693
  %792 = vst.msk [vmem:[#allocation4 + $0x28] sm:$0xff] %vm786, %v695
  %793 = vst.msk [vmem:[#allocation4 + $0x30] sm:$0xff] %vm786, %v697
  %794 = vst.msk [vmem:[#allocation4 + $0x38] sm:$0xff] %vm786, %v699
  %795 = vst.msk [vmem:[#allocation4 + $0x40] sm:$0xff] %vm786, %v701
  %796 = vst.msk [vmem:[#allocation4 + $0x48] sm:$0xff] %vm786, %v703
  %797 = vst.msk [vmem:[#allocation4 + $0x50] sm:$0xff] %vm786, %v705
  %798 = vst.msk [vmem:[#allocation4 + $0x58] sm:$0xff] %vm786, %v707
  %799 = vst.msk [vmem:[#allocation4 + $0x60] sm:$0xff] %vm786, %v709
  %800 = vst.msk [vmem:[#allocation4 + $0x68] sm:$0xff] %vm786, %v711
  %801 = vst.msk [vmem:[#allocation4 + $0x70] sm:$0xff] %vm786, %v713
  %802 = vst.msk [vmem:[#allocation4 + $0x78] sm:$0xff] %vm786, %v715
  %803 = vst.msk [vmem:[#allocation4 + $0x80] sm:$0xff] %vm786, %v717
  %804 = vst.msk [vmem:[#allocation4 + $0x88] sm:$0xff] %vm786, %v719
  %805 = vst.msk [vmem:[#allocation4 + $0x90] sm:$0xff] %vm786, %v721
  %806 = vst.msk [vmem:[#allocation4 + $0x98] sm:$0xff] %vm786, %v723
  %807 = vst.msk [vmem:[#allocation4 + $0xa0] sm:$0xff] %vm786, %v725
  %808 = vst.msk [vmem:[#allocation4 + $0xa8] sm:$0xff] %vm786, %v727
  %809 = vst.msk [vmem:[#allocation4 + $0xb0] sm:$0xff] %vm786, %v729
  %810 = vst.msk [vmem:[#allocation4 + $0xb8] sm:$0xff] %vm786, %v731
  %811 = vst.msk [vmem:[#allocation4 + $0xc0] sm:$0xff] %vm786, %v733
  %812 = vst.msk [vmem:[#allocation4 + $0xc8] sm:$0xff] %vm786, %v735
  %813 = vst.msk [vmem:[#allocation4 + $0xd0] sm:$0xff] %vm786, %v737
  %814 = vst.msk [vmem:[#allocation4 + $0xd8] sm:$0xff] %vm786, %v739
  %815 = vst.msk [vmem:[#allocation4 + $0xe0] sm:$0xff] %vm786, %v741
  %816 = vst.msk [vmem:[#allocation4 + $0xe8] sm:$0xff] %vm786, %v743
  %817 = vst.msk [vmem:[#allocation4 + $0xf0] sm:$0xff] %vm786, %v745
  %818 = vst.msk [vmem:[#allocation4 + $0xf8] sm:$0xff] %vm786, %v747
  %819 = vst.msk [vmem:[#allocation4 + $0x100] sm:$0xff] %vm786, %v749
  %820 = vst.msk [vmem:[#allocation4 + $0x108] sm:$0xff] %vm786, %v751
  %v821 = vld [vmem:[%s0 + $0x132] sm:$0xff]
  %v822 = vld [vmem:[%s0 + $0x13a] sm:$0xff]
  %v823 = vld [vmem:[%s0 + $0x142] sm:$0xff]
  %v824 = vld [vmem:[%s0 + $0x14a] sm:$0xff]
  %v825 = vld [vmem:[%s0 + $0x152] sm:$0xff]
  %v826 = vld [vmem:[%s0 + $0x15a] sm:$0xff]
  %v827 = vld [vmem:[%s0 + $0x162] sm:$0xff]
  %v828 = vld [vmem:[%s0 + $0x16a] sm:$0xff]
  %v829 = vld [vmem:[%s0 + $0x172] sm:$0xff]
  %v830 = vld [vmem:[%s0 + $0x17a] sm:$0xff]
  %v831 = vld [vmem:[%s0 + $0x182] sm:$0xff]
  %v832 = vld [vmem:[%s0 + $0x18a] sm:$0xff]
  %v833 = vld [vmem:[%s0 + $0x192] sm:$0xff]
  %v834 = vld [vmem:[%s0 + $0x19a] sm:$0xff]
  %v835 = vld [vmem:[%s0 + $0x1a2] sm:$0xff]
  %v836 = vld [vmem:[%s0 + $0x1aa] sm:$0xff]
  %v837 = vld [vmem:[%s0 + $0x1b2] sm:$0xff]
  %v838 = vld [vmem:[%s0 + $0x1ba] sm:$0xff]
  %v839 = vld [vmem:[%s0 + $0x1c2] sm:$0xff]
  %v840 = vld [vmem:[%s0 + $0x1ca] sm:$0xff]
  %v841 = vld [vmem:[%s0 + $0x1d2] sm:$0xff]
  %v842 = vld [vmem:[%s0 + $0x1da] sm:$0xff]
  %v843 = vld [vmem:[%s0 + $0x1e2] sm:$0xff]
  %v844 = vld [vmem:[%s0 + $0x1ea] sm:$0xff]
  %v845 = vld [vmem:[%s0 + $0x1f2] sm:$0xff]
  %v846 = vld [vmem:[%s0 + $0x1fa] sm:$0xff]
  %v847 = vld [vmem:[%s0 + $0x202] sm:$0xff]
  %v848 = vld [vmem:[%s0 + $0x20a] sm:$0xff]
  %v849 = vld [vmem:[%s0 + $0x212] sm:$0xff]
  %v850 = vld [vmem:[%s0 + $0x21a] sm:$0xff]
  %v851 = vld [vmem:[%s0 + $0x222] sm:$0xff]
  %v852 = vld [vmem:[%s0 + $0x22a] sm:$0xff]
  %v853 = vld [vmem:[%s0 + $0x232] sm:$0xff]
  %v854 = vld [vmem:[%s0 + $0x23a] sm:$0xff]
  %889 = vrot.lane.b32.xlu0 %v821, 64
  %v890 = vpop.permute.xlu0 %889
  %891 = vrot.lane.b32.xlu0 %v822, 64
  %v892 = vpop.permute.xlu0 %891
  %893 = vrot.lane.b32.xlu0 %v823, 64
  %v894 = vpop.permute.xlu0 %893
  %895 = vrot.lane.b32.xlu0 %v824, 64
  %v896 = vpop.permute.xlu0 %895
  %897 = vrot.lane.b32.xlu0 %v825, 64
  %v898 = vpop.permute.xlu0 %897
  %899 = vrot.lane.b32.xlu0 %v826, 64
  %v900 = vpop.permute.xlu0 %899
  %901 = vrot.lane.b32.xlu0 %v827, 64
  %v902 = vpop.permute.xlu0 %901
  %903 = vrot.lane.b32.xlu0 %v828, 64
  %v904 = vpop.permute.xlu0 %903
  %905 = vrot.lane.b32.xlu0 %v829, 64
  %v906 = vpop.permute.xlu0 %905
  %907 = vrot.lane.b32.xlu0 %v830, 64
  %v908 = vpop.permute.xlu0 %907
  %909 = vrot.lane.b32.xlu0 %v831, 64
  %v910 = vpop.permute.xlu0 %909
  %911 = vrot.lane.b32.xlu0 %v832, 64
  %v912 = vpop.permute.xlu0 %911
  %913 = vrot.lane.b32.xlu0 %v833, 64
  %v914 = vpop.permute.xlu0 %913
  %915 = vrot.lane.b32.xlu0 %v834, 64
  %v916 = vpop.permute.xlu0 %915
  %917 = vrot.lane.b32.xlu0 %v835, 64
  %v918 = vpop.permute.xlu0 %917
  %919 = vrot.lane.b32.xlu0 %v836, 64
  %v920 = vpop.permute.xlu0 %919
  %921 = vrot.lane.b32.xlu0 %v837, 64
  %v922 = vpop.permute.xlu0 %921
  %923 = vrot.lane.b32.xlu0 %v838, 64
  %v924 = vpop.permute.xlu0 %923
  %925 = vrot.lane.b32.xlu0 %v839, 64
  %v926 = vpop.permute.xlu0 %925
  %927 = vrot.lane.b32.xlu0 %v840, 64
  %v928 = vpop.permute.xlu0 %927
  %929 = vrot.lane.b32.xlu0 %v841, 64
  %v930 = vpop.permute.xlu0 %929
  %931 = vrot.lane.b32.xlu0 %v842, 64
  %v932 = vpop.permute.xlu0 %931
  %933 = vrot.lane.b32.xlu0 %v843, 64
  %v934 = vpop.permute.xlu0 %933
  %935 = vrot.lane.b32.xlu0 %v844, 64
  %v936 = vpop.permute.xlu0 %935
  %937 = vrot.lane.b32.xlu0 %v845, 64
  %v938 = vpop.permute.xlu0 %937
  %939 = vrot.lane.b32.xlu0 %v846, 64
  %v940 = vpop.permute.xlu0 %939
  %941 = vrot.lane.b32.xlu0 %v847, 64
  %v942 = vpop.permute.xlu0 %941
  %943 = vrot.lane.b32.xlu0 %v848, 64
  %v944 = vpop.permute.xlu0 %943
  %945 = vrot.lane.b32.xlu0 %v849, 64
  %v946 = vpop.permute.xlu0 %945
  %947 = vrot.lane.b32.xlu0 %v850, 64
  %v948 = vpop.permute.xlu0 %947
  %949 = vrot.lane.b32.xlu0 %v851, 64
  %v950 = vpop.permute.xlu0 %949
  %951 = vrot.lane.b32.xlu0 %v852, 64
  %v952 = vpop.permute.xlu0 %951
  %953 = vrot.lane.b32.xlu0 %v853, 64
  %v954 = vpop.permute.xlu0 %953
  %955 = vrot.lane.b32.xlu0 %v854, 64
  %v956 = vpop.permute.xlu0 %955
  %991 = vst.msk [vmem:[#allocation4 + $0x110] sm:$0xff] %vm786, %v890
  %992 = vst.msk [vmem:[#allocation4 + $0x118] sm:$0xff] %vm786, %v892
  %993 = vst.msk [vmem:[#allocation4 + $0x120] sm:$0xff] %vm786, %v894
  %994 = vst.msk [vmem:[#allocation4 + $0x128] sm:$0xff] %vm786, %v896
  %995 = vst.msk [vmem:[#allocation4 + $0x130] sm:$0xff] %vm786, %v898
  %996 = vst.msk [vmem:[#allocation4 + $0x138] sm:$0xff] %vm786, %v900
  %997 = vst.msk [vmem:[#allocation4 + $0x140] sm:$0xff] %vm786, %v902
  %998 = vst.msk [vmem:[#allocation4 + $0x148] sm:$0xff] %vm786, %v904
  %999 = vst.msk [vmem:[#allocation4 + $0x150] sm:$0xff] %vm786, %v906
  %1000 = vst.msk [vmem:[#allocation4 + $0x158] sm:$0xff] %vm786, %v908
  %1001 = vst.msk [vmem:[#allocation4 + $0x160] sm:$0xff] %vm786, %v910
  %1002 = vst.msk [vmem:[#allocation4 + $0x168] sm:$0xff] %vm786, %v912
  %1003 = vst.msk [vmem:[#allocation4 + $0x170] sm:$0xff] %vm786, %v914
  %1004 = vst.msk [vmem:[#allocation4 + $0x178] sm:$0xff] %vm786, %v916
  %1005 = vst.msk [vmem:[#allocation4 + $0x180] sm:$0xff] %vm786, %v918
  %1006 = vst.msk [vmem:[#allocation4 + $0x188] sm:$0xff] %vm786, %v920
  %1007 = vst.msk [vmem:[#allocation4 + $0x190] sm:$0xff] %vm786, %v922
  %1008 = vst.msk [vmem:[#allocation4 + $0x198] sm:$0xff] %vm786, %v924
  %1009 = vst.msk [vmem:[#allocation4 + $0x1a0] sm:$0xff] %vm786, %v926
  %1010 = vst.msk [vmem:[#allocation4 + $0x1a8] sm:$0xff] %vm786, %v928
  %1011 = vst.msk [vmem:[#allocation4 + $0x1b0] sm:$0xff] %vm786, %v930
  %1012 = vst.msk [vmem:[#allocation4 + $0x1b8] sm:$0xff] %vm786, %v932
  %1013 = vst.msk [vmem:[#allocation4 + $0x1c0] sm:$0xff] %vm786, %v934
  %1014 = vst.msk [vmem:[#allocation4 + $0x1c8] sm:$0xff] %vm786, %v936
  %1015 = vst.msk [vmem:[#allocation4 + $0x1d0] sm:$0xff] %vm786, %v938
  %1016 = vst.msk [vmem:[#allocation4 + $0x1d8] sm:$0xff] %vm786, %v940
  %1017 = vst.msk [vmem:[#allocation4 + $0x1e0] sm:$0xff] %vm786, %v942
  %1018 = vst.msk [vmem:[#allocation4 + $0x1e8] sm:$0xff] %vm786, %v944
  %1019 = vst.msk [vmem:[#allocation4 + $0x1f0] sm:$0xff] %vm786, %v946
  %1020 = vst.msk [vmem:[#allocation4 + $0x1f8] sm:$0xff] %vm786, %v948
  %1021 = vst.msk [vmem:[#allocation4 + $0x200] sm:$0xff] %vm786, %v950
  %1022 = vst.msk [vmem:[#allocation4 + $0x208] sm:$0xff] %vm786, %v952
  %1023 = vst.msk [vmem:[#allocation4 + $0x210] sm:$0xff] %vm786, %v954
  %1024 = vst.msk [vmem:[#allocation4 + $0x218] sm:$0xff] %vm786, %v956
  %v1025 = vld [vmem:[%s0 + $0x12] sm:$0xff]
  %v1026 = vld [vmem:[%s0 + $0x1a] sm:$0xff]
  %v1027 = vld [vmem:[%s0 + $0x22] sm:$0xff]
  %v1028 = vld [vmem:[%s0 + $0x2a] sm:$0xff]
  %v1029 = vld [vmem:[%s0 + $0x32] sm:$0xff]
  %v1030 = vld [vmem:[%s0 + $0x3a] sm:$0xff]
  %v1031 = vld [vmem:[%s0 + $0x42] sm:$0xff]
  %v1032 = vld [vmem:[%s0 + $0x4a] sm:$0xff]
  %v1033 = vld [vmem:[%s0 + $0x52] sm:$0xff]
  %v1034 = vld [vmem:[%s0 + $0x5a] sm:$0xff]
  %v1035 = vld [vmem:[%s0 + $0x62] sm:$0xff]
  %v1036 = vld [vmem:[%s0 + $0x6a] sm:$0xff]
  %v1037 = vld [vmem:[%s0 + $0x72] sm:$0xff]
  %v1038 = vld [vmem:[%s0 + $0x7a] sm:$0xff]
  %v1039 = vld [vmem:[%s0 + $0x82] sm:$0xff]
  %v1040 = vld [vmem:[%s0 + $0x8a] sm:$0xff]
  %v1041 = vld [vmem:[%s0 + $0x92] sm:$0xff]
  %v1042 = vld [vmem:[%s0 + $0x9a] sm:$0xff]
  %v1043 = vld [vmem:[%s0 + $0xa2] sm:$0xff]
  %v1044 = vld [vmem:[%s0 + $0xaa] sm:$0xff]
  %v1045 = vld [vmem:[%s0 + $0xb2] sm:$0xff]
  %v1046 = vld [vmem:[%s0 + $0xba] sm:$0xff]
  %v1047 = vld [vmem:[%s0 + $0xc2] sm:$0xff]
  %v1048 = vld [vmem:[%s0 + $0xca] sm:$0xff]
  %v1049 = vld [vmem:[%s0 + $0xd2] sm:$0xff]
  %v1050 = vld [vmem:[%s0 + $0xda] sm:$0xff]
  %v1051 = vld [vmem:[%s0 + $0xe2] sm:$0xff]
  %v1052 = vld [vmem:[%s0 + $0xea] sm:$0xff]
  %v1053 = vld [vmem:[%s0 + $0xf2] sm:$0xff]
  %v1054 = vld [vmem:[%s0 + $0xfa] sm:$0xff]
  %v1055 = vld [vmem:[%s0 + $0x102] sm:$0xff]
  %v1056 = vld [vmem:[%s0 + $0x10a] sm:$0xff]
  %v1057 = vld [vmem:[%s0 + $0x112] sm:$0xff]
  %v1058 = vld [vmem:[%s0 + $0x11a] sm:$0xff]
  %1093 = vrot.lane.b32.xlu0 %v1025, 96
  %v1094 = vpop.permute.xlu0 %1093
  %1095 = vrot.lane.b32.xlu0 %v1026, 96
  %v1096 = vpop.permute.xlu0 %1095
  %1097 = vrot.lane.b32.xlu0 %v1027, 96
  %v1098 = vpop.permute.xlu0 %1097
  %1099 = vrot.lane.b32.xlu0 %v1028, 96
  %v1100 = vpop.permute.xlu0 %1099
  %1101 = vrot.lane.b32.xlu0 %v1029, 96
  %v1102 = vpop.permute.xlu0 %1101
  %1103 = vrot.lane.b32.xlu0 %v1030, 96
  %v1104 = vpop.permute.xlu0 %1103
  %1105 = vrot.lane.b32.xlu0 %v1031, 96
  %v1106 = vpop.permute.xlu0 %1105
  %1107 = vrot.lane.b32.xlu0 %v1032, 96
  %v1108 = vpop.permute.xlu0 %1107
  %1109 = vrot.lane.b32.xlu0 %v1033, 96
  %v1110 = vpop.permute.xlu0 %1109
  %1111 = vrot.lane.b32.xlu0 %v1034, 96
  %v1112 = vpop.permute.xlu0 %1111
  %1113 = vrot.lane.b32.xlu0 %v1035, 96
  %v1114 = vpop.permute.xlu0 %1113
  %1115 = vrot.lane.b32.xlu0 %v1036, 96
  %v1116 = vpop.permute.xlu0 %1115
  %1117 = vrot.lane.b32.xlu0 %v1037, 96
  %v1118 = vpop.permute.xlu0 %1117
  %1119 = vrot.lane.b32.xlu0 %v1038, 96
  %v1120 = vpop.permute.xlu0 %1119
  %1121 = vrot.lane.b32.xlu0 %v1039, 96
  %v1122 = vpop.permute.xlu0 %1121
  %1123 = vrot.lane.b32.xlu0 %v1040, 96
  %v1124 = vpop.permute.xlu0 %1123
  %1125 = vrot.lane.b32.xlu0 %v1041, 96
  %v1126 = vpop.permute.xlu0 %1125
  %1127 = vrot.lane.b32.xlu0 %v1042, 96
  %v1128 = vpop.permute.xlu0 %1127
  %1129 = vrot.lane.b32.xlu0 %v1043, 96
  %v1130 = vpop.permute.xlu0 %1129
  %1131 = vrot.lane.b32.xlu0 %v1044, 96
  %v1132 = vpop.permute.xlu0 %1131
  %1133 = vrot.lane.b32.xlu0 %v1045, 96
  %v1134 = vpop.permute.xlu0 %1133
  %1135 = vrot.lane.b32.xlu0 %v1046, 96
  %v1136 = vpop.permute.xlu0 %1135
  %1137 = vrot.lane.b32.xlu0 %v1047, 96
  %v1138 = vpop.permute.xlu0 %1137
  %1139 = vrot.lane.b32.xlu0 %v1048, 96
  %v1140 = vpop.permute.xlu0 %1139
  %1141 = vrot.lane.b32.xlu0 %v1049, 96
  %v1142 = vpop.permute.xlu0 %1141
  %1143 = vrot.lane.b32.xlu0 %v1050, 96
  %v1144 = vpop.permute.xlu0 %1143
  %1145 = vrot.lane.b32.xlu0 %v1051, 96
  %v1146 = vpop.permute.xlu0 %1145
  %1147 = vrot.lane.b32.xlu0 %v1052, 96
  %v1148 = vpop.permute.xlu0 %1147
  %1149 = vrot.lane.b32.xlu0 %v1053, 96
  %v1150 = vpop.permute.xlu0 %1149
  %1151 = vrot.lane.b32.xlu0 %v1054, 96
  %v1152 = vpop.permute.xlu0 %1151
  %1153 = vrot.lane.b32.xlu0 %v1055, 96
  %v1154 = vpop.permute.xlu0 %1153
  %1155 = vrot.lane.b32.xlu0 %v1056, 96
  %v1156 = vpop.permute.xlu0 %1155
  %1157 = vrot.lane.b32.xlu0 %v1057, 96
  %v1158 = vpop.permute.xlu0 %1157
  %1159 = vrot.lane.b32.xlu0 %v1058, 96
  %v1160 = vpop.permute.xlu0 %1159
  %vm1195 = vcmask 1048320
  %1196 = vst.msk [vmem:[#allocation4] sm:$0xff] %vm1195, %v1094
  %1197 = vst.msk [vmem:[#allocation4 + $0x8] sm:$0xff] %vm1195, %v1096
  %1198 = vst.msk [vmem:[#allocation4 + $0x10] sm:$0xff] %vm1195, %v1098
  %1199 = vst.msk [vmem:[#allocation4 + $0x18] sm:$0xff] %vm1195, %v1100
  %1200 = vst.msk [vmem:[#allocation4 + $0x20] sm:$0xff] %vm1195, %v1102
  %1201 = vst.msk [vmem:[#allocation4 + $0x28] sm:$0xff] %vm1195, %v1104
  %1202 = vst.msk [vmem:[#allocation4 + $0x30] sm:$0xff] %vm1195, %v1106
  %1203 = vst.msk [vmem:[#allocation4 + $0x38] sm:$0xff] %vm1195, %v1108
  %1204 = vst.msk [vmem:[#allocation4 + $0x40] sm:$0xff] %vm1195, %v1110
  %1205 = vst.msk [vmem:[#allocation4 + $0x48] sm:$0xff] %vm1195, %v1112
  %1206 = vst.msk [vmem:[#allocation4 + $0x50] sm:$0xff] %vm1195, %v1114
  %1207 = vst.msk [vmem:[#allocation4 + $0x58] sm:$0xff] %vm1195, %v1116
  %1208 = vst.msk [vmem:[#allocation4 + $0x60] sm:$0xff] %vm1195, %v1118
  %1209 = vst.msk [vmem:[#allocation4 + $0x68] sm:$0xff] %vm1195, %v1120
  %1210 = vst.msk [vmem:[#allocation4 + $0x70] sm:$0xff] %vm1195, %v1122
  %1211 = vst.msk [vmem:[#allocation4 + $0x78] sm:$0xff] %vm1195, %v1124
  %1212 = vst.msk [vmem:[#allocation4 + $0x80] sm:$0xff] %vm1195, %v1126
  %1213 = vst.msk [vmem:[#allocation4 + $0x88] sm:$0xff] %vm1195, %v1128
  %1214 = vst.msk [vmem:[#allocation4 + $0x90] sm:$0xff] %vm1195, %v1130
  %1215 = vst.msk [vmem:[#allocation4 + $0x98] sm:$0xff] %vm1195, %v1132
  %1216 = vst.msk [vmem:[#allocation4 + $0xa0] sm:$0xff] %vm1195, %v1134
  %1217 = vst.msk [vmem:[#allocation4 + $0xa8] sm:$0xff] %vm1195, %v1136
  %1218 = vst.msk [vmem:[#allocation4 + $0xb0] sm:$0xff] %vm1195, %v1138
  %1219 = vst.msk [vmem:[#allocation4 + $0xb8] sm:$0xff] %vm1195, %v1140
  %1220 = vst.msk [vmem:[#allocation4 + $0xc0] sm:$0xff] %vm1195, %v1142
  %1221 = vst.msk [vmem:[#allocation4 + $0xc8] sm:$0xff] %vm1195, %v1144
  %1222 = vst.msk [vmem:[#allocation4 + $0xd0] sm:$0xff] %vm1195, %v1146
  %1223 = vst.msk [vmem:[#allocation4 + $0xd8] sm:$0xff] %vm1195, %v1148
  %1224 = vst.msk [vmem:[#allocation4 + $0xe0] sm:$0xff] %vm1195, %v1150
  %1225 = vst.msk [vmem:[#allocation4 + $0xe8] sm:$0xff] %vm1195, %v1152
  %1226 = vst.msk [vmem:[#allocation4 + $0xf0] sm:$0xff] %vm1195, %v1154
  %1227 = vst.msk [vmem:[#allocation4 + $0xf8] sm:$0xff] %vm1195, %v1156
  %1228 = vst.msk [vmem:[#allocation4 + $0x100] sm:$0xff] %vm1195, %v1158
  %1229 = vst.msk [vmem:[#allocation4 + $0x108] sm:$0xff] %vm1195, %v1160
  %v1230 = vld [vmem:[%s0 + $0x133] sm:$0xff]
  %v1231 = vld [vmem:[%s0 + $0x13b] sm:$0xff]
  %v1232 = vld [vmem:[%s0 + $0x143] sm:$0xff]
  %v1233 = vld [vmem:[%s0 + $0x14b] sm:$0xff]
  %v1234 = vld [vmem:[%s0 + $0x153] sm:$0xff]
  %v1235 = vld [vmem:[%s0 + $0x15b] sm:$0xff]
  %v1236 = vld [vmem:[%s0 + $0x163] sm:$0xff]
  %v1237 = vld [vmem:[%s0 + $0x16b] sm:$0xff]
  %v1238 = vld [vmem:[%s0 + $0x173] sm:$0xff]
  %v1239 = vld [vmem:[%s0 + $0x17b] sm:$0xff]
  %v1240 = vld [vmem:[%s0 + $0x183] sm:$0xff]
  %v1241 = vld [vmem:[%s0 + $0x18b] sm:$0xff]
  %v1242 = vld [vmem:[%s0 + $0x193] sm:$0xff]
  %v1243 = vld [vmem:[%s0 + $0x19b] sm:$0xff]
  %v1244 = vld [vmem:[%s0 + $0x1a3] sm:$0xff]
  %v1245 = vld [vmem:[%s0 + $0x1ab] sm:$0xff]
  %v1246 = vld [vmem:[%s0 + $0x1b3] sm:$0xff]
  %v1247 = vld [vmem:[%s0 + $0x1bb] sm:$0xff]
  %v1248 = vld [vmem:[%s0 + $0x1c3] sm:$0xff]
  %v1249 = vld [vmem:[%s0 + $0x1cb] sm:$0xff]
  %v1250 = vld [vmem:[%s0 + $0x1d3] sm:$0xff]
  %v1251 = vld [vmem:[%s0 + $0x1db] sm:$0xff]
  %v1252 = vld [vmem:[%s0 + $0x1e3] sm:$0xff]
  %v1253 = vld [vmem:[%s0 + $0x1eb] sm:$0xff]
  %v1254 = vld [vmem:[%s0 + $0x1f3] sm:$0xff]
  %v1255 = vld [vmem:[%s0 + $0x1fb] sm:$0xff]
  %v1256 = vld [vmem:[%s0 + $0x203] sm:$0xff]
  %v1257 = vld [vmem:[%s0 + $0x20b] sm:$0xff]
  %v1258 = vld [vmem:[%s0 + $0x213] sm:$0xff]
  %v1259 = vld [vmem:[%s0 + $0x21b] sm:$0xff]
  %v1260 = vld [vmem:[%s0 + $0x223] sm:$0xff]
  %v1261 = vld [vmem:[%s0 + $0x22b] sm:$0xff]
  %v1262 = vld [vmem:[%s0 + $0x233] sm:$0xff]
  %v1263 = vld [vmem:[%s0 + $0x23b] sm:$0xff]
  %1298 = vrot.lane.b32.xlu0 %v1230, 96
  %v1299 = vpop.permute.xlu0 %1298
  %1300 = vrot.lane.b32.xlu0 %v1231, 96
  %v1301 = vpop.permute.xlu0 %1300
  %1302 = vrot.lane.b32.xlu0 %v1232, 96
  %v1303 = vpop.permute.xlu0 %1302
  %1304 = vrot.lane.b32.xlu0 %v1233, 96
  %v1305 = vpop.permute.xlu0 %1304
  %1306 = vrot.lane.b32.xlu0 %v1234, 96
  %v1307 = vpop.permute.xlu0 %1306
  %1308 = vrot.lane.b32.xlu0 %v1235, 96
  %v1309 = vpop.permute.xlu0 %1308
  %1310 = vrot.lane.b32.xlu0 %v1236, 96
  %v1311 = vpop.permute.xlu0 %1310
  %1312 = vrot.lane.b32.xlu0 %v1237, 96
  %v1313 = vpop.permute.xlu0 %1312
  %1314 = vrot.lane.b32.xlu0 %v1238, 96
  %v1315 = vpop.permute.xlu0 %1314
  %1316 = vrot.lane.b32.xlu0 %v1239, 96
  %v1317 = vpop.permute.xlu0 %1316
  %1318 = vrot.lane.b32.xlu0 %v1240, 96
  %v1319 = vpop.permute.xlu0 %1318
  %1320 = vrot.lane.b32.xlu0 %v1241, 96
  %v1321 = vpop.permute.xlu0 %1320
  %1322 = vrot.lane.b32.xlu0 %v1242, 96
  %v1323 = vpop.permute.xlu0 %1322
  %1324 = vrot.lane.b32.xlu0 %v1243, 96
  %v1325 = vpop.permute.xlu0 %1324
  %1326 = vrot.lane.b32.xlu0 %v1244, 96
  %v1327 = vpop.permute.xlu0 %1326
  %1328 = vrot.lane.b32.xlu0 %v1245, 96
  %v1329 = vpop.permute.xlu0 %1328
  %1330 = vrot.lane.b32.xlu0 %v1246, 96
  %v1331 = vpop.permute.xlu0 %1330
  %1332 = vrot.lane.b32.xlu0 %v1247, 96
  %v1333 = vpop.permute.xlu0 %1332
  %1334 = vrot.lane.b32.xlu0 %v1248, 96
  %v1335 = vpop.permute.xlu0 %1334
  %1336 = vrot.lane.b32.xlu0 %v1249, 96
  %v1337 = vpop.permute.xlu0 %1336
  %1338 = vrot.lane.b32.xlu0 %v1250, 96
  %v1339 = vpop.permute.xlu0 %1338
  %1340 = vrot.lane.b32.xlu0 %v1251, 96
  %v1341 = vpop.permute.xlu0 %1340
  %1342 = vrot.lane.b32.xlu0 %v1252, 96
  %v1343 = vpop.permute.xlu0 %1342
  %1344 = vrot.lane.b32.xlu0 %v1253, 96
  %v1345 = vpop.permute.xlu0 %1344
  %1346 = vrot.lane.b32.xlu0 %v1254, 96
  %v1347 = vpop.permute.xlu0 %1346
  %1348 = vrot.lane.b32.xlu0 %v1255, 96
  %v1349 = vpop.permute.xlu0 %1348
  %1350 = vrot.lane.b32.xlu0 %v1256, 96
  %v1351 = vpop.permute.xlu0 %1350
  %1352 = vrot.lane.b32.xlu0 %v1257, 96
  %v1353 = vpop.permute.xlu0 %1352
  %1354 = vrot.lane.b32.xlu0 %v1258, 96
  %v1355 = vpop.permute.xlu0 %1354
  %1356 = vrot.lane.b32.xlu0 %v1259, 96
  %v1357 = vpop.permute.xlu0 %1356
  %1358 = vrot.lane.b32.xlu0 %v1260, 96
  %v1359 = vpop.permute.xlu0 %1358
  %1360 = vrot.lane.b32.xlu0 %v1261, 96
  %v1361 = vpop.permute.xlu0 %1360
  %1362 = vrot.lane.b32.xlu0 %v1262, 96
  %v1363 = vpop.permute.xlu0 %1362
  %1364 = vrot.lane.b32.xlu0 %v1263, 96
  %v1365 = vpop.permute.xlu0 %1364
  %1400 = vst.msk [vmem:[#allocation4 + $0x110] sm:$0xff] %vm1195, %v1299
  %1401 = vst.msk [vmem:[#allocation4 + $0x118] sm:$0xff] %vm1195, %v1301
  %1402 = vst.msk [vmem:[#allocation4 + $0x120] sm:$0xff] %vm1195, %v1303
  %1403 = vst.msk [vmem:[#allocation4 + $0x128] sm:$0xff] %vm1195, %v1305
  %1404 = vst.msk [vmem:[#allocation4 + $0x130] sm:$0xff] %vm1195, %v1307
  %1405 = vst.msk [vmem:[#allocation4 + $0x138] sm:$0xff] %vm1195, %v1309
  %1406 = vst.msk [vmem:[#allocation4 + $0x140] sm:$0xff] %vm1195, %v1311
  %1407 = vst.msk [vmem:[#allocation4 + $0x148] sm:$0xff] %vm1195, %v1313
  %1408 = vst.msk [vmem:[#allocation4 + $0x150] sm:$0xff] %vm1195, %v1315
  %1409 = vst.msk [vmem:[#allocation4 + $0x158] sm:$0xff] %vm1195, %v1317
  %1410 = vst.msk [vmem:[#allocation4 + $0x160] sm:$0xff] %vm1195, %v1319
  %1411 = vst.msk [vmem:[#allocation4 + $0x168] sm:$0xff] %vm1195, %v1321
  %1412 = vst.msk [vmem:[#allocation4 + $0x170] sm:$0xff] %vm1195, %v1323
  %1413 = vst.msk [vmem:[#allocation4 + $0x178] sm:$0xff] %vm1195, %v1325
  %1414 = vst.msk [vmem:[#allocation4 + $0x180] sm:$0xff] %vm1195, %v1327
  %1415 = vst.msk [vmem:[#allocation4 + $0x188] sm:$0xff] %vm1195, %v1329
  %1416 = vst.msk [vmem:[#allocation4 + $0x190] sm:$0xff] %vm1195, %v1331
  %1417 = vst.msk [vmem:[#allocation4 + $0x198] sm:$0xff] %vm1195, %v1333
  %1418 = vst.msk [vmem:[#allocation4 + $0x1a0] sm:$0xff] %vm1195, %v1335
  %1419 = vst.msk [vmem:[#allocation4 + $0x1a8] sm:$0xff] %vm1195, %v1337
  %1420 = vst.msk [vmem:[#allocation4 + $0x1b0] sm:$0xff] %vm1195, %v1339
  %1421 = vst.msk [vmem:[#allocation4 + $0x1b8] sm:$0xff] %vm1195, %v1341
  %1422 = vst.msk [vmem:[#allocation4 + $0x1c0] sm:$0xff] %vm1195, %v1343
  %1423 = vst.msk [vmem:[#allocation4 + $0x1c8] sm:$0xff] %vm1195, %v1345
  %1424 = vst.msk [vmem:[#allocation4 + $0x1d0] sm:$0xff] %vm1195, %v1347
  %1425 = vst.msk [vmem:[#allocation4 + $0x1d8] sm:$0xff] %vm1195, %v1349
  %1426 = vst.msk [vmem:[#allocation4 + $0x1e0] sm:$0xff] %vm1195, %v1351
  %1427 = vst.msk [vmem:[#allocation4 + $0x1e8] sm:$0xff] %vm1195, %v1353
  %1428 = vst.msk [vmem:[#allocation4 + $0x1f0] sm:$0xff] %vm1195, %v1355
  %1429 = vst.msk [vmem:[#allocation4 + $0x1f8] sm:$0xff] %vm1195, %v1357
  %1430 = vst.msk [vmem:[#allocation4 + $0x200] sm:$0xff] %vm1195, %v1359
  %1431 = vst.msk [vmem:[#allocation4 + $0x208] sm:$0xff] %vm1195, %v1361
  %1432 = vst.msk [vmem:[#allocation4 + $0x210] sm:$0xff] %vm1195, %v1363
  %1433 = vst.msk [vmem:[#allocation4 + $0x218] sm:$0xff] %vm1195, %v1365
  %v1434 = vld [vmem:[#allocation4] sm:$0xff]
  %v1435 = vld [vmem:[#allocation4 + $0x8] sm:$0xff]
  %v1436 = vld [vmem:[#allocation4 + $0x10] sm:$0xff]
  %v1437 = vld [vmem:[#allocation4 + $0x18] sm:$0xff]
  %v1438 = vld [vmem:[#allocation4 + $0x20] sm:$0xff]
  %v1439 = vld [vmem:[#allocation4 + $0x28] sm:$0xff]
  %v1440 = vld [vmem:[#allocation4 + $0x30] sm:$0xff]
  %v1441 = vld [vmem:[#allocation4 + $0x38] sm:$0xff]
  %v1442 = vld [vmem:[#allocation4 + $0x40] sm:$0xff]
  %v1443 = vld [vmem:[#allocation4 + $0x48] sm:$0xff]
  %v1444 = vld [vmem:[#allocation4 + $0x50] sm:$0xff]
  %v1445 = vld [vmem:[#allocation4 + $0x58] sm:$0xff]
  %v1446 = vld [vmem:[#allocation4 + $0x60] sm:$0xff]
  %v1447 = vld [vmem:[#allocation4 + $0x68] sm:$0xff]
  %v1448 = vld [vmem:[#allocation4 + $0x70] sm:$0xff]
  %v1449 = vld [vmem:[#allocation4 + $0x78] sm:$0xff]
  %v1450 = vld [vmem:[#allocation4 + $0x80] sm:$0xff]
  %v1451 = vld [vmem:[#allocation4 + $0x88] sm:$0xff]
  %v1452 = vld [vmem:[#allocation4 + $0x90] sm:$0xff]
  %v1453 = vld [vmem:[#allocation4 + $0x98] sm:$0xff]
  %v1454 = vld [vmem:[#allocation4 + $0xa0] sm:$0xff]
  %v1455 = vld [vmem:[#allocation4 + $0xa8] sm:$0xff]
  %v1456 = vld [vmem:[#allocation4 + $0xb0] sm:$0xff]
  %v1457 = vld [vmem:[#allocation4 + $0xb8] sm:$0xff]
  %v1458 = vld [vmem:[#allocation4 + $0xc0] sm:$0xff]
  %v1459 = vld [vmem:[#allocation4 + $0xc8] sm:$0xff]
  %v1460 = vld [vmem:[#allocation4 + $0xd0] sm:$0xff]
  %v1461 = vld [vmem:[#allocation4 + $0xd8] sm:$0xff]
  %v1462 = vld [vmem:[#allocation4 + $0xe0] sm:$0xff]
  %v1463 = vld [vmem:[#allocation4 + $0xe8] sm:$0xff]
  %v1464 = vld [vmem:[#allocation4 + $0xf0] sm:$0xff]
  %v1465 = vld [vmem:[#allocation4 + $0xf8] sm:$0xff]
  %v1466 = vld [vmem:[#allocation4 + $0x100] sm:$0xff]
  %v1467 = vld [vmem:[#allocation4 + $0x108] sm:$0xff]
  %v1468 = vld [vmem:[#allocation4 + $0x110] sm:$0xff]
  %v1469 = vld [vmem:[#allocation4 + $0x118] sm:$0xff]
  %v1470 = vld [vmem:[#allocation4 + $0x120] sm:$0xff]
  %v1471 = vld [vmem:[#allocation4 + $0x128] sm:$0xff]
  %v1472 = vld [vmem:[#allocation4 + $0x130] sm:$0xff]
  %v1473 = vld [vmem:[#allocation4 + $0x138] sm:$0xff]
  %v1474 = vld [vmem:[#allocation4 + $0x140] sm:$0xff]
  %v1475 = vld [vmem:[#allocation4 + $0x148] sm:$0xff]
  %v1476 = vld [vmem:[#allocation4 + $0x150] sm:$0xff]
  %v1477 = vld [vmem:[#allocation4 + $0x158] sm:$0xff]
  %v1478 = vld [vmem:[#allocation4 + $0x160] sm:$0xff]
  %v1479 = vld [vmem:[#allocation4 + $0x168] sm:$0xff]
  %v1480 = vld [vmem:[#allocation4 + $0x170] sm:$0xff]
  %v1481 = vld [vmem:[#allocation4 + $0x178] sm:$0xff]
  %v1482 = vld [vmem:[#allocation4 + $0x180] sm:$0xff]
  %v1483 = vld [vmem:[#allocation4 + $0x188] sm:$0xff]
  %v1484 = vld [vmem:[#allocation4 + $0x190] sm:$0xff]
  %v1485 = vld [vmem:[#allocation4 + $0x198] sm:$0xff]
  %v1486 = vld [vmem:[#allocation4 + $0x1a0] sm:$0xff]
  %v1487 = vld [vmem:[#allocation4 + $0x1a8] sm:$0xff]
  %v1488 = vld [vmem:[#allocation4 + $0x1b0] sm:$0xff]
  %v1489 = vld [vmem:[#allocation4 + $0x1b8] sm:$0xff]
  %v1490 = vld [vmem:[#allocation4 + $0x1c0] sm:$0xff]
  %v1491 = vld [vmem:[#allocation4 + $0x1c8] sm:$0xff]
  %v1492 = vld [vmem:[#allocation4 + $0x1d0] sm:$0xff]
  %v1493 = vld [vmem:[#allocation4 + $0x1d8] sm:$0xff]
  %v1494 = vld [vmem:[#allocation4 + $0x1e0] sm:$0xff]
  %v1495 = vld [vmem:[#allocation4 + $0x1e8] sm:$0xff]
  %v1496 = vld [vmem:[#allocation4 + $0x1f0] sm:$0xff]
  %v1497 = vld [vmem:[#allocation4 + $0x1f8] sm:$0xff]
  %v1498 = vld [vmem:[#allocation4 + $0x200] sm:$0xff]
  %v1499 = vld [vmem:[#allocation4 + $0x208] sm:$0xff]
  %v1500 = vld [vmem:[#allocation4 + $0x210] sm:$0xff]
  %v1501 = vld [vmem:[#allocation4 + $0x218] sm:$0xff]
  %v1502 = vld [vmem:[%s1] sm:$0xff]
  %v1503 = vld [vmem:[%s1 + $0x8] sm:$0xff]
  %v1504 = vld [vmem:[%s1 + $0x10] sm:$0xff]
  %v1505 = vld [vmem:[%s1 + $0x18] sm:$0xff]
  %v1506 = vld [vmem:[%s1 + $0x20] sm:$0xff]
  %v1507 = vld [vmem:[%s1 + $0x28] sm:$0xff]
  %v1508 = vld [vmem:[%s1 + $0x30] sm:$0xff]
  %v1509 = vld [vmem:[%s1 + $0x38] sm:$0xff]
  %v1510 = vld [vmem:[%s1 + $0x40] sm:$0xff]
  %v1511 = vld [vmem:[%s1 + $0x48] sm:$0xff]
  %v1512 = vld [vmem:[%s1 + $0x50] sm:$0xff]
  %v1513 = vld [vmem:[%s1 + $0x58] sm:$0xff]
  %v1514 = vld [vmem:[%s1 + $0x60] sm:$0xff]
  %v1515 = vld [vmem:[%s1 + $0x68] sm:$0xff]
  %v1516 = vld [vmem:[%s1 + $0x70] sm:$0xff]
  %v1517 = vld [vmem:[%s1 + $0x78] sm:$0xff]
  %1518 = vmatprep.subr.mxu0 0.0
  %1519 = vmatpush1.msra.mxu0 %v1502
  %1520 = vmatprep.subr.mxu0 0.0
  %1521 = vmatpush1.msra.mxu0 %v1503
  %1522 = vmatprep.subr.mxu0 0.0
  %1523 = vmatpush1.msra.mxu0 %v1504
  %1524 = vmatprep.subr.mxu0 0.0
  %1525 = vmatpush1.msra.mxu0 %v1505
  %1526 = vmatprep.subr.mxu0 0.0
  %1527 = vmatpush1.msra.mxu0 %v1506
  %1528 = vmatprep.subr.mxu0 0.0
  %1529 = vmatpush1.msra.mxu0 %v1507
  %1530 = vmatprep.subr.mxu0 0.0
  %1531 = vmatpush1.msra.mxu0 %v1508
  %1532 = vmatprep.subr.mxu0 0.0
  %1533 = vmatpush1.msra.mxu0 %v1509
  %1534 = vmatprep.subr.mxu0 0.0
  %1535 = vmatpush1.msra.mxu0 %v1510
  %1536 = vmatprep.subr.mxu0 0.0
  %1537 = vmatpush1.msra.mxu0 %v1511
  %1538 = vmatprep.subr.mxu0 0.0
  %1539 = vmatpush1.msra.mxu0 %v1512
  %1540 = vmatprep.subr.mxu0 0.0
  %1541 = vmatpush1.msra.mxu0 %v1513
  %1542 = vmatprep.subr.mxu0 0.0
  %1543 = vmatpush1.msra.mxu0 %v1514
  %1544 = vmatprep.subr.mxu0 0.0
  %1545 = vmatpush1.msra.mxu0 %v1515
  %1546 = vmatprep.subr.mxu0 0.0
  %1547 = vmatpush1.msra.mxu0 %v1516
  %1548 = vmatprep.subr.mxu0 0.0
  %1549 = vmatpush1.msra.mxu0 %v1517
  %1550 = vmatprep.subr.mxu0 0.0
  %1551 = vmatpush1.msra.mxu0 0.0
  %1552 = vmatprep.subr.mxu0 0.0
  %1553 = vmatpush1.msra.mxu0 0.0
  %1554 = vmatprep.subr.mxu0 0.0
  %1555 = vmatpush1.msra.mxu0 0.0
  %1556 = vmatprep.subr.mxu0 0.0
  %1557 = vmatpush1.msra.mxu0 0.0
  %1558 = vmatprep.subr.mxu0 0.0
  %1559 = vmatpush1.msra.mxu0 0.0
  %1560 = vmatprep.subr.mxu0 0.0
  %1561 = vmatpush1.msra.mxu0 0.0
  %1562 = vmatprep.subr.mxu0 0.0
  %1563 = vmatpush1.msra.mxu0 0.0
  %1564 = vmatprep.subr.mxu0 0.0
  %1565 = vmatpush1.msra.mxu0 0.0
  %1566 = vmatprep.subr.mxu0 0.0
  %1567 = vmatpush1.msra.mxu0 0.0
  %1568 = vmatprep.subr.mxu0 0.0
  %1569 = vmatpush1.msra.mxu0 0.0
  %1570 = vmatprep.subr.mxu0 0.0
  %1571 = vmatpush1.msra.mxu0 0.0
  %1572 = vmatprep.subr.mxu0 0.0
  %1573 = vmatpush1.msra.mxu0 0.0
  %1574 = vmatprep.subr.mxu0 0.0
  %1575 = vmatpush1.msra.mxu0 0.0
  %1576 = vmatprep.subr.mxu0 0.0
  %1577 = vmatpush1.msra.mxu0 0.0
  %1578 = vmatprep.subr.mxu0 0.0
  %1579 = vmatpush1.msra.mxu0 0.0
  %1580 = vmatprep.subr.mxu0 0.0
  %1581 = vmatpush1.msra.mxu0 0.0
  %1582 = vmatprep.mubr.f32.mxu0 0.0
  %1583 = vmatmul.mubr.f32.gmra.mrb[0].mxu0 %v1434
  %v1584 = vpop.f32.mrb[0].mxu0
  %v1585 = vadd.f32 0.0, %v1584
  %v1586 = vpop.f32.mrb[0].mxu0
  %1587 = vmatprep.mubr.f32.mxu0 0.0
  %1588 = vmatmul.mubr.f32.gmra.mrb[0].mxu0 %v1435
  %v1589 = vpop.f32.mrb[0].mxu0
  %v1590 = vadd.f32 0.0, %v1589
  %v1591 = vpop.f32.mrb[0].mxu0
  %1592 = vmatprep.mubr.f32.mxu0 0.0
  %1593 = vmatmul.mubr.f32.gmra.mrb[0].mxu0 %v1436
  %v1594 = vpop.f32.mrb[0].mxu0
  %v1595 = vadd.f32 0.0, %v1594
  %v1596 = vpop.f32.mrb[0].mxu0
  %1597 = vmatprep.mubr.f32.mxu0 0.0
  %1598 = vmatmul.mubr.f32.gmra.mrb[0].mxu0 %v1437
  %v1599 = vpop.f32.mrb[0].mxu0
  %v1600 = vadd.f32 0.0, %v1599
  %v1601 = vpop.f32.mrb[0].mxu0
  %1602 = vmatprep.mubr.f32.mxu0 0.0
  %1603 = vmatmul.mubr.f32.gmra.mrb[0].mxu0 %v1438
  %v1604 = vpop.f32.mrb[0].mxu0
  %v1605 = vadd.f32 0.0, %v1604
  %v1606 = vpop.f32.mrb[0].mxu0
  %1607 = vmatprep.mubr.f32.mxu0 0.0
  %1608 = vmatmul.mubr.f32.gmra.mrb[0].mxu0 %v1439
  %v1609 = vpop.f32.mrb[0].mxu0
  %v1610 = vadd.f32 0.0, %v1609
  %v1611 = vpop.f32.mrb[0].mxu0
  %1612 = vmatprep.mubr.f32.mxu0 0.0
  %1613 = vmatmul.mubr.f32.gmra.mrb[0].mxu0 %v1440
  %v1614 = vpop.f32.mrb[0].mxu0
  %v1615 = vadd.f32 0.0, %v1614
  %v1616 = vpop.f32.mrb[0].mxu0
  %1617 = vmatprep.mubr.f32.mxu0 0.0
  %1618 = vmatmul.mubr.f32.gmra.mrb[0].mxu0 %v1441
  %v1619 = vpop.f32.mrb[0].mxu0
  %v1620 = vadd.f32 0.0, %v1619
  %v1621 = vpop.f32.mrb[0].mxu0
  %1622 = vmatprep.mubr.f32.mxu0 0.0
  %1623 = vmatmul.mubr.f32.gmra.mrb[0].mxu0 %v1442
  %v1624 = vpop.f32.mrb[0].mxu0
  %v1625 = vadd.f32 0.0, %v1624
  %v1626 = vpop.f32.mrb[0].mxu0
  %1627 = vmatprep.mubr.f32.mxu0 0.0
  %1628 = vmatmul.mubr.f32.gmra.mrb[0].mxu0 %v1443
  %v1629 = vpop.f32.mrb[0].mxu0
  %v1630 = vadd.f32 0.0, %v1629
  %v1631 = vpop.f32.mrb[0].mxu0
  %1632 = vmatprep.mubr.f32.mxu0 0.0
  %1633 = vmatmul.mubr.f32.gmra.mrb[0].mxu0 %v1444
  %v1634 = vpop.f32.mrb[0].mxu0
  %v1635 = vadd.f32 0.0, %v1634
  %v1636 = vpop.f32.mrb[0].mxu0
  %1637 = vmatprep.mubr.f32.mxu0 0.0
  %1638 = vmatmul.mubr.f32.gmra.mrb[0].mxu0 %v1445
  %v1639 = vpop.f32.mrb[0].mxu0
  %v1640 = vadd.f32 0.0, %v1639
  %v1641 = vpop.f32.mrb[0].mxu0
  %1642 = vmatprep.mubr.f32.mxu0 0.0
  %1643 = vmatmul.mubr.f32.gmra.mrb[0].mxu0 %v1446
  %v1644 = vpop.f32.mrb[0].mxu0
  %v1645 = vadd.f32 0.0, %v1644
  %v1646 = vpop.f32.mrb[0].mxu0
  %1647 = vmatprep.mubr.f32.mxu0 0.0
  %1648 = vmatmul.mubr.f32.gmra.mrb[0].mxu0 %v1447
  %v1649 = vpop.f32.mrb[0].mxu0
  %v1650 = vadd.f32 0.0, %v1649
  %v1651 = vpop.f32.mrb[0].mxu0
  %1652 = vmatprep.mubr.f32.mxu0 0.0
  %1653 = vmatmul.mubr.f32.gmra.mrb[0].mxu0 %v1448
  %v1654 = vpop.f32.mrb[0].mxu0
  %v1655 = vadd.f32 0.0, %v1654
  %v1656 = vpop.f32.mrb[0].mxu0
  %1657 = vmatprep.mubr.f32.mxu0 0.0
  %1658 = vmatmul.mubr.f32.gmra.mrb[0].mxu0 %v1449
  %v1659 = vpop.f32.mrb[0].mxu0
  %v1660 = vadd.f32 0.0, %v1659
  %v1661 = vpop.f32.mrb[0].mxu0
  %1662 = vmatprep.mubr.f32.mxu0 0.0
  %1663 = vmatmul.mubr.f32.gmra.mrb[0].mxu0 %v1450
  %v1664 = vpop.f32.mrb[0].mxu0
  %v1665 = vadd.f32 0.0, %v1664
  %v1666 = vpop.f32.mrb[0].mxu0
  %1667 = vmatprep.mubr.f32.mxu0 0.0
  %1668 = vmatmul.mubr.f32.gmra.mrb[0].mxu0 %v1451
  %v1669 = vpop.f32.mrb[0].mxu0
  %v1670 = vadd.f32 0.0, %v1669
  %v1671 = vpop.f32.mrb[0].mxu0
  %1672 = vmatprep.mubr.f32.mxu0 0.0
  %1673 = vmatmul.mubr.f32.gmra.mrb[0].mxu0 %v1452
  %v1674 = vpop.f32.mrb[0].mxu0
  %v1675 = vadd.f32 0.0, %v1674
  %v1676 = vpop.f32.mrb[0].mxu0
  %1677 = vmatprep.mubr.f32.mxu0 0.0
  %1678 = vmatmul.mubr.f32.gmra.mrb[0].mxu0 %v1453
  %v1679 = vpop.f32.mrb[0].mxu0
  %v1680 = vadd.f32 0.0, %v1679
  %v1681 = vpop.f32.mrb[0].mxu0
  %1682 = vmatprep.mubr.f32.mxu0 0.0
  %1683 = vmatmul.mubr.f32.gmra.mrb[0].mxu0 %v1454
  %v1684 = vpop.f32.mrb[0].mxu0
  %v1685 = vadd.f32 0.0, %v1684
  %v1686 = vpop.f32.mrb[0].mxu0
  %1687 = vmatprep.mubr.f32.mxu0 0.0
  %1688 = vmatmul.mubr.f32.gmra.mrb[0].mxu0 %v1455
  %v1689 = vpop.f32.mrb[0].mxu0
  %v1690 = vadd.f32 0.0, %v1689
  %v1691 = vpop.f32.mrb[0].mxu0
  %1692 = vmatprep.mubr.f32.mxu0 0.0
  %1693 = vmatmul.mubr.f32.gmra.mrb[0].mxu0 %v1456
  %v1694 = vpop.f32.mrb[0].mxu0
  %v1695 = vadd.f32 0.0, %v1694
  %v1696 = vpop.f32.mrb[0].mxu0
  %1697 = vmatprep.mubr.f32.mxu0 0.0
  %1698 = vmatmul.mubr.f32.gmra.mrb[0].mxu0 %v1457
  %v1699 = vpop.f32.mrb[0].mxu0
  %v1700 = vadd.f32 0.0, %v1699
  %v1701 = vpop.f32.mrb[0].mxu0
  %1702 = vmatprep.mubr.f32.mxu0 0.0
  %1703 = vmatmul.mubr.f32.gmra.mrb[0].mxu0 %v1458
  %v1704 = vpop.f32.mrb[0].mxu0
  %v1705 = vadd.f32 0.0, %v1704
  %v1706 = vpop.f32.mrb[0].mxu0
  %1707 = vmatprep.mubr.f32.mxu0 0.0
  %1708 = vmatmul.mubr.f32.gmra.mrb[0].mxu0 %v1459
  %v1709 = vpop.f32.mrb[0].mxu0
  %v1710 = vadd.f32 0.0, %v1709
  %v1711 = vpop.f32.mrb[0].mxu0
  %1712 = vmatprep.mubr.f32.mxu0 0.0
  %1713 = vmatmul.mubr.f32.gmra.mrb[0].mxu0 %v1460
  %v1714 = vpop.f32.mrb[0].mxu0
  %v1715 = vadd.f32 0.0, %v1714
  %v1716 = vpop.f32.mrb[0].mxu0
  %1717 = vmatprep.mubr.f32.mxu0 0.0
  %1718 = vmatmul.mubr.f32.gmra.mrb[0].mxu0 %v1461
  %v1719 = vpop.f32.mrb[0].mxu0
  %v1720 = vadd.f32 0.0, %v1719
  %v1721 = vpop.f32.mrb[0].mxu0
  %1722 = vmatprep.mubr.f32.mxu0 0.0
  %1723 = vmatmul.mubr.f32.gmra.mrb[0].mxu0 %v1462
  %v1724 = vpop.f32.mrb[0].mxu0
  %v1725 = vadd.f32 0.0, %v1724
  %v1726 = vpop.f32.mrb[0].mxu0
  %1727 = vmatprep.mubr.f32.mxu0 0.0
  %1728 = vmatmul.mubr.f32.gmra.mrb[0].mxu0 %v1463
  %v1729 = vpop.f32.mrb[0].mxu0
  %v1730 = vadd.f32 0.0, %v1729
  %v1731 = vpop.f32.mrb[0].mxu0
  %1732 = vmatprep.mubr.f32.mxu0 0.0
  %1733 = vmatmul.mubr.f32.gmra.mrb[0].mxu0 %v1464
  %v1734 = vpop.f32.mrb[0].mxu0
  %v1735 = vadd.f32 0.0, %v1734
  %v1736 = vpop.f32.mrb[0].mxu0
  %1737 = vmatprep.mubr.f32.mxu0 0.0
  %1738 = vmatmul.mubr.f32.gmra.mrb[0].mxu0 %v1465
  %v1739 = vpop.f32.mrb[0].mxu0
  %v1740 = vadd.f32 0.0, %v1739
  %v1741 = vpop.f32.mrb[0].mxu0
  %1742 = vmatprep.mubr.f32.mxu0 0.0
  %1743 = vmatmul.mubr.f32.gmra.mrb[0].mxu0 %v1466
  %v1744 = vpop.f32.mrb[0].mxu0
  %v1745 = vadd.f32 0.0, %v1744
  %v1746 = vpop.f32.mrb[0].mxu0
  %1747 = vmatprep.mubr.f32.mxu0 0.0
  %1748 = vmatmul.mubr.f32.gmra.mrb[0].mxu0 %v1467
  %v1749 = vpop.f32.mrb[0].mxu0
  %v1750 = vadd.f32 0.0, %v1749
  %v1751 = vpop.f32.mrb[0].mxu0
  %1752 = vmatprep.mubr.f32.mxu0 0.0
  %1753 = vmatmul.mubr.f32.gmra.mrb[0].mxu0 %v1468
  %v1754 = vpop.f32.mrb[0].mxu0
  %v1755 = vadd.f32 0.0, %v1754
  %v1756 = vpop.f32.mrb[0].mxu0
  %1757 = vmatprep.mubr.f32.mxu0 0.0
  %1758 = vmatmul.mubr.f32.gmra.mrb[0].mxu0 %v1469
  %v1759 = vpop.f32.mrb[0].mxu0
  %v1760 = vadd.f32 0.0, %v1759
  %v1761 = vpop.f32.mrb[0].mxu0
  %1762 = vmatprep.mubr.f32.mxu0 0.0
  %1763 = vmatmul.mubr.f32.gmra.mrb[0].mxu0 %v1470
  %v1764 = vpop.f32.mrb[0].mxu0
  %v1765 = vadd.f32 0.0, %v1764
  %v1766 = vpop.f32.mrb[0].mxu0
  %1767 = vmatprep.mubr.f32.mxu0 0.0
  %1768 = vmatmul.mubr.f32.gmra.mrb[0].mxu0 %v1471
  %v1769 = vpop.f32.mrb[0].mxu0
  %v1770 = vadd.f32 0.0, %v1769
  %v1771 = vpop.f32.mrb[0].mxu0
  %1772 = vmatprep.mubr.f32.mxu0 0.0
  %1773 = vmatmul.mubr.f32.gmra.mrb[0].mxu0 %v1472
  %v1774 = vpop.f32.mrb[0].mxu0
  %v1775 = vadd.f32 0.0, %v1774
  %v1776 = vpop.f32.mrb[0].mxu0
  %1777 = vmatprep.mubr.f32.mxu0 0.0
  %1778 = vmatmul.mubr.f32.gmra.mrb[0].mxu0 %v1473
  %v1779 = vpop.f32.mrb[0].mxu0
  %v1780 = vadd.f32 0.0, %v1779
  %v1781 = vpop.f32.mrb[0].mxu0
  %1782 = vmatprep.mubr.f32.mxu0 0.0
  %1783 = vmatmul.mubr.f32.gmra.mrb[0].mxu0 %v1474
  %v1784 = vpop.f32.mrb[0].mxu0
  %v1785 = vadd.f32 0.0, %v1784
  %v1786 = vpop.f32.mrb[0].mxu0
  %1787 = vmatprep.mubr.f32.mxu0 0.0
  %1788 = vmatmul.mubr.f32.gmra.mrb[0].mxu0 %v1475
  %v1789 = vpop.f32.mrb[0].mxu0
  %v1790 = vadd.f32 0.0, %v1789
  %v1791 = vpop.f32.mrb[0].mxu0
  %1792 = vmatprep.mubr.f32.mxu0 0.0
  %1793 = vmatmul.mubr.f32.gmra.mrb[0].mxu0 %v1476
  %v1794 = vpop.f32.mrb[0].mxu0
  %v1795 = vadd.f32 0.0, %v1794
  %v1796 = vpop.f32.mrb[0].mxu0
  %1797 = vmatprep.mubr.f32.mxu0 0.0
  %1798 = vmatmul.mubr.f32.gmra.mrb[0].mxu0 %v1477
  %v1799 = vpop.f32.mrb[0].mxu0
  %v1800 = vadd.f32 0.0, %v1799
  %v1801 = vpop.f32.mrb[0].mxu0
  %1802 = vmatprep.mubr.f32.mxu0 0.0
  %1803 = vmatmul.mubr.f32.gmra.mrb[0].mxu0 %v1478
  %v1804 = vpop.f32.mrb[0].mxu0
  %v1805 = vadd.f32 0.0, %v1804
  %v1806 = vpop.f32.mrb[0].mxu0
  %1807 = vmatprep.mubr.f32.mxu0 0.0
  %1808 = vmatmul.mubr.f32.gmra.mrb[0].mxu0 %v1479
  %v1809 = vpop.f32.mrb[0].mxu0
  %v1810 = vadd.f32 0.0, %v1809
  %v1811 = vpop.f32.mrb[0].mxu0
  %1812 = vmatprep.mubr.f32.mxu0 0.0
  %1813 = vmatmul.mubr.f32.gmra.mrb[0].mxu0 %v1480
  %v1814 = vpop.f32.mrb[0].mxu0
  %v1815 = vadd.f32 0.0, %v1814
  %v1816 = vpop.f32.mrb[0].mxu0
  %1817 = vmatprep.mubr.f32.mxu0 0.0
  %1818 = vmatmul.mubr.f32.gmra.mrb[0].mxu0 %v1481
  %v1819 = vpop.f32.mrb[0].mxu0
  %v1820 = vadd.f32 0.0, %v1819
  %v1821 = vpop.f32.mrb[0].mxu0
  %1822 = vmatprep.mubr.f32.mxu0 0.0
  %1823 = vmatmul.mubr.f32.gmra.mrb[0].mxu0 %v1482
  %v1824 = vpop.f32.mrb[0].mxu0
  %v1825 = vadd.f32 0.0, %v1824
  %v1826 = vpop.f32.mrb[0].mxu0
  %1827 = vmatprep.mubr.f32.mxu0 0.0
  %1828 = vmatmul.mubr.f32.gmra.mrb[0].mxu0 %v1483
  %v1829 = vpop.f32.mrb[0].mxu0
  %v1830 = vadd.f32 0.0, %v1829
  %v1831 = vpop.f32.mrb[0].mxu0
  %1832 = vmatprep.mubr.f32.mxu0 0.0
  %1833 = vmatmul.mubr.f32.gmra.mrb[0].mxu0 %v1484
  %v1834 = vpop.f32.mrb[0].mxu0
  %v1835 = vadd.f32 0.0, %v1834
  %v1836 = vpop.f32.mrb[0].mxu0
  %1837 = vmatprep.mubr.f32.mxu0 0.0
  %1838 = vmatmul.mubr.f32.gmra.mrb[0].mxu0 %v1485
  %v1839 = vpop.f32.mrb[0].mxu0
  %v1840 = vadd.f32 0.0, %v1839
  %v1841 = vpop.f32.mrb[0].mxu0
  %1842 = vmatprep.mubr.f32.mxu0 0.0
  %1843 = vmatmul.mubr.f32.gmra.mrb[0].mxu0 %v1486
  %v1844 = vpop.f32.mrb[0].mxu0
  %v1845 = vadd.f32 0.0, %v1844
  %v1846 = vpop.f32.mrb[0].mxu0
  %1847 = vmatprep.mubr.f32.mxu0 0.0
  %1848 = vmatmul.mubr.f32.gmra.mrb[0].mxu0 %v1487
  %v1849 = vpop.f32.mrb[0].mxu0
  %v1850 = vadd.f32 0.0, %v1849
  %v1851 = vpop.f32.mrb[0].mxu0
  %1852 = vmatprep.mubr.f32.mxu0 0.0
  %1853 = vmatmul.mubr.f32.gmra.mrb[0].mxu0 %v1488
  %v1854 = vpop.f32.mrb[0].mxu0
  %v1855 = vadd.f32 0.0, %v1854
  %v1856 = vpop.f32.mrb[0].mxu0
  %1857 = vmatprep.mubr.f32.mxu0 0.0
  %1858 = vmatmul.mubr.f32.gmra.mrb[0].mxu0 %v1489
  %v1859 = vpop.f32.mrb[0].mxu0
  %v1860 = vadd.f32 0.0, %v1859
  %v1861 = vpop.f32.mrb[0].mxu0
  %1862 = vmatprep.mubr.f32.mxu0 0.0
  %1863 = vmatmul.mubr.f32.gmra.mrb[0].mxu0 %v1490
  %v1864 = vpop.f32.mrb[0].mxu0
  %v1865 = vadd.f32 0.0, %v1864
  %v1866 = vpop.f32.mrb[0].mxu0
  %1867 = vmatprep.mubr.f32.mxu0 0.0
  %1868 = vmatmul.mubr.f32.gmra.mrb[0].mxu0 %v1491
  %v1869 = vpop.f32.mrb[0].mxu0
  %v1870 = vadd.f32 0.0, %v1869
  %v1871 = vpop.f32.mrb[0].mxu0
  %1872 = vmatprep.mubr.f32.mxu0 0.0
  %1873 = vmatmul.mubr.f32.gmra.mrb[0].mxu0 %v1492
  %v1874 = vpop.f32.mrb[0].mxu0
  %v1875 = vadd.f32 0.0, %v1874
  %v1876 = vpop.f32.mrb[0].mxu0
  %1877 = vmatprep.mubr.f32.mxu0 0.0
  %1878 = vmatmul.mubr.f32.gmra.mrb[0].mxu0 %v1493
  %v1879 = vpop.f32.mrb[0].mxu0
  %v1880 = vadd.f32 0.0, %v1879
  %v1881 = vpop.f32.mrb[0].mxu0
  %1882 = vmatprep.mubr.f32.mxu0 0.0
  %1883 = vmatmul.mubr.f32.gmra.mrb[0].mxu0 %v1494
  %v1884 = vpop.f32.mrb[0].mxu0
  %v1885 = vadd.f32 0.0, %v1884
  %v1886 = vpop.f32.mrb[0].mxu0
  %1887 = vmatprep.mubr.f32.mxu0 0.0
  %1888 = vmatmul.mubr.f32.gmra.mrb[0].mxu0 %v1495
  %v1889 = vpop.f32.mrb[0].mxu0
  %v1890 = vadd.f32 0.0, %v1889
  %v1891 = vpop.f32.mrb[0].mxu0
  %1892 = vmatprep.mubr.f32.mxu0 0.0
  %1893 = vmatmul.mubr.f32.gmra.mrb[0].mxu0 %v1496
  %v1894 = vpop.f32.mrb[0].mxu0
  %v1895 = vadd.f32 0.0, %v1894
  %v1896 = vpop.f32.mrb[0].mxu0
  %1897 = vmatprep.mubr.f32.mxu0 0.0
  %1898 = vmatmul.mubr.f32.gmra.mrb[0].mxu0 %v1497
  %v1899 = vpop.f32.mrb[0].mxu0
  %v1900 = vadd.f32 0.0, %v1899
  %v1901 = vpop.f32.mrb[0].mxu0
  %1902 = vmatprep.mubr.f32.mxu0 0.0
  %1903 = vmatmul.mubr.f32.gmra.mrb[0].mxu0 %v1498
  %v1904 = vpop.f32.mrb[0].mxu0
  %v1905 = vadd.f32 0.0, %v1904
  %v1906 = vpop.f32.mrb[0].mxu0
  %1907 = vmatprep.mubr.f32.mxu0 0.0
  %1908 = vmatmul.mubr.f32.gmra.mrb[0].mxu0 %v1499
  %v1909 = vpop.f32.mrb[0].mxu0
  %v1910 = vadd.f32 0.0, %v1909
  %v1911 = vpop.f32.mrb[0].mxu0
  %1912 = vmatprep.mubr.f32.mxu0 0.0
  %1913 = vmatmul.mubr.f32.gmra.mrb[0].mxu0 %v1500
  %v1914 = vpop.f32.mrb[0].mxu0
  %v1915 = vadd.f32 0.0, %v1914
  %v1916 = vpop.f32.mrb[0].mxu0
  %1917 = vmatprep.mubr.f32.mxu0 0.0
  %1918 = vmatmul.mubr.f32.gmra.mrb[0].mxu0 %v1501
  %v1919 = vpop.f32.mrb[0].mxu0
  %v1920 = vadd.f32 0.0, %v1919
  %v1921 = vpop.f32.mrb[0].mxu0
  %1922 = vdwg.mxu0
  %vm1923 = vcmp.gt.f32.partialorder %v1585, 0.0
  %vm1924 = vcmp.gt.f32.partialorder %v1590, 0.0
  %vm1925 = vcmp.gt.f32.partialorder %v1595, 0.0
  %vm1926 = vcmp.gt.f32.partialorder %v1600, 0.0
  %vm1927 = vcmp.gt.f32.partialorder %v1605, 0.0
  %vm1928 = vcmp.gt.f32.partialorder %v1610, 0.0
  %vm1929 = vcmp.gt.f32.partialorder %v1615, 0.0
  %vm1930 = vcmp.gt.f32.partialorder %v1620, 0.0
  %vm1931 = vcmp.gt.f32.partialorder %v1625, 0.0
  %vm1932 = vcmp.gt.f32.partialorder %v1630, 0.0
  %vm1933 = vcmp.gt.f32.partialorder %v1635, 0.0
  %vm1934 = vcmp.gt.f32.partialorder %v1640, 0.0
  %vm1935 = vcmp.gt.f32.partialorder %v1645, 0.0
  %vm1936 = vcmp.gt.f32.partialorder %v1650, 0.0
  %vm1937 = vcmp.gt.f32.partialorder %v1655, 0.0
  %vm1938 = vcmp.gt.f32.partialorder %v1660, 0.0
  %vm1939 = vcmp.gt.f32.partialorder %v1665, 0.0
  %vm1940 = vcmp.gt.f32.partialorder %v1670, 0.0
  %vm1941 = vcmp.gt.f32.partialorder %v1675, 0.0
  %vm1942 = vcmp.gt.f32.partialorder %v1680, 0.0
  %vm1943 = vcmp.gt.f32.partialorder %v1685, 0.0
  %vm1944 = vcmp.gt.f32.partialorder %v1690, 0.0
  %vm1945 = vcmp.gt.f32.partialorder %v1695, 0.0
  %vm1946 = vcmp.gt.f32.partialorder %v1700, 0.0
  %vm1947 = vcmp.gt.f32.partialorder %v1705, 0.0
  %vm1948 = vcmp.gt.f32.partialorder %v1710, 0.0
  %vm1949 = vcmp.gt.f32.partialorder %v1715, 0.0
  %vm1950 = vcmp.gt.f32.partialorder %v1720, 0.0
  %vm1951 = vcmp.gt.f32.partialorder %v1725, 0.0
  %vm1952 = vcmp.gt.f32.partialorder %v1730, 0.0
  %vm1953 = vcmp.gt.f32.partialorder %v1735, 0.0
  %vm1954 = vcmp.gt.f32.partialorder %v1740, 0.0
  %vm1955 = vcmp.gt.f32.partialorder %v1745, 0.0
  %vm1956 = vcmp.gt.f32.partialorder %v1750, 0.0
  %vm1957 = vcmp.gt.f32.partialorder %v1755, 0.0
  %vm1958 = vcmp.gt.f32.partialorder %v1760, 0.0
  %vm1959 = vcmp.gt.f32.partialorder %v1765, 0.0
  %vm1960 = vcmp.gt.f32.partialorder %v1770, 0.0
  %vm1961 = vcmp.gt.f32.partialorder %v1775, 0.0
  %vm1962 = vcmp.gt.f32.partialorder %v1780, 0.0
  %vm1963 = vcmp.gt.f32.partialorder %v1785, 0.0
  %vm1964 = vcmp.gt.f32.partialorder %v1790, 0.0
  %vm1965 = vcmp.gt.f32.partialorder %v1795, 0.0
  %vm1966 = vcmp.gt.f32.partialorder %v1800, 0.0
  %vm1967 = vcmp.gt.f32.partialorder %v1805, 0.0
  %vm1968 = vcmp.gt.f32.partialorder %v1810, 0.0
  %vm1969 = vcmp.gt.f32.partialorder %v1815, 0.0
  %vm1970 = vcmp.gt.f32.partialorder %v1820, 0.0
  %vm1971 = vcmp.gt.f32.partialorder %v1825, 0.0
  %vm1972 = vcmp.gt.f32.partialorder %v1830, 0.0
  %vm1973 = vcmp.gt.f32.partialorder %v1835, 0.0
  %vm1974 = vcmp.gt.f32.partialorder %v1840, 0.0
  %vm1975 = vcmp.gt.f32.partialorder %v1845, 0.0
  %vm1976 = vcmp.gt.f32.partialorder %v1850, 0.0
  %vm1977 = vcmp.gt.f32.partialorder %v1855, 0.0
  %vm1978 = vcmp.gt.f32.partialorder %v1860, 0.0
  %vm1979 = vcmp.gt.f32.partialorder %v1865, 0.0
  %vm1980 = vcmp.gt.f32.partialorder %v1870, 0.0
  %vm1981 = vcmp.gt.f32.partialorder %v1875, 0.0
  %vm1982 = vcmp.gt.f32.partialorder %v1880, 0.0
  %vm1983 = vcmp.gt.f32.partialorder %v1885, 0.0
  %vm1984 = vcmp.gt.f32.partialorder %v1890, 0.0
  %vm1985 = vcmp.gt.f32.partialorder %v1895, 0.0
  %vm1986 = vcmp.gt.f32.partialorder %v1900, 0.0
  %vm1987 = vcmp.gt.f32.partialorder %v1905, 0.0
  %vm1988 = vcmp.gt.f32.partialorder %v1910, 0.0
  %vm1989 = vcmp.gt.f32.partialorder %v1915, 0.0
  %vm1990 = vcmp.gt.f32.partialorder %v1920, 0.0
  %v1991 = vmul.f32 %v1585, 0.2
  %v1992 = vmul.f32 %v1590, 0.2
  %v1993 = vmul.f32 %v1595, 0.2
  %v1994 = vmul.f32 %v1600, 0.2
  %v1995 = vmul.f32 %v1605, 0.2
  %v1996 = vmul.f32 %v1610, 0.2
  %v1997 = vmul.f32 %v1615, 0.2
  %v1998 = vmul.f32 %v1620, 0.2
  %v1999 = vmul.f32 %v1625, 0.2
  %v2000 = vmul.f32 %v1630, 0.2
  %v2001 = vmul.f32 %v1635, 0.2
  %v2002 = vmul.f32 %v1640, 0.2
  %v2003 = vmul.f32 %v1645, 0.2
  %v2004 = vmul.f32 %v1650, 0.2
  %v2005 = vmul.f32 %v1655, 0.2
  %v2006 = vmul.f32 %v1660, 0.2
  %v2007 = vmul.f32 %v1665, 0.2
  %v2008 = vmul.f32 %v1670, 0.2
  %v2009 = vmul.f32 %v1675, 0.2
  %v2010 = vmul.f32 %v1680, 0.2
  %v2011 = vmul.f32 %v1685, 0.2
  %v2012 = vmul.f32 %v1690, 0.2
  %v2013 = vmul.f32 %v1695, 0.2
  %v2014 = vmul.f32 %v1700, 0.2
  %v2015 = vmul.f32 %v1705, 0.2
  %v2016 = vmul.f32 %v1710, 0.2
  %v2017 = vmul.f32 %v1715, 0.2
  %v2018 = vmul.f32 %v1720, 0.2
  %v2019 = vmul.f32 %v1725, 0.2
  %v2020 = vmul.f32 %v1730, 0.2
  %v2021 = vmul.f32 %v1735, 0.2
  %v2022 = vmul.f32 %v1740, 0.2
  %v2023 = vmul.f32 %v1745, 0.2
  %v2024 = vmul.f32 %v1750, 0.2
  %v2025 = vmul.f32 %v1755, 0.2
  %v2026 = vmul.f32 %v1760, 0.2
  %v2027 = vmul.f32 %v1765, 0.2
  %v2028 = vmul.f32 %v1770, 0.2
  %v2029 = vmul.f32 %v1775, 0.2
  %v2030 = vmul.f32 %v1780, 0.2
  %v2031 = vmul.f32 %v1785, 0.2
  %v2032 = vmul.f32 %v1790, 0.2
  %v2033 = vmul.f32 %v1795, 0.2
  %v2034 = vmul.f32 %v1800, 0.2
  %v2035 = vmul.f32 %v1805, 0.2
  %v2036 = vmul.f32 %v1810, 0.2
  %v2037 = vmul.f32 %v1815, 0.2
  %v2038 = vmul.f32 %v1820, 0.2
  %v2039 = vmul.f32 %v1825, 0.2
  %v2040 = vmul.f32 %v1830, 0.2
  %v2041 = vmul.f32 %v1835, 0.2
  %v2042 = vmul.f32 %v1840, 0.2
  %v2043 = vmul.f32 %v1845, 0.2
  %v2044 = vmul.f32 %v1850, 0.2
  %v2045 = vmul.f32 %v1855, 0.2
  %v2046 = vmul.f32 %v1860, 0.2
  %v2047 = vmul.f32 %v1865, 0.2
  %v2048 = vmul.f32 %v1870, 0.2
  %v2049 = vmul.f32 %v1875, 0.2
  %v2050 = vmul.f32 %v1880, 0.2
  %v2051 = vmul.f32 %v1885, 0.2
  %v2052 = vmul.f32 %v1890, 0.2
  %v2053 = vmul.f32 %v1895, 0.2
  %v2054 = vmul.f32 %v1900, 0.2
  %v2055 = vmul.f32 %v1905, 0.2
  %v2056 = vmul.f32 %v1910, 0.2
  %v2057 = vmul.f32 %v1915, 0.2
  %v2058 = vmul.f32 %v1920, 0.2
  %v2059 = vsel %vm1923, %v1585, %v1991
  %v2060 = vsel %vm1924, %v1590, %v1992
  %v2061 = vsel %vm1925, %v1595, %v1993
  %v2062 = vsel %vm1926, %v1600, %v1994
  %v2063 = vsel %vm1927, %v1605, %v1995
  %v2064 = vsel %vm1928, %v1610, %v1996
  %v2065 = vsel %vm1929, %v1615, %v1997
  %v2066 = vsel %vm1930, %v1620, %v1998
  %v2067 = vsel %vm1931, %v1625, %v1999
  %v2068 = vsel %vm1932, %v1630, %v2000
  %v2069 = vsel %vm1933, %v1635, %v2001
  %v2070 = vsel %vm1934, %v1640, %v2002
  %v2071 = vsel %vm1935, %v1645, %v2003
  %v2072 = vsel %vm1936, %v1650, %v2004
  %v2073 = vsel %vm1937, %v1655, %v2005
  %v2074 = vsel %vm1938, %v1660, %v2006
  %v2075 = vsel %vm1939, %v1665, %v2007
  %v2076 = vsel %vm1940, %v1670, %v2008
  %v2077 = vsel %vm1941, %v1675, %v2009
  %v2078 = vsel %vm1942, %v1680, %v2010
  %v2079 = vsel %vm1943, %v1685, %v2011
  %v2080 = vsel %vm1944, %v1690, %v2012
  %v2081 = vsel %vm1945, %v1695, %v2013
  %v2082 = vsel %vm1946, %v1700, %v2014
  %v2083 = vsel %vm1947, %v1705, %v2015
  %v2084 = vsel %vm1948, %v1710, %v2016
  %v2085 = vsel %vm1949, %v1715, %v2017
  %v2086 = vsel %vm1950, %v1720, %v2018
  %v2087 = vsel %vm1951, %v1725, %v2019
  %v2088 = vsel %vm1952, %v1730, %v2020
  %v2089 = vsel %vm1953, %v1735, %v2021
  %v2090 = vsel %vm1954, %v1740, %v2022
  %v2091 = vsel %vm1955, %v1745, %v2023
  %v2092 = vsel %vm1956, %v1750, %v2024
  %v2093 = vsel %vm1957, %v1755, %v2025
  %v2094 = vsel %vm1958, %v1760, %v2026
  %v2095 = vsel %vm1959, %v1765, %v2027
  %v2096 = vsel %vm1960, %v1770, %v2028
  %v2097 = vsel %vm1961, %v1775, %v2029
  %v2098 = vsel %vm1962, %v1780, %v2030
  %v2099 = vsel %vm1963, %v1785, %v2031
  %v2100 = vsel %vm1964, %v1790, %v2032
  %v2101 = vsel %vm1965, %v1795, %v2033
  %v2102 = vsel %vm1966, %v1800, %v2034
  %v2103 = vsel %vm1967, %v1805, %v2035
  %v2104 = vsel %vm1968, %v1810, %v2036
  %v2105 = vsel %vm1969, %v1815, %v2037
  %v2106 = vsel %vm1970, %v1820, %v2038
  %v2107 = vsel %vm1971, %v1825, %v2039
  %v2108 = vsel %vm1972, %v1830, %v2040
  %v2109 = vsel %vm1973, %v1835, %v2041
  %v2110 = vsel %vm1974, %v1840, %v2042
  %v2111 = vsel %vm1975, %v1845, %v2043
  %v2112 = vsel %vm1976, %v1850, %v2044
  %v2113 = vsel %vm1977, %v1855, %v2045
  %v2114 = vsel %vm1978, %v1860, %v2046
  %v2115 = vsel %vm1979, %v1865, %v2047
  %v2116 = vsel %vm1980, %v1870, %v2048
  %v2117 = vsel %vm1981, %v1875, %v2049
  %v2118 = vsel %vm1982, %v1880, %v2050
  %v2119 = vsel %vm1983, %v1885, %v2051
  %v2120 = vsel %vm1984, %v1890, %v2052
  %v2121 = vsel %vm1985, %v1895, %v2053
  %v2122 = vsel %vm1986, %v1900, %v2054
  %v2123 = vsel %vm1987, %v1905, %v2055
  %v2124 = vsel %vm1988, %v1910, %v2056
  %v2125 = vsel %vm1989, %v1915, %v2057
  %v2126 = vsel %vm1990, %v1920, %v2058
  %vm2127 = vcmask 64512
  %2128 = vst.msk [vmem:[#allocation7] sm:$0xff] %vm2127, %v2059
  %2129 = vst.msk [vmem:[#allocation7 + $0x8] sm:$0xff] %vm2127, %v2060
  %2130 = vst.msk [vmem:[#allocation7 + $0x10] sm:$0xff] %vm2127, %v2061
  %2131 = vst.msk [vmem:[#allocation7 + $0x18] sm:$0xff] %vm2127, %v2062
  %2132 = vst.msk [vmem:[#allocation7 + $0x20] sm:$0xff] %vm2127, %v2063
  %2133 = vst.msk [vmem:[#allocation7 + $0x28] sm:$0xff] %vm2127, %v2064
  %2134 = vst.msk [vmem:[#allocation7 + $0x30] sm:$0xff] %vm2127, %v2065
  %2135 = vst.msk [vmem:[#allocation7 + $0x38] sm:$0xff] %vm2127, %v2066
  %2136 = vst.msk [vmem:[#allocation7 + $0x40] sm:$0xff] %vm2127, %v2067
  %2137 = vst.msk [vmem:[#allocation7 + $0x48] sm:$0xff] %vm2127, %v2068
  %2138 = vst.msk [vmem:[#allocation7 + $0x50] sm:$0xff] %vm2127, %v2069
  %2139 = vst.msk [vmem:[#allocation7 + $0x58] sm:$0xff] %vm2127, %v2070
  %2140 = vst.msk [vmem:[#allocation7 + $0x60] sm:$0xff] %vm2127, %v2071
  %2141 = vst.msk [vmem:[#allocation7 + $0x68] sm:$0xff] %vm2127, %v2072
  %2142 = vst.msk [vmem:[#allocation7 + $0x70] sm:$0xff] %vm2127, %v2073
  %2143 = vst.msk [vmem:[#allocation7 + $0x78] sm:$0xff] %vm2127, %v2074
  %2144 = vst.msk [vmem:[#allocation7 + $0x80] sm:$0xff] %vm2127, %v2075
  %2145 = vst.msk [vmem:[#allocation7 + $0x88] sm:$0xff] %vm2127, %v2076
  %2146 = vst.msk [vmem:[#allocation7 + $0x90] sm:$0xff] %vm2127, %v2077
  %2147 = vst.msk [vmem:[#allocation7 + $0x98] sm:$0xff] %vm2127, %v2078
  %2148 = vst.msk [vmem:[#allocation7 + $0xa0] sm:$0xff] %vm2127, %v2079
  %2149 = vst.msk [vmem:[#allocation7 + $0xa8] sm:$0xff] %vm2127, %v2080
  %2150 = vst.msk [vmem:[#allocation7 + $0xb0] sm:$0xff] %vm2127, %v2081
  %2151 = vst.msk [vmem:[#allocation7 + $0xb8] sm:$0xff] %vm2127, %v2082
  %2152 = vst.msk [vmem:[#allocation7 + $0xc0] sm:$0xff] %vm2127, %v2083
  %2153 = vst.msk [vmem:[#allocation7 + $0xc8] sm:$0xff] %vm2127, %v2084
  %2154 = vst.msk [vmem:[#allocation7 + $0xd0] sm:$0xff] %vm2127, %v2085
  %2155 = vst.msk [vmem:[#allocation7 + $0xd8] sm:$0xff] %vm2127, %v2086
  %2156 = vst.msk [vmem:[#allocation7 + $0xe0] sm:$0xff] %vm2127, %v2087
  %2157 = vst.msk [vmem:[#allocation7 + $0xe8] sm:$0xff] %vm2127, %v2088
  %2158 = vst.msk [vmem:[#allocation7 + $0xf0] sm:$0xff] %vm2127, %v2089
  %2159 = vst.msk [vmem:[#allocation7 + $0xf8] sm:$0xff] %vm2127, %v2090
  %2160 = vst.msk [vmem:[#allocation7 + $0x100] sm:$0xff] %vm2127, %v2091
  %2161 = vst.msk [vmem:[#allocation7 + $0x108] sm:$0xff] %vm2127, %v2092
  %2162 = vst.msk [vmem:[#allocation7 + $0x110] sm:$0xff] %vm2127, %v2093
  %2163 = vst.msk [vmem:[#allocation7 + $0x118] sm:$0xff] %vm2127, %v2094
  %2164 = vst.msk [vmem:[#allocation7 + $0x120] sm:$0xff] %vm2127, %v2095
  %2165 = vst.msk [vmem:[#allocation7 + $0x128] sm:$0xff] %vm2127, %v2096
  %2166 = vst.msk [vmem:[#allocation7 + $0x130] sm:$0xff] %vm2127, %v2097
  %2167 = vst.msk [vmem:[#allocation7 + $0x138] sm:$0xff] %vm2127, %v2098
  %2168 = vst.msk [vmem:[#allocation7 + $0x140] sm:$0xff] %vm2127, %v2099
  %2169 = vst.msk [vmem:[#allocation7 + $0x148] sm:$0xff] %vm2127, %v2100
  %2170 = vst.msk [vmem:[#allocation7 + $0x150] sm:$0xff] %vm2127, %v2101
  %2171 = vst.msk [vmem:[#allocation7 + $0x158] sm:$0xff] %vm2127, %v2102
  %2172 = vst.msk [vmem:[#allocation7 + $0x160] sm:$0xff] %vm2127, %v2103
  %2173 = vst.msk [vmem:[#allocation7 + $0x168] sm:$0xff] %vm2127, %v2104
  %2174 = vst.msk [vmem:[#allocation7 + $0x170] sm:$0xff] %vm2127, %v2105
  %2175 = vst.msk [vmem:[#allocation7 + $0x178] sm:$0xff] %vm2127, %v2106
  %2176 = vst.msk [vmem:[#allocation7 + $0x180] sm:$0xff] %vm2127, %v2107
  %2177 = vst.msk [vmem:[#allocation7 + $0x188] sm:$0xff] %vm2127, %v2108
  %2178 = vst.msk [vmem:[#allocation7 + $0x190] sm:$0xff] %vm2127, %v2109
  %2179 = vst.msk [vmem:[#allocation7 + $0x198] sm:$0xff] %vm2127, %v2110
  %2180 = vst.msk [vmem:[#allocation7 + $0x1a0] sm:$0xff] %vm2127, %v2111
  %2181 = vst.msk [vmem:[#allocation7 + $0x1a8] sm:$0xff] %vm2127, %v2112
  %2182 = vst.msk [vmem:[#allocation7 + $0x1b0] sm:$0xff] %vm2127, %v2113
  %2183 = vst.msk [vmem:[#allocation7 + $0x1b8] sm:$0xff] %vm2127, %v2114
  %2184 = vst.msk [vmem:[#allocation7 + $0x1c0] sm:$0xff] %vm2127, %v2115
  %2185 = vst.msk [vmem:[#allocation7 + $0x1c8] sm:$0xff] %vm2127, %v2116
  %2186 = vst.msk [vmem:[#allocation7 + $0x1d0] sm:$0xff] %vm2127, %v2117
  %2187 = vst.msk [vmem:[#allocation7 + $0x1d8] sm:$0xff] %vm2127, %v2118
  %2188 = vst.msk [vmem:[#allocation7 + $0x1e0] sm:$0xff] %vm2127, %v2119
  %2189 = vst.msk [vmem:[#allocation7 + $0x1e8] sm:$0xff] %vm2127, %v2120
  %2190 = vst.msk [vmem:[#allocation7 + $0x1f0] sm:$0xff] %vm2127, %v2121
  %2191 = vst.msk [vmem:[#allocation7 + $0x1f8] sm:$0xff] %vm2127, %v2122
  %2192 = vst.msk [vmem:[#allocation7 + $0x200] sm:$0xff] %vm2127, %v2123
  %2193 = vst.msk [vmem:[#allocation7 + $0x208] sm:$0xff] %vm2127, %v2124
  %2194 = vst.msk [vmem:[#allocation7 + $0x210] sm:$0xff] %vm2127, %v2125
  %2195 = vst.msk [vmem:[#allocation7 + $0x218] sm:$0xff] %vm2127, %v2126
  %v2196 = vld [vmem:[#allocation7] ss:$2 sm:$0xff]
  %2198 = vrot.lane.b32.xlu0 %v2196, 24
  %v2199 = vpop.permute.xlu0 %2198
  %vm2201 = vcmask 261312
  %2202 = vst.msk [vmem:[#allocation2] sm:$0xff] %vm2201, %v2199
  %s2203 = scalar_lea.vmem [#allocation7], 1
  %v2204 = vld [vmem:[%s2203] ss:$2 sm:$0xff]
  %2206 = vrot.lane.b32.xlu0 %v2204, 16
  %v2207 = vpop.permute.xlu0 %2206
  %vm2209 = vcmask 195712
  %2210 = vst.msk [vmem:[#allocation2 + $0x1] sm:$0xff] %vm2209, %v2207
  %s2211 = scalar_lea.vmem [#allocation7], 17
  %v2212 = vld [vmem:[%s2211] ss:$2 sm:$0xff]
  %2214 = vrot.lane.b32.xlu0 %v2212, 8
  %v2215 = vpop.permute.xlu0 %2214
  %vm2217 = vcmask 130112
  %2218 = vst.msk [vmem:[#allocation2 + $0x9] sm:$0xff] %vm2217, %v2215
  %s2219 = scalar_lea.vmem [#allocation7], 18
  %v2220 = vld [vmem:[%s2219] ss:$2 sm:$0xff]
  %2221 = vst.msk [vmem:[#allocation2 + $0xa] sm:$0xff] %vm2127, %v2220
  %s2222 = scalar_lea.vmem [#allocation7], 34
  %v2223 = vld [vmem:[%s2222] ss:$2 sm:$0xff]
  %2225 = vrot.lane.b32.xlu0 %v2223, 24
  %v2226 = vpop.permute.xlu0 %2225
  %2228 = vst.msk [vmem:[#allocation2 + $0x9] sm:$0xff] %vm2201, %v2226
  %s2229 = scalar_lea.vmem [#allocation7], 35
  %v2230 = vld [vmem:[%s2229] ss:$2 sm:$0xff]
  %2232 = vrot.lane.b32.xlu0 %v2230, 16
  %v2233 = vpop.permute.xlu0 %2232
  %2235 = vst.msk [vmem:[#allocation2 + $0xa] sm:$0xff] %vm2209, %v2233
  %s2236 = scalar_lea.vmem [#allocation7], 51
  %v2237 = vld [vmem:[%s2236] ss:$2 sm:$0xff]
  %2239 = vrot.lane.b32.xlu0 %v2237, 8
  %v2240 = vpop.permute.xlu0 %2239
  %2242 = vst.msk [vmem:[#allocation2 + $0x12] sm:$0xff] %vm2217, %v2240
  %s2243 = scalar_lea.vmem [#allocation7], 52
  %v2244 = vld [vmem:[%s2243] ss:$2 sm:$0xff]
  %2245 = vst.msk [vmem:[#allocation2 + $0x13] sm:$0xff] %vm2127, %v2244
  %s2246 = scalar_lea.vmem [#allocation7], 68
  %v2247 = vld [vmem:[%s2246] ss:$2 sm:$0xff]
  %2249 = vrot.lane.b32.xlu0 %v2247, 24
  %v2250 = vpop.permute.xlu0 %2249
  %2252 = vst.msk [vmem:[#allocation2 + $0x12] sm:$0xff] %vm2201, %v2250
  %s2253 = scalar_lea.vmem [#allocation7], 69
  %v2254 = vld [vmem:[%s2253] ss:$2 sm:$0xff]
  %2256 = vrot.lane.b32.xlu0 %v2254, 16
  %v2257 = vpop.permute.xlu0 %2256
  %2259 = vst.msk [vmem:[#allocation2 + $0x13] sm:$0xff] %vm2209, %v2257
  %s2260 = scalar_lea.vmem [#allocation7], 85
  %v2261 = vld [vmem:[%s2260] ss:$2 sm:$0xff]
  %2263 = vrot.lane.b32.xlu0 %v2261, 8
  %v2264 = vpop.permute.xlu0 %2263
  %2266 = vst.msk [vmem:[#allocation2 + $0x1b] sm:$0xff] %vm2217, %v2264
  %s2267 = scalar_lea.vmem [#allocation7], 86
  %v2268 = vld [vmem:[%s2267] ss:$2 sm:$0xff]
  %2269 = vst.msk [vmem:[#allocation2 + $0x1c] sm:$0xff] %vm2127, %v2268
  %s2270 = scalar_lea.vmem [#allocation7], 102
  %v2271 = vld [vmem:[%s2270] ss:$2 sm:$0xff]
  %2273 = vrot.lane.b32.xlu0 %v2271, 24
  %v2274 = vpop.permute.xlu0 %2273
  %2276 = vst.msk [vmem:[#allocation2 + $0x1b] sm:$0xff] %vm2201, %v2274
  %s2277 = scalar_lea.vmem [#allocation7], 103
  %v2278 = vld [vmem:[%s2277] ss:$2 sm:$0xff]
  %2280 = vrot.lane.b32.xlu0 %v2278, 16
  %v2281 = vpop.permute.xlu0 %2280
  %2283 = vst.msk [vmem:[#allocation2 + $0x1c] sm:$0xff] %vm2209, %v2281
  %s2284 = scalar_lea.vmem [#allocation7], 119
  %v2285 = vld [vmem:[%s2284] ss:$2 sm:$0xff]
  %2287 = vrot.lane.b32.xlu0 %v2285, 8
  %v2288 = vpop.permute.xlu0 %2287
  %2290 = vst.msk [vmem:[#allocation2 + $0x24] sm:$0xff] %vm2217, %v2288
  %s2291 = scalar_lea.vmem [#allocation7], 120
  %v2292 = vld [vmem:[%s2291] ss:$2 sm:$0xff]
  %2293 = vst.msk [vmem:[#allocation2 + $0x25] sm:$0xff] %vm2127, %v2292
  %s2294 = scalar_lea.vmem [#allocation7], 136
  %v2295 = vld [vmem:[%s2294] ss:$2 sm:$0xff]
  %2297 = vrot.lane.b32.xlu0 %v2295, 24
  %v2298 = vpop.permute.xlu0 %2297
  %2300 = vst.msk [vmem:[#allocation2 + $0x24] sm:$0xff] %vm2201, %v2298
  %s2301 = scalar_lea.vmem [#allocation7], 137
  %v2302 = vld [vmem:[%s2301] ss:$2 sm:$0xff]
  %2304 = vrot.lane.b32.xlu0 %v2302, 16
  %v2305 = vpop.permute.xlu0 %2304
  %2307 = vst.msk [vmem:[#allocation2 + $0x25] sm:$0xff] %vm2209, %v2305
  %s2308 = scalar_lea.vmem [#allocation7], 153
  %v2309 = vld [vmem:[%s2308] ss:$2 sm:$0xff]
  %2311 = vrot.lane.b32.xlu0 %v2309, 8
  %v2312 = vpop.permute.xlu0 %2311
  %2314 = vst.msk [vmem:[#allocation2 + $0x2d] sm:$0xff] %vm2217, %v2312
  %s2315 = scalar_lea.vmem [#allocation7], 154
  %v2316 = vld [vmem:[%s2315] ss:$2 sm:$0xff]
  %2317 = vst.msk [vmem:[#allocation2 + $0x2e] sm:$0xff] %vm2127, %v2316
  %s2318 = scalar_lea.vmem [#allocation7], 170
  %v2319 = vld [vmem:[%s2318] ss:$2 sm:$0xff]
  %2321 = vrot.lane.b32.xlu0 %v2319, 24
  %v2322 = vpop.permute.xlu0 %2321
  %2324 = vst.msk [vmem:[#allocation2 + $0x2d] sm:$0xff] %vm2201, %v2322
  %s2325 = scalar_lea.vmem [#allocation7], 171
  %v2326 = vld [vmem:[%s2325] ss:$2 sm:$0xff]
  %2328 = vrot.lane.b32.xlu0 %v2326, 16
  %v2329 = vpop.permute.xlu0 %2328
  %2331 = vst.msk [vmem:[#allocation2 + $0x2e] sm:$0xff] %vm2209, %v2329
  %s2332 = scalar_lea.vmem [#allocation7], 187
  %v2333 = vld [vmem:[%s2332] ss:$2 sm:$0xff]
  %2335 = vrot.lane.b32.xlu0 %v2333, 8
  %v2336 = vpop.permute.xlu0 %2335
  %2338 = vst.msk [vmem:[#allocation2 + $0x36] sm:$0xff] %vm2217, %v2336
  %s2339 = scalar_lea.vmem [#allocation7], 188
  %v2340 = vld [vmem:[%s2339] ss:$2 sm:$0xff]
  %2341 = vst.msk [vmem:[#allocation2 + $0x37] sm:$0xff] %vm2127, %v2340
  %s2342 = scalar_lea.vmem [#allocation7], 204
  %v2343 = vld [vmem:[%s2342] ss:$2 sm:$0xff]
  %2345 = vrot.lane.b32.xlu0 %v2343, 24
  %v2346 = vpop.permute.xlu0 %2345
  %2348 = vst.msk [vmem:[#allocation2 + $0x36] sm:$0xff] %vm2201, %v2346
  %s2349 = scalar_lea.vmem [#allocation7], 205
  %v2350 = vld [vmem:[%s2349] ss:$2 sm:$0xff]
  %2352 = vrot.lane.b32.xlu0 %v2350, 16
  %v2353 = vpop.permute.xlu0 %2352
  %2355 = vst.msk [vmem:[#allocation2 + $0x37] sm:$0xff] %vm2209, %v2353
  %s2356 = scalar_lea.vmem [#allocation7], 221
  %v2357 = vld [vmem:[%s2356] ss:$2 sm:$0xff]
  %2359 = vrot.lane.b32.xlu0 %v2357, 8
  %v2360 = vpop.permute.xlu0 %2359
  %2362 = vst.msk [vmem:[#allocation2 + $0x3f] sm:$0xff] %vm2217, %v2360
  %s2363 = scalar_lea.vmem [#allocation7], 222
  %v2364 = vld [vmem:[%s2363] ss:$2 sm:$0xff]
  %2365 = vst.msk [vmem:[#allocation2 + $0x40] sm:$0xff] %vm2127, %v2364
  %s2366 = scalar_lea.vmem [#allocation7], 238
  %v2367 = vld [vmem:[%s2366] ss:$2 sm:$0xff]
  %2369 = vrot.lane.b32.xlu0 %v2367, 24
  %v2370 = vpop.permute.xlu0 %2369
  %2372 = vst.msk [vmem:[#allocation2 + $0x3f] sm:$0xff] %vm2201, %v2370
  %s2373 = scalar_lea.vmem [#allocation7], 239
  %v2374 = vld [vmem:[%s2373] ss:$2 sm:$0xff]
  %2376 = vrot.lane.b32.xlu0 %v2374, 16
  %v2377 = vpop.permute.xlu0 %2376
  %2379 = vst.msk [vmem:[#allocation2 + $0x40] sm:$0xff] %vm2209, %v2377
  %s2380 = scalar_lea.vmem [#allocation7], 255
  %v2381 = vld [vmem:[%s2380] ss:$2 sm:$0xff]
  %2383 = vrot.lane.b32.xlu0 %v2381, 8
  %v2384 = vpop.permute.xlu0 %2383
  %2386 = vst.msk [vmem:[#allocation2 + $0x48] sm:$0xff] %vm2217, %v2384
  %s2387 = scalar_lea.vmem [#allocation7], 256
  %v2388 = vld [vmem:[%s2387] ss:$2 sm:$0xff]
  %2389 = vst.msk [vmem:[#allocation2 + $0x49] sm:$0xff] %vm2127, %v2388
  %s2390 = scalar_lea.vmem [#allocation7], 272
  %v2391 = vld [vmem:[%s2390] ss:$2 sm:$0xff]
  %2393 = vrot.lane.b32.xlu0 %v2391, 24
  %v2394 = vpop.permute.xlu0 %2393
  %2396 = vst.msk [vmem:[#allocation2 + $0x51] sm:$0xff] %vm2201, %v2394
  %s2397 = scalar_lea.vmem [#allocation7], 273
  %v2398 = vld [vmem:[%s2397] ss:$2 sm:$0xff]
  %2400 = vrot.lane.b32.xlu0 %v2398, 16
  %v2401 = vpop.permute.xlu0 %2400
  %2403 = vst.msk [vmem:[#allocation2 + $0x52] sm:$0xff] %vm2209, %v2401
  %s2404 = scalar_lea.vmem [#allocation7], 289
  %v2405 = vld [vmem:[%s2404] ss:$2 sm:$0xff]
  %2407 = vrot.lane.b32.xlu0 %v2405, 8
  %v2408 = vpop.permute.xlu0 %2407
  %2410 = vst.msk [vmem:[#allocation2 + $0x5a] sm:$0xff] %vm2217, %v2408
  %s2411 = scalar_lea.vmem [#allocation7], 290
  %v2412 = vld [vmem:[%s2411] ss:$2 sm:$0xff]
  %2413 = vst.msk [vmem:[#allocation2 + $0x5b] sm:$0xff] %vm2127, %v2412
  %s2414 = scalar_lea.vmem [#allocation7], 306
  %v2415 = vld [vmem:[%s2414] ss:$2 sm:$0xff]
  %2417 = vrot.lane.b32.xlu0 %v2415, 24
  %v2418 = vpop.permute.xlu0 %2417
  %2420 = vst.msk [vmem:[#allocation2 + $0x5a] sm:$0xff] %vm2201, %v2418
  %s2421 = scalar_lea.vmem [#allocation7], 307
  %v2422 = vld [vmem:[%s2421] ss:$2 sm:$0xff]
  %2424 = vrot.lane.b32.xlu0 %v2422, 16
  %v2425 = vpop.permute.xlu0 %2424
  %2427 = vst.msk [vmem:[#allocation2 + $0x5b] sm:$0xff] %vm2209, %v2425
  %s2428 = scalar_lea.vmem [#allocation7], 323
  %v2429 = vld [vmem:[%s2428] ss:$2 sm:$0xff]
  %2431 = vrot.lane.b32.xlu0 %v2429, 8
  %v2432 = vpop.permute.xlu0 %2431
  %2434 = vst.msk [vmem:[#allocation2 + $0x63] sm:$0xff] %vm2217, %v2432
  %s2435 = scalar_lea.vmem [#allocation7], 324
  %v2436 = vld [vmem:[%s2435] ss:$2 sm:$0xff]
  %2437 = vst.msk [vmem:[#allocation2 + $0x64] sm:$0xff] %vm2127, %v2436
  %s2438 = scalar_lea.vmem [#allocation7], 340
  %v2439 = vld [vmem:[%s2438] ss:$2 sm:$0xff]
  %2441 = vrot.lane.b32.xlu0 %v2439, 24
  %v2442 = vpop.permute.xlu0 %2441
  %2444 = vst.msk [vmem:[#allocation2 + $0x63] sm:$0xff] %vm2201, %v2442
  %s2445 = scalar_lea.vmem [#allocation7], 341
  %v2446 = vld [vmem:[%s2445] ss:$2 sm:$0xff]
  %2448 = vrot.lane.b32.xlu0 %v2446, 16
  %v2449 = vpop.permute.xlu0 %2448
  %2451 = vst.msk [vmem:[#allocation2 + $0x64] sm:$0xff] %vm2209, %v2449
  %s2452 = scalar_lea.vmem [#allocation7], 357
  %v2453 = vld [vmem:[%s2452] ss:$2 sm:$0xff]
  %2455 = vrot.lane.b32.xlu0 %v2453, 8
  %v2456 = vpop.permute.xlu0 %2455
  %2458 = vst.msk [vmem:[#allocation2 + $0x6c] sm:$0xff] %vm2217, %v2456
  %s2459 = scalar_lea.vmem [#allocation7], 358
  %v2460 = vld [vmem:[%s2459] ss:$2 sm:$0xff]
  %2461 = vst.msk [vmem:[#allocation2 + $0x6d] sm:$0xff] %vm2127, %v2460
  %s2462 = scalar_lea.vmem [#allocation7], 374
  %v2463 = vld [vmem:[%s2462] ss:$2 sm:$0xff]
  %2465 = vrot.lane.b32.xlu0 %v2463, 24
  %v2466 = vpop.permute.xlu0 %2465
  %2468 = vst.msk [vmem:[#allocation2 + $0x6c] sm:$0xff] %vm2201, %v2466
  %s2469 = scalar_lea.vmem [#allocation7], 375
  %v2470 = vld [vmem:[%s2469] ss:$2 sm:$0xff]
  %2472 = vrot.lane.b32.xlu0 %v2470, 16
  %v2473 = vpop.permute.xlu0 %2472
  %2475 = vst.msk [vmem:[#allocation2 + $0x6d] sm:$0xff] %vm2209, %v2473
  %s2476 = scalar_lea.vmem [#allocation7], 391
  %v2477 = vld [vmem:[%s2476] ss:$2 sm:$0xff]
  %2479 = vrot.lane.b32.xlu0 %v2477, 8
  %v2480 = vpop.permute.xlu0 %2479
  %2482 = vst.msk [vmem:[#allocation2 + $0x75] sm:$0xff] %vm2217, %v2480
  %s2483 = scalar_lea.vmem [#allocation7], 392
  %v2484 = vld [vmem:[%s2483] ss:$2 sm:$0xff]
  %2485 = vst.msk [vmem:[#allocation2 + $0x76] sm:$0xff] %vm2127, %v2484
  %s2486 = scalar_lea.vmem [#allocation7], 408
  %v2487 = vld [vmem:[%s2486] ss:$2 sm:$0xff]
  %2489 = vrot.lane.b32.xlu0 %v2487, 24
  %v2490 = vpop.permute.xlu0 %2489
  %2492 = vst.msk [vmem:[#allocation2 + $0x75] sm:$0xff] %vm2201, %v2490
  %s2493 = scalar_lea.vmem [#allocation7], 409
  %v2494 = vld [vmem:[%s2493] ss:$2 sm:$0xff]
  %2496 = vrot.lane.b32.xlu0 %v2494, 16
  %v2497 = vpop.permute.xlu0 %2496
  %2499 = vst.msk [vmem:[#allocation2 + $0x76] sm:$0xff] %vm2209, %v2497
  %s2500 = scalar_lea.vmem [#allocation7], 425
  %v2501 = vld [vmem:[%s2500] ss:$2 sm:$0xff]
  %2503 = vrot.lane.b32.xlu0 %v2501, 8
  %v2504 = vpop.permute.xlu0 %2503
  %2506 = vst.msk [vmem:[#allocation2 + $0x7e] sm:$0xff] %vm2217, %v2504
  %s2507 = scalar_lea.vmem [#allocation7], 426
  %v2508 = vld [vmem:[%s2507] ss:$2 sm:$0xff]
  %2509 = vst.msk [vmem:[#allocation2 + $0x7f] sm:$0xff] %vm2127, %v2508
  %s2510 = scalar_lea.vmem [#allocation7], 442
  %v2511 = vld [vmem:[%s2510] ss:$2 sm:$0xff]
  %2513 = vrot.lane.b32.xlu0 %v2511, 24
  %v2514 = vpop.permute.xlu0 %2513
  %2516 = vst.msk [vmem:[#allocation2 + $0x7e] sm:$0xff] %vm2201, %v2514
  %s2517 = scalar_lea.vmem [#allocation7], 443
  %v2518 = vld [vmem:[%s2517] ss:$2 sm:$0xff]
  %2520 = vrot.lane.b32.xlu0 %v2518, 16
  %v2521 = vpop.permute.xlu0 %2520
  %2523 = vst.msk [vmem:[#allocation2 + $0x7f] sm:$0xff] %vm2209, %v2521
  %s2524 = scalar_lea.vmem [#allocation7], 459
  %v2525 = vld [vmem:[%s2524] ss:$2 sm:$0xff]
  %2527 = vrot.lane.b32.xlu0 %v2525, 8
  %v2528 = vpop.permute.xlu0 %2527
  %2530 = vst.msk [vmem:[#allocation2 + $0x87] sm:$0xff] %vm2217, %v2528
  %s2531 = scalar_lea.vmem [#allocation7], 460
  %v2532 = vld [vmem:[%s2531] ss:$2 sm:$0xff]
  %2533 = vst.msk [vmem:[#allocation2 + $0x88] sm:$0xff] %vm2127, %v2532
  %s2534 = scalar_lea.vmem [#allocation7], 476
  %v2535 = vld [vmem:[%s2534] ss:$2 sm:$0xff]
  %2537 = vrot.lane.b32.xlu0 %v2535, 24
  %v2538 = vpop.permute.xlu0 %2537
  %2540 = vst.msk [vmem:[#allocation2 + $0x87] sm:$0xff] %vm2201, %v2538
  %s2541 = scalar_lea.vmem [#allocation7], 477
  %v2542 = vld [vmem:[%s2541] ss:$2 sm:$0xff]
  %2544 = vrot.lane.b32.xlu0 %v2542, 16
  %v2545 = vpop.permute.xlu0 %2544
  %2547 = vst.msk [vmem:[#allocation2 + $0x88] sm:$0xff] %vm2209, %v2545
  %s2548 = scalar_lea.vmem [#allocation7], 493
  %v2549 = vld [vmem:[%s2548] ss:$2 sm:$0xff]
  %2551 = vrot.lane.b32.xlu0 %v2549, 8
  %v2552 = vpop.permute.xlu0 %2551
  %2554 = vst.msk [vmem:[#allocation2 + $0x90] sm:$0xff] %vm2217, %v2552
  %s2555 = scalar_lea.vmem [#allocation7], 494
  %v2556 = vld [vmem:[%s2555] ss:$2 sm:$0xff]
  %2557 = vst.msk [vmem:[#allocation2 + $0x91] sm:$0xff] %vm2127, %v2556
  %s2558 = scalar_lea.vmem [#allocation7], 510
  %v2559 = vld [vmem:[%s2558] ss:$2 sm:$0xff]
  %2561 = vrot.lane.b32.xlu0 %v2559, 24
  %v2562 = vpop.permute.xlu0 %2561
  %2564 = vst.msk [vmem:[#allocation2 + $0x90] sm:$0xff] %vm2201, %v2562
  %s2565 = scalar_lea.vmem [#allocation7], 511
  %v2566 = vld [vmem:[%s2565] ss:$2 sm:$0xff]
  %2568 = vrot.lane.b32.xlu0 %v2566, 16
  %v2569 = vpop.permute.xlu0 %2568
  %2571 = vst.msk [vmem:[#allocation2 + $0x91] sm:$0xff] %vm2209, %v2569
  %s2572 = scalar_lea.vmem [#allocation7], 527
  %v2573 = vld [vmem:[%s2572] ss:$2 sm:$0xff]
  %2575 = vrot.lane.b32.xlu0 %v2573, 8
  %v2576 = vpop.permute.xlu0 %2575
  %2578 = vst.msk [vmem:[#allocation2 + $0x99] sm:$0xff] %vm2217, %v2576
  %s2579 = scalar_lea.vmem [#allocation7], 528
  %v2580 = vld [vmem:[%s2579] ss:$2 sm:$0xff]
  %2581 = vst.msk [vmem:[#allocation2 + $0x9a] sm:$0xff] %vm2127, %v2580
  %v2582 = vld [vmem:[#allocation2] sm:$0xff]
  %v2583 = vld [vmem:[#allocation2 + $0x8] sm:$0xff]
  %v2584 = vld [vmem:[#allocation2 + $0x10] sm:$0xff]
  %v2585 = vld [vmem:[#allocation2 + $0x18] sm:$0xff]
  %v2586 = vld [vmem:[#allocation2 + $0x20] sm:$0xff]
  %v2587 = vld [vmem:[#allocation2 + $0x28] sm:$0xff]
  %v2588 = vld [vmem:[#allocation2 + $0x30] sm:$0xff]
  %v2589 = vld [vmem:[#allocation2 + $0x38] sm:$0xff]
  %v2590 = vld [vmem:[#allocation2 + $0x40] sm:$0xff]
  %2591 = vst.msk [vmem:[#allocation5] sm:$0xff] %vm41, %v2582
  %2592 = vst.msk [vmem:[#allocation5 + $0x8] sm:$0xff] %vm41, %v2583
  %2593 = vst.msk [vmem:[#allocation5 + $0x10] sm:$0xff] %vm41, %v2584
  %2594 = vst.msk [vmem:[#allocation5 + $0x18] sm:$0xff] %vm41, %v2585
  %2595 = vst.msk [vmem:[#allocation5 + $0x20] sm:$0xff] %vm41, %v2586
  %2596 = vst.msk [vmem:[#allocation5 + $0x28] sm:$0xff] %vm41, %v2587
  %2597 = vst.msk [vmem:[#allocation5 + $0x30] sm:$0xff] %vm41, %v2588
  %2598 = vst.msk [vmem:[#allocation5 + $0x38] sm:$0xff] %vm41, %v2589
  %2599 = vst.msk [vmem:[#allocation5 + $0x40] sm:$0xff] %vm41, %v2590
  %v2600 = vld [vmem:[#allocation2 + $0x51] sm:$0xff]
  %v2601 = vld [vmem:[#allocation2 + $0x59] sm:$0xff]
  %v2602 = vld [vmem:[#allocation2 + $0x61] sm:$0xff]
  %v2603 = vld [vmem:[#allocation2 + $0x69] sm:$0xff]
  %v2604 = vld [vmem:[#allocation2 + $0x71] sm:$0xff]
  %v2605 = vld [vmem:[#allocation2 + $0x79] sm:$0xff]
  %v2606 = vld [vmem:[#allocation2 + $0x81] sm:$0xff]
  %v2607 = vld [vmem:[#allocation2 + $0x89] sm:$0xff]
  %v2608 = vld [vmem:[#allocation2 + $0x91] sm:$0xff]
  %2609 = vst.msk [vmem:[#allocation5 + $0x48] sm:$0xff] %vm41, %v2600
  %2610 = vst.msk [vmem:[#allocation5 + $0x50] sm:$0xff] %vm41, %v2601
  %2611 = vst.msk [vmem:[#allocation5 + $0x58] sm:$0xff] %vm41, %v2602
  %2612 = vst.msk [vmem:[#allocation5 + $0x60] sm:$0xff] %vm41, %v2603
  %2613 = vst.msk [vmem:[#allocation5 + $0x68] sm:$0xff] %vm41, %v2604
  %2614 = vst.msk [vmem:[#allocation5 + $0x70] sm:$0xff] %vm41, %v2605
  %2615 = vst.msk [vmem:[#allocation5 + $0x78] sm:$0xff] %vm41, %v2606
  %2616 = vst.msk [vmem:[#allocation5 + $0x80] sm:$0xff] %vm41, %v2607
  %2617 = vst.msk [vmem:[#allocation5 + $0x88] sm:$0xff] %vm41, %v2608
  %v2618 = vld [vmem:[#allocation2 + $0x1] sm:$0xff]
  %v2619 = vld [vmem:[#allocation2 + $0x9] sm:$0xff]
  %v2620 = vld [vmem:[#allocation2 + $0x11] sm:$0xff]
  %v2621 = vld [vmem:[#allocation2 + $0x19] sm:$0xff]
  %v2622 = vld [vmem:[#allocation2 + $0x21] sm:$0xff]
  %v2623 = vld [vmem:[#allocation2 + $0x29] sm:$0xff]
  %v2624 = vld [vmem:[#allocation2 + $0x31] sm:$0xff]
  %v2625 = vld [vmem:[#allocation2 + $0x39] sm:$0xff]
  %v2626 = vld [vmem:[#allocation2 + $0x41] sm:$0xff]
  %2636 = vrot.lane.b32.xlu0 %v2618, 32
  %v2637 = vpop.permute.xlu0 %2636
  %2638 = vrot.lane.b32.xlu0 %v2619, 32
  %v2639 = vpop.permute.xlu0 %2638
  %2640 = vrot.lane.b32.xlu0 %v2620, 32
  %v2641 = vpop.permute.xlu0 %2640
  %2642 = vrot.lane.b32.xlu0 %v2621, 32
  %v2643 = vpop.permute.xlu0 %2642
  %2644 = vrot.lane.b32.xlu0 %v2622, 32
  %v2645 = vpop.permute.xlu0 %2644
  %2646 = vrot.lane.b32.xlu0 %v2623, 32
  %v2647 = vpop.permute.xlu0 %2646
  %2648 = vrot.lane.b32.xlu0 %v2624, 32
  %v2649 = vpop.permute.xlu0 %2648
  %2650 = vrot.lane.b32.xlu0 %v2625, 32
  %v2651 = vpop.permute.xlu0 %2650
  %2652 = vrot.lane.b32.xlu0 %v2626, 32
  %v2653 = vpop.permute.xlu0 %2652
  %2663 = vst.msk [vmem:[#allocation5] sm:$0xff] %vm377, %v2637
  %2664 = vst.msk [vmem:[#allocation5 + $0x8] sm:$0xff] %vm377, %v2639
  %2665 = vst.msk [vmem:[#allocation5 + $0x10] sm:$0xff] %vm377, %v2641
  %2666 = vst.msk [vmem:[#allocation5 + $0x18] sm:$0xff] %vm377, %v2643
  %2667 = vst.msk [vmem:[#allocation5 + $0x20] sm:$0xff] %vm377, %v2645
  %2668 = vst.msk [vmem:[#allocation5 + $0x28] sm:$0xff] %vm377, %v2647
  %2669 = vst.msk [vmem:[#allocation5 + $0x30] sm:$0xff] %vm377, %v2649
  %2670 = vst.msk [vmem:[#allocation5 + $0x38] sm:$0xff] %vm377, %v2651
  %2671 = vst.msk [vmem:[#allocation5 + $0x40] sm:$0xff] %vm377, %v2653
  %v2672 = vld [vmem:[#allocation2 + $0x52] sm:$0xff]
  %v2673 = vld [vmem:[#allocation2 + $0x5a] sm:$0xff]
  %v2674 = vld [vmem:[#allocation2 + $0x62] sm:$0xff]
  %v2675 = vld [vmem:[#allocation2 + $0x6a] sm:$0xff]
  %v2676 = vld [vmem:[#allocation2 + $0x72] sm:$0xff]
  %v2677 = vld [vmem:[#allocation2 + $0x7a] sm:$0xff]
  %v2678 = vld [vmem:[#allocation2 + $0x82] sm:$0xff]
  %v2679 = vld [vmem:[#allocation2 + $0x8a] sm:$0xff]
  %v2680 = vld [vmem:[#allocation2 + $0x92] sm:$0xff]
  %2690 = vrot.lane.b32.xlu0 %v2672, 32
  %v2691 = vpop.permute.xlu0 %2690
  %2692 = vrot.lane.b32.xlu0 %v2673, 32
  %v2693 = vpop.permute.xlu0 %2692
  %2694 = vrot.lane.b32.xlu0 %v2674, 32
  %v2695 = vpop.permute.xlu0 %2694
  %2696 = vrot.lane.b32.xlu0 %v2675, 32
  %v2697 = vpop.permute.xlu0 %2696
  %2698 = vrot.lane.b32.xlu0 %v2676, 32
  %v2699 = vpop.permute.xlu0 %2698
  %2700 = vrot.lane.b32.xlu0 %v2677, 32
  %v2701 = vpop.permute.xlu0 %2700
  %2702 = vrot.lane.b32.xlu0 %v2678, 32
  %v2703 = vpop.permute.xlu0 %2702
  %2704 = vrot.lane.b32.xlu0 %v2679, 32
  %v2705 = vpop.permute.xlu0 %2704
  %2706 = vrot.lane.b32.xlu0 %v2680, 32
  %v2707 = vpop.permute.xlu0 %2706
  %2717 = vst.msk [vmem:[#allocation5 + $0x48] sm:$0xff] %vm377, %v2691
  %2718 = vst.msk [vmem:[#allocation5 + $0x50] sm:$0xff] %vm377, %v2693
  %2719 = vst.msk [vmem:[#allocation5 + $0x58] sm:$0xff] %vm377, %v2695
  %2720 = vst.msk [vmem:[#allocation5 + $0x60] sm:$0xff] %vm377, %v2697
  %2721 = vst.msk [vmem:[#allocation5 + $0x68] sm:$0xff] %vm377, %v2699
  %2722 = vst.msk [vmem:[#allocation5 + $0x70] sm:$0xff] %vm377, %v2701
  %2723 = vst.msk [vmem:[#allocation5 + $0x78] sm:$0xff] %vm377, %v2703
  %2724 = vst.msk [vmem:[#allocation5 + $0x80] sm:$0xff] %vm377, %v2705
  %2725 = vst.msk [vmem:[#allocation5 + $0x88] sm:$0xff] %vm377, %v2707
  %v2726 = vld [vmem:[#allocation2 + $0x9] sm:$0xff]
  %v2727 = vld [vmem:[#allocation2 + $0x11] sm:$0xff]
  %v2728 = vld [vmem:[#allocation2 + $0x19] sm:$0xff]
  %v2729 = vld [vmem:[#allocation2 + $0x21] sm:$0xff]
  %v2730 = vld [vmem:[#allocation2 + $0x29] sm:$0xff]
  %v2731 = vld [vmem:[#allocation2 + $0x31] sm:$0xff]
  %v2732 = vld [vmem:[#allocation2 + $0x39] sm:$0xff]
  %v2733 = vld [vmem:[#allocation2 + $0x41] sm:$0xff]
  %v2734 = vld [vmem:[#allocation2 + $0x49] sm:$0xff]
  %2744 = vrot.lane.b32.xlu0 %v2726, 64
  %v2745 = vpop.permute.xlu0 %2744
  %2746 = vrot.lane.b32.xlu0 %v2727, 64
  %v2747 = vpop.permute.xlu0 %2746
  %2748 = vrot.lane.b32.xlu0 %v2728, 64
  %v2749 = vpop.permute.xlu0 %2748
  %2750 = vrot.lane.b32.xlu0 %v2729, 64
  %v2751 = vpop.permute.xlu0 %2750
  %2752 = vrot.lane.b32.xlu0 %v2730, 64
  %v2753 = vpop.permute.xlu0 %2752
  %2754 = vrot.lane.b32.xlu0 %v2731, 64
  %v2755 = vpop.permute.xlu0 %2754
  %2756 = vrot.lane.b32.xlu0 %v2732, 64
  %v2757 = vpop.permute.xlu0 %2756
  %2758 = vrot.lane.b32.xlu0 %v2733, 64
  %v2759 = vpop.permute.xlu0 %2758
  %2760 = vrot.lane.b32.xlu0 %v2734, 64
  %v2761 = vpop.permute.xlu0 %2760
  %2771 = vst.msk [vmem:[#allocation5] sm:$0xff] %vm786, %v2745
  %2772 = vst.msk [vmem:[#allocation5 + $0x8] sm:$0xff] %vm786, %v2747
  %2773 = vst.msk [vmem:[#allocation5 + $0x10] sm:$0xff] %vm786, %v2749
  %2774 = vst.msk [vmem:[#allocation5 + $0x18] sm:$0xff] %vm786, %v2751
  %2775 = vst.msk [vmem:[#allocation5 + $0x20] sm:$0xff] %vm786, %v2753
  %2776 = vst.msk [vmem:[#allocation5 + $0x28] sm:$0xff] %vm786, %v2755
  %2777 = vst.msk [vmem:[#allocation5 + $0x30] sm:$0xff] %vm786, %v2757
  %2778 = vst.msk [vmem:[#allocation5 + $0x38] sm:$0xff] %vm786, %v2759
  %2779 = vst.msk [vmem:[#allocation5 + $0x40] sm:$0xff] %vm786, %v2761
  %v2780 = vld [vmem:[#allocation2 + $0x5a] sm:$0xff]
  %v2781 = vld [vmem:[#allocation2 + $0x62] sm:$0xff]
  %v2782 = vld [vmem:[#allocation2 + $0x6a] sm:$0xff]
  %v2783 = vld [vmem:[#allocation2 + $0x72] sm:$0xff]
  %v2784 = vld [vmem:[#allocation2 + $0x7a] sm:$0xff]
  %v2785 = vld [vmem:[#allocation2 + $0x82] sm:$0xff]
  %v2786 = vld [vmem:[#allocation2 + $0x8a] sm:$0xff]
  %v2787 = vld [vmem:[#allocation2 + $0x92] sm:$0xff]
  %v2788 = vld [vmem:[#allocation2 + $0x9a] sm:$0xff]
  %2798 = vrot.lane.b32.xlu0 %v2780, 64
  %v2799 = vpop.permute.xlu0 %2798
  %2800 = vrot.lane.b32.xlu0 %v2781, 64
  %v2801 = vpop.permute.xlu0 %2800
  %2802 = vrot.lane.b32.xlu0 %v2782, 64
  %v2803 = vpop.permute.xlu0 %2802
  %2804 = vrot.lane.b32.xlu0 %v2783, 64
  %v2805 = vpop.permute.xlu0 %2804
  %2806 = vrot.lane.b32.xlu0 %v2784, 64
  %v2807 = vpop.permute.xlu0 %2806
  %2808 = vrot.lane.b32.xlu0 %v2785, 64
  %v2809 = vpop.permute.xlu0 %2808
  %2810 = vrot.lane.b32.xlu0 %v2786, 64
  %v2811 = vpop.permute.xlu0 %2810
  %2812 = vrot.lane.b32.xlu0 %v2787, 64
  %v2813 = vpop.permute.xlu0 %2812
  %2814 = vrot.lane.b32.xlu0 %v2788, 64
  %v2815 = vpop.permute.xlu0 %2814
  %2825 = vst.msk [vmem:[#allocation5 + $0x48] sm:$0xff] %vm786, %v2799
  %2826 = vst.msk [vmem:[#allocation5 + $0x50] sm:$0xff] %vm786, %v2801
  %2827 = vst.msk [vmem:[#allocation5 + $0x58] sm:$0xff] %vm786, %v2803
  %2828 = vst.msk [vmem:[#allocation5 + $0x60] sm:$0xff] %vm786, %v2805
  %2829 = vst.msk [vmem:[#allocation5 + $0x68] sm:$0xff] %vm786, %v2807
  %2830 = vst.msk [vmem:[#allocation5 + $0x70] sm:$0xff] %vm786, %v2809
  %2831 = vst.msk [vmem:[#allocation5 + $0x78] sm:$0xff] %vm786, %v2811
  %2832 = vst.msk [vmem:[#allocation5 + $0x80] sm:$0xff] %vm786, %v2813
  %2833 = vst.msk [vmem:[#allocation5 + $0x88] sm:$0xff] %vm786, %v2815
  %v2834 = vld [vmem:[#allocation2 + $0xa] sm:$0xff]
  %v2835 = vld [vmem:[#allocation2 + $0x12] sm:$0xff]
  %v2836 = vld [vmem:[#allocation2 + $0x1a] sm:$0xff]
  %v2837 = vld [vmem:[#allocation2 + $0x22] sm:$0xff]
  %v2838 = vld [vmem:[#allocation2 + $0x2a] sm:$0xff]
  %v2839 = vld [vmem:[#allocation2 + $0x32] sm:$0xff]
  %v2840 = vld [vmem:[#allocation2 + $0x3a] sm:$0xff]
  %v2841 = vld [vmem:[#allocation2 + $0x42] sm:$0xff]
  %v2842 = vld [vmem:[#allocation2 + $0x4a] sm:$0xff]
  %2852 = vrot.lane.b32.xlu0 %v2834, 96
  %v2853 = vpop.permute.xlu0 %2852
  %2854 = vrot.lane.b32.xlu0 %v2835, 96
  %v2855 = vpop.permute.xlu0 %2854
  %2856 = vrot.lane.b32.xlu0 %v2836, 96
  %v2857 = vpop.permute.xlu0 %2856
  %2858 = vrot.lane.b32.xlu0 %v2837, 96
  %v2859 = vpop.permute.xlu0 %2858
  %2860 = vrot.lane.b32.xlu0 %v2838, 96
  %v2861 = vpop.permute.xlu0 %2860
  %2862 = vrot.lane.b32.xlu0 %v2839, 96
  %v2863 = vpop.permute.xlu0 %2862
  %2864 = vrot.lane.b32.xlu0 %v2840, 96
  %v2865 = vpop.permute.xlu0 %2864
  %2866 = vrot.lane.b32.xlu0 %v2841, 96
  %v2867 = vpop.permute.xlu0 %2866
  %2868 = vrot.lane.b32.xlu0 %v2842, 96
  %v2869 = vpop.permute.xlu0 %2868
  %2879 = vst.msk [vmem:[#allocation5] sm:$0xff] %vm1195, %v2853
  %2880 = vst.msk [vmem:[#allocation5 + $0x8] sm:$0xff] %vm1195, %v2855
  %2881 = vst.msk [vmem:[#allocation5 + $0x10] sm:$0xff] %vm1195, %v2857
  %2882 = vst.msk [vmem:[#allocation5 + $0x18] sm:$0xff] %vm1195, %v2859
  %2883 = vst.msk [vmem:[#allocation5 + $0x20] sm:$0xff] %vm1195, %v2861
  %2884 = vst.msk [vmem:[#allocation5 + $0x28] sm:$0xff] %vm1195, %v2863
  %2885 = vst.msk [vmem:[#allocation5 + $0x30] sm:$0xff] %vm1195, %v2865
  %2886 = vst.msk [vmem:[#allocation5 + $0x38] sm:$0xff] %vm1195, %v2867
  %2887 = vst.msk [vmem:[#allocation5 + $0x40] sm:$0xff] %vm1195, %v2869
  %v2888 = vld [vmem:[#allocation2 + $0x5b] sm:$0xff]
  %v2889 = vld [vmem:[#allocation2 + $0x63] sm:$0xff]
  %v2890 = vld [vmem:[#allocation2 + $0x6b] sm:$0xff]
  %v2891 = vld [vmem:[#allocation2 + $0x73] sm:$0xff]
  %v2892 = vld [vmem:[#allocation2 + $0x7b] sm:$0xff]
  %v2893 = vld [vmem:[#allocation2 + $0x83] sm:$0xff]
  %v2894 = vld [vmem:[#allocation2 + $0x8b] sm:$0xff]
  %v2895 = vld [vmem:[#allocation2 + $0x93] sm:$0xff]
  %v2896 = vld [vmem:[#allocation2 + $0x9b] sm:$0xff]
  %2906 = vrot.lane.b32.xlu0 %v2888, 96
  %v2907 = vpop.permute.xlu0 %2906
  %2908 = vrot.lane.b32.xlu0 %v2889, 96
  %v2909 = vpop.permute.xlu0 %2908
  %2910 = vrot.lane.b32.xlu0 %v2890, 96
  %v2911 = vpop.permute.xlu0 %2910
  %2912 = vrot.lane.b32.xlu0 %v2891, 96
  %v2913 = vpop.permute.xlu0 %2912
  %2914 = vrot.lane.b32.xlu0 %v2892, 96
  %v2915 = vpop.permute.xlu0 %2914
  %2916 = vrot.lane.b32.xlu0 %v2893, 96
  %v2917 = vpop.permute.xlu0 %2916
  %2918 = vrot.lane.b32.xlu0 %v2894, 96
  %v2919 = vpop.permute.xlu0 %2918
  %2920 = vrot.lane.b32.xlu0 %v2895, 96
  %v2921 = vpop.permute.xlu0 %2920
  %2922 = vrot.lane.b32.xlu0 %v2896, 96
  %v2923 = vpop.permute.xlu0 %2922
  %2933 = vst.msk [vmem:[#allocation5 + $0x48] sm:$0xff] %vm1195, %v2907
  %2934 = vst.msk [vmem:[#allocation5 + $0x50] sm:$0xff] %vm1195, %v2909
  %2935 = vst.msk [vmem:[#allocation5 + $0x58] sm:$0xff] %vm1195, %v2911
  %2936 = vst.msk [vmem:[#allocation5 + $0x60] sm:$0xff] %vm1195, %v2913
  %2937 = vst.msk [vmem:[#allocation5 + $0x68] sm:$0xff] %vm1195, %v2915
  %2938 = vst.msk [vmem:[#allocation5 + $0x70] sm:$0xff] %vm1195, %v2917
  %2939 = vst.msk [vmem:[#allocation5 + $0x78] sm:$0xff] %vm1195, %v2919
  %2940 = vst.msk [vmem:[#allocation5 + $0x80] sm:$0xff] %vm1195, %v2921
  %2941 = vst.msk [vmem:[#allocation5 + $0x88] sm:$0xff] %vm1195, %v2923
  %v2942 = vld [vmem:[#allocation5] sm:$0xff]
  %v2943 = vld [vmem:[#allocation5 + $0x8] sm:$0xff]
  %v2944 = vld [vmem:[#allocation5 + $0x10] sm:$0xff]
  %v2945 = vld [vmem:[#allocation5 + $0x18] sm:$0xff]
  %v2946 = vld [vmem:[#allocation5 + $0x20] sm:$0xff]
  %v2947 = vld [vmem:[#allocation5 + $0x28] sm:$0xff]
  %v2948 = vld [vmem:[#allocation5 + $0x30] sm:$0xff]
  %v2949 = vld [vmem:[#allocation5 + $0x38] sm:$0xff]
  %v2950 = vld [vmem:[#allocation5 + $0x40] sm:$0xff]
  %v2951 = vld [vmem:[#allocation5 + $0x48] sm:$0xff]
  %v2952 = vld [vmem:[#allocation5 + $0x50] sm:$0xff]
  %v2953 = vld [vmem:[#allocation5 + $0x58] sm:$0xff]
  %v2954 = vld [vmem:[#allocation5 + $0x60] sm:$0xff]
  %v2955 = vld [vmem:[#allocation5 + $0x68] sm:$0xff]
  %v2956 = vld [vmem:[#allocation5 + $0x70] sm:$0xff]
  %v2957 = vld [vmem:[#allocation5 + $0x78] sm:$0xff]
  %v2958 = vld [vmem:[#allocation5 + $0x80] sm:$0xff]
  %v2959 = vld [vmem:[#allocation5 + $0x88] sm:$0xff]
  %v2960 = vld [vmem:[%s2] sm:$0xff]
  %v2961 = vld [vmem:[%s2 + $0x8] sm:$0xff]
  %v2962 = vld [vmem:[%s2 + $0x10] sm:$0xff]
  %v2963 = vld [vmem:[%s2 + $0x18] sm:$0xff]
  %v2964 = vld [vmem:[%s2 + $0x20] sm:$0xff]
  %v2965 = vld [vmem:[%s2 + $0x28] sm:$0xff]
  %v2966 = vld [vmem:[%s2 + $0x30] sm:$0xff]
  %v2967 = vld [vmem:[%s2 + $0x38] sm:$0xff]
  %v2968 = vld [vmem:[%s2 + $0x40] sm:$0xff]
  %v2969 = vld [vmem:[%s2 + $0x48] sm:$0xff]
  %v2970 = vld [vmem:[%s2 + $0x50] sm:$0xff]
  %v2971 = vld [vmem:[%s2 + $0x58] sm:$0xff]
  %v2972 = vld [vmem:[%s2 + $0x60] sm:$0xff]
  %v2973 = vld [vmem:[%s2 + $0x68] sm:$0xff]
  %v2974 = vld [vmem:[%s2 + $0x70] sm:$0xff]
  %v2975 = vld [vmem:[%s2 + $0x78] sm:$0xff]
  %2976 = vmatprep.subr.mxu0 0.0
  %2977 = vmatpush1.msra.mxu0 %v2960
  %2978 = vmatprep.subr.mxu0 0.0
  %2979 = vmatpush1.msra.mxu0 %v2961
  %2980 = vmatprep.subr.mxu0 0.0
  %2981 = vmatpush1.msra.mxu0 %v2962
  %2982 = vmatprep.subr.mxu0 0.0
  %2983 = vmatpush1.msra.mxu0 %v2963
  %2984 = vmatprep.subr.mxu0 0.0
  %2985 = vmatpush1.msra.mxu0 %v2964
  %2986 = vmatprep.subr.mxu0 0.0
  %2987 = vmatpush1.msra.mxu0 %v2965
  %2988 = vmatprep.subr.mxu0 0.0
  %2989 = vmatpush1.msra.mxu0 %v2966
  %2990 = vmatprep.subr.mxu0 0.0
  %2991 = vmatpush1.msra.mxu0 %v2967
  %2992 = vmatprep.subr.mxu0 0.0
  %2993 = vmatpush1.msra.mxu0 %v2968
  %2994 = vmatprep.subr.mxu0 0.0
  %2995 = vmatpush1.msra.mxu0 %v2969
  %2996 = vmatprep.subr.mxu0 0.0
  %2997 = vmatpush1.msra.mxu0 %v2970
  %2998 = vmatprep.subr.mxu0 0.0
  %2999 = vmatpush1.msra.mxu0 %v2971
  %3000 = vmatprep.subr.mxu0 0.0
  %3001 = vmatpush1.msra.mxu0 %v2972
  %3002 = vmatprep.subr.mxu0 0.0
  %3003 = vmatpush1.msra.mxu0 %v2973
  %3004 = vmatprep.subr.mxu0 0.0
  %3005 = vmatpush1.msra.mxu0 %v2974
  %3006 = vmatprep.subr.mxu0 0.0
  %3007 = vmatpush1.msra.mxu0 %v2975
  %3008 = vmatprep.subr.mxu0 0.0
  %3009 = vmatpush1.msra.mxu0 0.0
  %3010 = vmatprep.subr.mxu0 0.0
  %3011 = vmatpush1.msra.mxu0 0.0
  %3012 = vmatprep.subr.mxu0 0.0
  %3013 = vmatpush1.msra.mxu0 0.0
  %3014 = vmatprep.subr.mxu0 0.0
  %3015 = vmatpush1.msra.mxu0 0.0
  %3016 = vmatprep.subr.mxu0 0.0
  %3017 = vmatpush1.msra.mxu0 0.0
  %3018 = vmatprep.subr.mxu0 0.0
  %3019 = vmatpush1.msra.mxu0 0.0
  %3020 = vmatprep.subr.mxu0 0.0
  %3021 = vmatpush1.msra.mxu0 0.0
  %3022 = vmatprep.subr.mxu0 0.0
  %3023 = vmatpush1.msra.mxu0 0.0
  %3024 = vmatprep.subr.mxu0 0.0
  %3025 = vmatpush1.msra.mxu0 0.0
  %3026 = vmatprep.subr.mxu0 0.0
  %3027 = vmatpush1.msra.mxu0 0.0
  %3028 = vmatprep.subr.mxu0 0.0
  %3029 = vmatpush1.msra.mxu0 0.0
  %3030 = vmatprep.subr.mxu0 0.0
  %3031 = vmatpush1.msra.mxu0 0.0
  %3032 = vmatprep.subr.mxu0 0.0
  %3033 = vmatpush1.msra.mxu0 0.0
  %3034 = vmatprep.subr.mxu0 0.0
  %3035 = vmatpush1.msra.mxu0 0.0
  %3036 = vmatprep.subr.mxu0 0.0
  %3037 = vmatpush1.msra.mxu0 0.0
  %3038 = vmatprep.subr.mxu0 0.0
  %3039 = vmatpush1.msra.mxu0 0.0
  %3040 = vmatprep.mubr.f32.mxu0 0.0
  %3041 = vmatmul.mubr.f32.gmra.mrb[0].mxu0 %v2942
  %v3042 = vpop.f32.mrb[0].mxu0
  %v3043 = vadd.f32 0.0, %v3042
  %v3044 = vpop.f32.mrb[0].mxu0
  %3045 = vmatprep.mubr.f32.mxu0 0.0
  %3046 = vmatmul.mubr.f32.gmra.mrb[0].mxu0 %v2943
  %v3047 = vpop.f32.mrb[0].mxu0
  %v3048 = vadd.f32 0.0, %v3047
  %v3049 = vpop.f32.mrb[0].mxu0
  %3050 = vmatprep.mubr.f32.mxu0 0.0
  %3051 = vmatmul.mubr.f32.gmra.mrb[0].mxu0 %v2944
  %v3052 = vpop.f32.mrb[0].mxu0
  %v3053 = vadd.f32 0.0, %v3052
  %v3054 = vpop.f32.mrb[0].mxu0
  %3055 = vmatprep.mubr.f32.mxu0 0.0
  %3056 = vmatmul.mubr.f32.gmra.mrb[0].mxu0 %v2945
  %v3057 = vpop.f32.mrb[0].mxu0
  %v3058 = vadd.f32 0.0, %v3057
  %v3059 = vpop.f32.mrb[0].mxu0
  %3060 = vmatprep.mubr.f32.mxu0 0.0
  %3061 = vmatmul.mubr.f32.gmra.mrb[0].mxu0 %v2946
  %v3062 = vpop.f32.mrb[0].mxu0
  %v3063 = vadd.f32 0.0, %v3062
  %v3064 = vpop.f32.mrb[0].mxu0
  %3065 = vmatprep.mubr.f32.mxu0 0.0
  %3066 = vmatmul.mubr.f32.gmra.mrb[0].mxu0 %v2947
  %v3067 = vpop.f32.mrb[0].mxu0
  %v3068 = vadd.f32 0.0, %v3067
  %v3069 = vpop.f32.mrb[0].mxu0
  %3070 = vmatprep.mubr.f32.mxu0 0.0
  %3071 = vmatmul.mubr.f32.gmra.mrb[0].mxu0 %v2948
  %v3072 = vpop.f32.mrb[0].mxu0
  %v3073 = vadd.f32 0.0, %v3072
  %v3074 = vpop.f32.mrb[0].mxu0
  %3075 = vmatprep.mubr.f32.mxu0 0.0
  %3076 = vmatmul.mubr.f32.gmra.mrb[0].mxu0 %v2949
  %v3077 = vpop.f32.mrb[0].mxu0
  %v3078 = vadd.f32 0.0, %v3077
  %v3079 = vpop.f32.mrb[0].mxu0
  %3080 = vmatprep.mubr.f32.mxu0 0.0
  %3081 = vmatmul.mubr.f32.gmra.mrb[0].mxu0 %v2950
  %v3082 = vpop.f32.mrb[0].mxu0
  %v3083 = vadd.f32 0.0, %v3082
  %v3084 = vpop.f32.mrb[0].mxu0
  %3085 = vmatprep.mubr.f32.mxu0 0.0
  %3086 = vmatmul.mubr.f32.gmra.mrb[0].mxu0 %v2951
  %v3087 = vpop.f32.mrb[0].mxu0
  %v3088 = vadd.f32 0.0, %v3087
  %v3089 = vpop.f32.mrb[0].mxu0
  %3090 = vmatprep.mubr.f32.mxu0 0.0
  %3091 = vmatmul.mubr.f32.gmra.mrb[0].mxu0 %v2952
  %v3092 = vpop.f32.mrb[0].mxu0
  %v3093 = vadd.f32 0.0, %v3092
  %v3094 = vpop.f32.mrb[0].mxu0
  %3095 = vmatprep.mubr.f32.mxu0 0.0
  %3096 = vmatmul.mubr.f32.gmra.mrb[0].mxu0 %v2953
  %v3097 = vpop.f32.mrb[0].mxu0
  %v3098 = vadd.f32 0.0, %v3097
  %v3099 = vpop.f32.mrb[0].mxu0
  %3100 = vmatprep.mubr.f32.mxu0 0.0
  %3101 = vmatmul.mubr.f32.gmra.mrb[0].mxu0 %v2954
  %v3102 = vpop.f32.mrb[0].mxu0
  %v3103 = vadd.f32 0.0, %v3102
  %v3104 = vpop.f32.mrb[0].mxu0
  %3105 = vmatprep.mubr.f32.mxu0 0.0
  %3106 = vmatmul.mubr.f32.gmra.mrb[0].mxu0 %v2955
  %v3107 = vpop.f32.mrb[0].mxu0
  %v3108 = vadd.f32 0.0, %v3107
  %v3109 = vpop.f32.mrb[0].mxu0
  %3110 = vmatprep.mubr.f32.mxu0 0.0
  %3111 = vmatmul.mubr.f32.gmra.mrb[0].mxu0 %v2956
  %v3112 = vpop.f32.mrb[0].mxu0
  %v3113 = vadd.f32 0.0, %v3112
  %v3114 = vpop.f32.mrb[0].mxu0
  %3115 = vmatprep.mubr.f32.mxu0 0.0
  %3116 = vmatmul.mubr.f32.gmra.mrb[0].mxu0 %v2957
  %v3117 = vpop.f32.mrb[0].mxu0
  %v3118 = vadd.f32 0.0, %v3117
  %v3119 = vpop.f32.mrb[0].mxu0
  %3120 = vmatprep.mubr.f32.mxu0 0.0
  %3121 = vmatmul.mubr.f32.gmra.mrb[0].mxu0 %v2958
  %v3122 = vpop.f32.mrb[0].mxu0
  %v3123 = vadd.f32 0.0, %v3122
  %v3124 = vpop.f32.mrb[0].mxu0
  %3125 = vmatprep.mubr.f32.mxu0 0.0
  %3126 = vmatmul.mubr.f32.gmra.mrb[0].mxu0 %v2959
  %v3127 = vpop.f32.mrb[0].mxu0
  %v3128 = vadd.f32 0.0, %v3127
  %v3129 = vpop.f32.mrb[0].mxu0
  %3130 = vdwg.mxu0
  %v3131 = vld [vmem:[%s10] sm:$0xff]
  %v3132 = vld [vmem:[%s10 + $0x8] sm:$0xff]
  %v3133 = vld [vmem:[%s10 + $0x10] sm:$0xff]
  %v3134 = vld [vmem:[%s10 + $0x18] sm:$0xff]
  %v3135 = vld [vmem:[%s10 + $0x20] sm:$0xff]
  %v3136 = vld [vmem:[%s10 + $0x28] sm:$0xff]
  %v3137 = vld [vmem:[%s10 + $0x30] sm:$0xff]
  %v3138 = vld [vmem:[%s10 + $0x38] sm:$0xff]
  %v3139 = vld [vmem:[%s10 + $0x40] sm:$0xff]
  %v3140 = vld [vmem:[%s10 + $0x48] sm:$0xff]
  %v3141 = vld [vmem:[%s10 + $0x50] sm:$0xff]
  %v3142 = vld [vmem:[%s10 + $0x58] sm:$0xff]
  %v3143 = vld [vmem:[%s10 + $0x60] sm:$0xff]
  %v3144 = vld [vmem:[%s10 + $0x68] sm:$0xff]
  %v3145 = vld [vmem:[%s10 + $0x70] sm:$0xff]
  %v3146 = vld [vmem:[%s10 + $0x78] sm:$0xff]
  %v3147 = vld [vmem:[%s10 + $0x80] sm:$0xff]
  %v3148 = vld [vmem:[%s10 + $0x88] sm:$0xff]
  %3150 = vset.pattern.permute.xlu0 0
  %3151 = vperm.xlu0 %3150, %v3131
  %v3152 = vpop.permute.xlu0 %3151
  %3155 = vset.pattern.permute.xlu0 0
  %3156 = vperm.xlu0 %3155, %v3132
  %v3157 = vpop.permute.xlu0 %3156
  %3160 = vset.pattern.permute.xlu0 0
  %3161 = vperm.xlu0 %3160, %v3133
  %v3162 = vpop.permute.xlu0 %3161
  %3165 = vset.pattern.permute.xlu0 0
  %3166 = vperm.xlu0 %3165, %v3134
  %v3167 = vpop.permute.xlu0 %3166
  %3170 = vset.pattern.permute.xlu0 0
  %3171 = vperm.xlu0 %3170, %v3135
  %v3172 = vpop.permute.xlu0 %3171
  %3175 = vset.pattern.permute.xlu0 0
  %3176 = vperm.xlu0 %3175, %v3136
  %v3177 = vpop.permute.xlu0 %3176
  %3180 = vset.pattern.permute.xlu0 0
  %3181 = vperm.xlu0 %3180, %v3137
  %v3182 = vpop.permute.xlu0 %3181
  %3185 = vset.pattern.permute.xlu0 0
  %3186 = vperm.xlu0 %3185, %v3138
  %v3187 = vpop.permute.xlu0 %3186
  %3190 = vset.pattern.permute.xlu0 0
  %3191 = vperm.xlu0 %3190, %v3139
  %v3192 = vpop.permute.xlu0 %3191
  %3195 = vset.pattern.permute.xlu0 0
  %3196 = vperm.xlu0 %3195, %v3140
  %v3197 = vpop.permute.xlu0 %3196
  %3200 = vset.pattern.permute.xlu0 0
  %3201 = vperm.xlu0 %3200, %v3141
  %v3202 = vpop.permute.xlu0 %3201
  %3205 = vset.pattern.permute.xlu0 0
  %3206 = vperm.xlu0 %3205, %v3142
  %v3207 = vpop.permute.xlu0 %3206
  %3210 = vset.pattern.permute.xlu0 0
  %3211 = vperm.xlu0 %3210, %v3143
  %v3212 = vpop.permute.xlu0 %3211
  %3215 = vset.pattern.permute.xlu0 0
  %3216 = vperm.xlu0 %3215, %v3144
  %v3217 = vpop.permute.xlu0 %3216
  %3220 = vset.pattern.permute.xlu0 0
  %3221 = vperm.xlu0 %3220, %v3145
  %v3222 = vpop.permute.xlu0 %3221
  %3225 = vset.pattern.permute.xlu0 0
  %3226 = vperm.xlu0 %3225, %v3146
  %v3227 = vpop.permute.xlu0 %3226
  %3230 = vset.pattern.permute.xlu0 0
  %3231 = vperm.xlu0 %3230, %v3147
  %v3232 = vpop.permute.xlu0 %3231
  %3235 = vset.pattern.permute.xlu0 0
  %3236 = vperm.xlu0 %3235, %v3148
  %v3237 = vpop.permute.xlu0 %3236
  %v3239 = vmul.f32 %v3043, %v3152
  %v3240 = vmul.f32 %v3048, %v3157
  %v3241 = vmul.f32 %v3053, %v3162
  %v3242 = vmul.f32 %v3058, %v3167
  %v3243 = vmul.f32 %v3063, %v3172
  %v3244 = vmul.f32 %v3068, %v3177
  %v3245 = vmul.f32 %v3073, %v3182
  %v3246 = vmul.f32 %v3078, %v3187
  %v3247 = vmul.f32 %v3083, %v3192
  %v3248 = vmul.f32 %v3088, %v3197
  %v3249 = vmul.f32 %v3093, %v3202
  %v3250 = vmul.f32 %v3098, %v3207
  %v3251 = vmul.f32 %v3103, %v3212
  %v3252 = vmul.f32 %v3108, %v3217
  %v3253 = vmul.f32 %v3113, %v3222
  %v3254 = vmul.f32 %v3118, %v3227
  %v3255 = vmul.f32 %v3123, %v3232
  %v3256 = vmul.f32 %v3128, %v3237
  %vm3257 = vcmask 130048
  %v3258 = vsel %vm3257, %v3239, 0.0
  %v3259 = vsel %vm3257, %v3240, 0.0
  %v3260 = vadd.f32 %v3258, %v3259
  %v3261 = vsel %vm3257, %v3241, 0.0
  %v3262 = vadd.f32 %v3260, %v3261
  %v3263 = vsel %vm3257, %v3242, 0.0
  %v3264 = vadd.f32 %v3262, %v3263
  %v3265 = vsel %vm3257, %v3243, 0.0
  %v3266 = vadd.f32 %v3264, %v3265
  %v3267 = vsel %vm3257, %v3244, 0.0
  %v3268 = vadd.f32 %v3266, %v3267
  %v3269 = vsel %vm3257, %v3245, 0.0
  %v3270 = vadd.f32 %v3268, %v3269
  %v3271 = vsel %vm3257, %v3246, 0.0
  %v3272 = vadd.f32 %v3270, %v3271
  %v3273 = vsel %vm3257, %v3247, 0.0
  %v3274 = vadd.f32 %v3272, %v3273
  %v3275 = vsel %vm3257, %v3248, 0.0
  %v3276 = vadd.f32 %v3274, %v3275
  %v3277 = vsel %vm3257, %v3249, 0.0
  %v3278 = vadd.f32 %v3276, %v3277
  %v3279 = vsel %vm3257, %v3250, 0.0
  %v3280 = vadd.f32 %v3278, %v3279
  %v3281 = vsel %vm3257, %v3251, 0.0
  %v3282 = vadd.f32 %v3280, %v3281
  %v3283 = vsel %vm3257, %v3252, 0.0
  %v3284 = vadd.f32 %v3282, %v3283
  %v3285 = vsel %vm3257, %v3253, 0.0
  %v3286 = vadd.f32 %v3284, %v3285
  %v3287 = vsel %vm3257, %v3254, 0.0
  %v3288 = vadd.f32 %v3286, %v3287
  %v3289 = vsel %vm3257, %v3255, 0.0
  %v3290 = vadd.f32 %v3288, %v3289
  %v3291 = vsel %vm3257, %v3256, 0.0
  %v3292 = vadd.f32 %v3290, %v3291
  %v3293 = vrot.slane %v3292, 4
  %v3294 = vadd.f32 %v3292, %v3293
  %v3295 = vrot.slane %v3294, 2
  %v3296 = vadd.f32 %v3294, %v3295
  %v3297 = vrot.slane %v3296, 1
  %v3298 = vadd.f32 %v3296, %v3297
  %v3299 = vmul.f32 %v3298, 0.0078125
  %v3300 = vmul.f32 %v3239, %v3043
  %v3301 = vmul.f32 %v3240, %v3048
  %v3302 = vmul.f32 %v3241, %v3053
  %v3303 = vmul.f32 %v3242, %v3058
  %v3304 = vmul.f32 %v3243, %v3063
  %v3305 = vmul.f32 %v3244, %v3068
  %v3306 = vmul.f32 %v3245, %v3073
  %v3307 = vmul.f32 %v3246, %v3078
  %v3308 = vmul.f32 %v3247, %v3083
  %v3309 = vmul.f32 %v3248, %v3088
  %v3310 = vmul.f32 %v3249, %v3093
  %v3311 = vmul.f32 %v3250, %v3098
  %v3312 = vmul.f32 %v3251, %v3103
  %v3313 = vmul.f32 %v3252, %v3108
  %v3314 = vmul.f32 %v3253, %v3113
  %v3315 = vmul.f32 %v3254, %v3118
  %v3316 = vmul.f32 %v3255, %v3123
  %v3317 = vmul.f32 %v3256, %v3128
  %v3318 = vsel %vm3257, %v3300, 0.0
  %v3319 = vsel %vm3257, %v3301, 0.0
  %v3320 = vadd.f32 %v3318, %v3319
  %v3321 = vsel %vm3257, %v3302, 0.0
  %v3322 = vadd.f32 %v3320, %v3321
  %v3323 = vsel %vm3257, %v3303, 0.0
  %v3324 = vadd.f32 %v3322, %v3323
  %v3325 = vsel %vm3257, %v3304, 0.0
  %v3326 = vadd.f32 %v3324, %v3325
  %v3327 = vsel %vm3257, %v3305, 0.0
  %v3328 = vadd.f32 %v3326, %v3327
  %v3329 = vsel %vm3257, %v3306, 0.0
  %v3330 = vadd.f32 %v3328, %v3329
  %v3331 = vsel %vm3257, %v3307, 0.0
  %v3332 = vadd.f32 %v3330, %v3331
  %v3333 = vsel %vm3257, %v3308, 0.0
  %v3334 = vadd.f32 %v3332, %v3333
  %v3335 = vsel %vm3257, %v3309, 0.0
  %v3336 = vadd.f32 %v3334, %v3335
  %v3337 = vsel %vm3257, %v3310, 0.0
  %v3338 = vadd.f32 %v3336, %v3337
  %v3339 = vsel %vm3257, %v3311, 0.0
  %v3340 = vadd.f32 %v3338, %v3339
  %v3341 = vsel %vm3257, %v3312, 0.0
  %v3342 = vadd.f32 %v3340, %v3341
  %v3343 = vsel %vm3257, %v3313, 0.0
  %v3344 = vadd.f32 %v3342, %v3343
  %v3345 = vsel %vm3257, %v3314, 0.0
  %v3346 = vadd.f32 %v3344, %v3345
  %v3347 = vsel %vm3257, %v3315, 0.0
  %v3348 = vadd.f32 %v3346, %v3347
  %v3349 = vsel %vm3257, %v3316, 0.0
  %v3350 = vadd.f32 %v3348, %v3349
  %v3351 = vsel %vm3257, %v3317, 0.0
  %v3352 = vadd.f32 %v3350, %v3351
  %v3353 = vrot.slane %v3352, 4
  %v3354 = vadd.f32 %v3352, %v3353
  %v3355 = vrot.slane %v3354, 2
  %v3356 = vadd.f32 %v3354, %v3355
  %v3357 = vrot.slane %v3356, 1
  %v3358 = vadd.f32 %v3356, %v3357
  %v3359 = vmul.f32 %v3358, 0.0078125
  %v3360 = vld [vmem:[%s6] sm:$0x1]
  %v3361 = vmul.f32 %v3299, %v3299
  %v3362 = vsub.f32 %v3359, %v3361
  %v3363 = vadd.f32 %v3362, 1e-05
  %v3364 = vrsqrt.pop %v3363
  %v3365 = vmul.f32 %v3360, %v3364
  %v3366 = vld [vmem:[%s7] sm:$0x1]
  %v3367 = vmul.f32 %v3299, %v3365
  %v3368 = vsub.f32 %v3366, %v3367
  %v3370 = vlaneseq
  %v3371 = vshrl.u32 %v3370, 7
  %v3372 = vsub.s32 0, %v3371
  %v3373 = vrot.slane %v3365, %v3372
  %v3375 = vmul.f32 %v3043, %v3373
  %v3376 = vmul.f32 %v3048, %v3373
  %v3377 = vmul.f32 %v3053, %v3373
  %v3378 = vmul.f32 %v3058, %v3373
  %v3379 = vmul.f32 %v3063, %v3373
  %v3380 = vmul.f32 %v3068, %v3373
  %v3381 = vmul.f32 %v3073, %v3373
  %v3382 = vmul.f32 %v3078, %v3373
  %v3383 = vmul.f32 %v3083, %v3373
  %v3384 = vmul.f32 %v3088, %v3373
  %v3385 = vmul.f32 %v3093, %v3373
  %v3386 = vmul.f32 %v3098, %v3373
  %v3387 = vmul.f32 %v3103, %v3373
  %v3388 = vmul.f32 %v3108, %v3373
  %v3389 = vmul.f32 %v3113, %v3373
  %v3390 = vmul.f32 %v3118, %v3373
  %v3391 = vmul.f32 %v3123, %v3373
  %v3392 = vmul.f32 %v3128, %v3373
  %v3394 = vlaneseq
  %v3395 = vshrl.u32 %v3394, 7
  %v3396 = vsub.s32 0, %v3395
  %v3397 = vrot.slane %v3368, %v3396
  %v3399 = vadd.f32 %v3375, %v3397
  %v3400 = vadd.f32 %v3376, %v3397
  %v3401 = vadd.f32 %v3377, %v3397
  %v3402 = vadd.f32 %v3378, %v3397
  %v3403 = vadd.f32 %v3379, %v3397
  %v3404 = vadd.f32 %v3380, %v3397
  %v3405 = vadd.f32 %v3381, %v3397
  %v3406 = vadd.f32 %v3382, %v3397
  %v3407 = vadd.f32 %v3383, %v3397
  %v3408 = vadd.f32 %v3384, %v3397
  %v3409 = vadd.f32 %v3385, %v3397
  %v3410 = vadd.f32 %v3386, %v3397
  %v3411 = vadd.f32 %v3387, %v3397
  %v3412 = vadd.f32 %v3388, %v3397
  %v3413 = vadd.f32 %v3389, %v3397
  %v3414 = vadd.f32 %v3390, %v3397
  %v3415 = vadd.f32 %v3391, %v3397
  %v3416 = vadd.f32 %v3392, %v3397
  %vm3417 = vcmp.gt.f32.partialorder %v3399, 0.0
  %vm3418 = vcmp.gt.f32.partialorder %v3400, 0.0
  %vm3419 = vcmp.gt.f32.partialorder %v3401, 0.0
  %vm3420 = vcmp.gt.f32.partialorder %v3402, 0.0
  %vm3421 = vcmp.gt.f32.partialorder %v3403, 0.0
  %vm3422 = vcmp.gt.f32.partialorder %v3404, 0.0
  %vm3423 = vcmp.gt.f32.partialorder %v3405, 0.0
  %vm3424 = vcmp.gt.f32.partialorder %v3406, 0.0
  %vm3425 = vcmp.gt.f32.partialorder %v3407, 0.0
  %vm3426 = vcmp.gt.f32.partialorder %v3408, 0.0
  %vm3427 = vcmp.gt.f32.partialorder %v3409, 0.0
  %vm3428 = vcmp.gt.f32.partialorder %v3410, 0.0
  %vm3429 = vcmp.gt.f32.partialorder %v3411, 0.0
  %vm3430 = vcmp.gt.f32.partialorder %v3412, 0.0
  %vm3431 = vcmp.gt.f32.partialorder %v3413, 0.0
  %vm3432 = vcmp.gt.f32.partialorder %v3414, 0.0
  %vm3433 = vcmp.gt.f32.partialorder %v3415, 0.0
  %vm3434 = vcmp.gt.f32.partialorder %v3416, 0.0
  %v3435 = vmul.f32 %v3399, 0.2
  %v3436 = vmul.f32 %v3400, 0.2
  %v3437 = vmul.f32 %v3401, 0.2
  %v3438 = vmul.f32 %v3402, 0.2
  %v3439 = vmul.f32 %v3403, 0.2
  %v3440 = vmul.f32 %v3404, 0.2
  %v3441 = vmul.f32 %v3405, 0.2
  %v3442 = vmul.f32 %v3406, 0.2
  %v3443 = vmul.f32 %v3407, 0.2
  %v3444 = vmul.f32 %v3408, 0.2
  %v3445 = vmul.f32 %v3409, 0.2
  %v3446 = vmul.f32 %v3410, 0.2
  %v3447 = vmul.f32 %v3411, 0.2
  %v3448 = vmul.f32 %v3412, 0.2
  %v3449 = vmul.f32 %v3413, 0.2
  %v3450 = vmul.f32 %v3414, 0.2
  %v3451 = vmul.f32 %v3415, 0.2
  %v3452 = vmul.f32 %v3416, 0.2
  %v3453 = vsel %vm3417, %v3399, %v3435
  %v3454 = vsel %vm3418, %v3400, %v3436
  %v3455 = vsel %vm3419, %v3401, %v3437
  %v3456 = vsel %vm3420, %v3402, %v3438
  %v3457 = vsel %vm3421, %v3403, %v3439
  %v3458 = vsel %vm3422, %v3404, %v3440
  %v3459 = vsel %vm3423, %v3405, %v3441
  %v3460 = vsel %vm3424, %v3406, %v3442
  %v3461 = vsel %vm3425, %v3407, %v3443
  %v3462 = vsel %vm3426, %v3408, %v3444
  %v3463 = vsel %vm3427, %v3409, %v3445
  %v3464 = vsel %vm3428, %v3410, %v3446
  %v3465 = vsel %vm3429, %v3411, %v3447
  %v3466 = vsel %vm3430, %v3412, %v3448
  %v3467 = vsel %vm3431, %v3413, %v3449
  %v3468 = vsel %vm3432, %v3414, %v3450
  %v3469 = vsel %vm3433, %v3415, %v3451
  %v3470 = vsel %vm3434, %v3416, %v3452
  %3471 = vst.msk [vmem:[#allocation8] sm:$0xff] %vm3257, %v3453
  %3472 = vst.msk [vmem:[#allocation8 + $0x8] sm:$0xff] %vm3257, %v3454
  %3473 = vst.msk [vmem:[#allocation8 + $0x10] sm:$0xff] %vm3257, %v3455
  %3474 = vst.msk [vmem:[#allocation8 + $0x18] sm:$0xff] %vm3257, %v3456
  %3475 = vst.msk [vmem:[#allocation8 + $0x20] sm:$0xff] %vm3257, %v3457
  %3476 = vst.msk [vmem:[#allocation8 + $0x28] sm:$0xff] %vm3257, %v3458
  %3477 = vst.msk [vmem:[#allocation8 + $0x30] sm:$0xff] %vm3257, %v3459
  %3478 = vst.msk [vmem:[#allocation8 + $0x38] sm:$0xff] %vm3257, %v3460
  %3479 = vst.msk [vmem:[#allocation8 + $0x40] sm:$0xff] %vm3257, %v3461
  %3480 = vst.msk [vmem:[#allocation8 + $0x48] sm:$0xff] %vm3257, %v3462
  %3481 = vst.msk [vmem:[#allocation8 + $0x50] sm:$0xff] %vm3257, %v3463
  %3482 = vst.msk [vmem:[#allocation8 + $0x58] sm:$0xff] %vm3257, %v3464
  %3483 = vst.msk [vmem:[#allocation8 + $0x60] sm:$0xff] %vm3257, %v3465
  %3484 = vst.msk [vmem:[#allocation8 + $0x68] sm:$0xff] %vm3257, %v3466
  %3485 = vst.msk [vmem:[#allocation8 + $0x70] sm:$0xff] %vm3257, %v3467
  %3486 = vst.msk [vmem:[#allocation8 + $0x78] sm:$0xff] %vm3257, %v3468
  %3487 = vst.msk [vmem:[#allocation8 + $0x80] sm:$0xff] %vm3257, %v3469
  %3488 = vst.msk [vmem:[#allocation8 + $0x88] sm:$0xff] %vm3257, %v3470
  %v3489 = vld [vmem:[#allocation8] ss:$2 sm:$0xf]
  %3491 = vrot.lane.b32.xlu0 %v3489, 48
  %v3492 = vpop.permute.xlu0 %3491
  %vm3494 = vcmask 519552
  %3495 = vst.msk [vmem:[#allocation3] sm:$0xf] %vm3494, %v3492
  %s3496 = scalar_lea.vmem [#allocation8], 1
  %v3497 = vld [vmem:[%s3496] ss:$2 sm:$0xf]
  %3499 = vrot.lane.b32.xlu0 %v3497, 32
  %v3500 = vpop.permute.xlu0 %3499
  %vm3502 = vcmask 388352
  %3503 = vst.msk [vmem:[#allocation3 + $0x1] sm:$0xf] %vm3502, %v3500
  %s3504 = scalar_lea.vmem [#allocation8], 9
  %v3505 = vld [vmem:[%s3504] ss:$2 sm:$0xf]
  %3507 = vrot.lane.b32.xlu0 %v3505, 16
  %v3508 = vpop.permute.xlu0 %3507
  %vm3510 = vcmask 257152
  %3511 = vst.msk [vmem:[#allocation3 + $0x5] sm:$0xf] %vm3510, %v3508
  %s3512 = scalar_lea.vmem [#allocation8], 10
  %v3513 = vld [vmem:[%s3512] ss:$2 sm:$0xf]
  %vm3514 = vcmask 125952
  %3515 = vst.msk [vmem:[#allocation3 + $0x6] sm:$0xf] %vm3514, %v3513
  %s3516 = scalar_lea.vmem [#allocation8], 18
  %v3517 = vld [vmem:[%s3516] ss:$2 sm:$0xf]
  %3519 = vrot.lane.b32.xlu0 %v3517, 48
  %v3520 = vpop.permute.xlu0 %3519
  %3522 = vst.msk [vmem:[#allocation3 + $0x5] sm:$0xf] %vm3494, %v3520
  %s3523 = scalar_lea.vmem [#allocation8], 19
  %v3524 = vld [vmem:[%s3523] ss:$2 sm:$0xf]
  %3526 = vrot.lane.b32.xlu0 %v3524, 32
  %v3527 = vpop.permute.xlu0 %3526
  %3529 = vst.msk [vmem:[#allocation3 + $0x6] sm:$0xf] %vm3502, %v3527
  %s3530 = scalar_lea.vmem [#allocation8], 27
  %v3531 = vld [vmem:[%s3530] ss:$2 sm:$0xf]
  %3533 = vrot.lane.b32.xlu0 %v3531, 16
  %v3534 = vpop.permute.xlu0 %3533
  %3536 = vst.msk [vmem:[#allocation3 + $0xa] sm:$0xf] %vm3510, %v3534
  %s3537 = scalar_lea.vmem [#allocation8], 28
  %v3538 = vld [vmem:[%s3537] ss:$2 sm:$0xf]
  %3539 = vst.msk [vmem:[#allocation3 + $0xb] sm:$0xf] %vm3514, %v3538
  %s3540 = scalar_lea.vmem [#allocation8], 36
  %v3541 = vld [vmem:[%s3540] ss:$2 sm:$0xf]
  %3543 = vrot.lane.b32.xlu0 %v3541, 48
  %v3544 = vpop.permute.xlu0 %3543
  %3546 = vst.msk [vmem:[#allocation3 + $0xa] sm:$0xf] %vm3494, %v3544
  %s3547 = scalar_lea.vmem [#allocation8], 37
  %v3548 = vld [vmem:[%s3547] ss:$2 sm:$0xf]
  %3550 = vrot.lane.b32.xlu0 %v3548, 32
  %v3551 = vpop.permute.xlu0 %3550
  %3553 = vst.msk [vmem:[#allocation3 + $0xb] sm:$0xf] %vm3502, %v3551
  %s3554 = scalar_lea.vmem [#allocation8], 45
  %v3555 = vld [vmem:[%s3554] ss:$2 sm:$0xf]
  %3557 = vrot.lane.b32.xlu0 %v3555, 16
  %v3558 = vpop.permute.xlu0 %3557
  %3560 = vst.msk [vmem:[#allocation3 + $0xf] sm:$0xf] %vm3510, %v3558
  %s3561 = scalar_lea.vmem [#allocation8], 46
  %v3562 = vld [vmem:[%s3561] ss:$2 sm:$0xf]
  %3563 = vst.msk [vmem:[#allocation3 + $0x10] sm:$0xf] %vm3514, %v3562
  %s3564 = scalar_lea.vmem [#allocation8], 54
  %v3565 = vld [vmem:[%s3564] ss:$2 sm:$0xf]
  %3567 = vrot.lane.b32.xlu0 %v3565, 48
  %v3568 = vpop.permute.xlu0 %3567
  %3570 = vst.msk [vmem:[#allocation3 + $0xf] sm:$0xf] %vm3494, %v3568
  %s3571 = scalar_lea.vmem [#allocation8], 55
  %v3572 = vld [vmem:[%s3571] ss:$2 sm:$0xf]
  %3574 = vrot.lane.b32.xlu0 %v3572, 32
  %v3575 = vpop.permute.xlu0 %3574
  %3577 = vst.msk [vmem:[#allocation3 + $0x10] sm:$0xf] %vm3502, %v3575
  %s3578 = scalar_lea.vmem [#allocation8], 63
  %v3579 = vld [vmem:[%s3578] ss:$2 sm:$0xf]
  %3581 = vrot.lane.b32.xlu0 %v3579, 16
  %v3582 = vpop.permute.xlu0 %3581
  %3584 = vst.msk [vmem:[#allocation3 + $0x14] sm:$0xf] %vm3510, %v3582
  %s3585 = scalar_lea.vmem [#allocation8], 64
  %v3586 = vld [vmem:[%s3585] ss:$2 sm:$0xf]
  %3587 = vst.msk [vmem:[#allocation3 + $0x15] sm:$0xf] %vm3514, %v3586
  %s3588 = scalar_lea.vmem [#allocation8], 72
  %v3589 = vld [vmem:[%s3588] ss:$2 sm:$0xf]
  %3591 = vrot.lane.b32.xlu0 %v3589, 48
  %v3592 = vpop.permute.xlu0 %3591
  %3594 = vst.msk [vmem:[#allocation3 + $0x19] sm:$0xf] %vm3494, %v3592
  %s3595 = scalar_lea.vmem [#allocation8], 73
  %v3596 = vld [vmem:[%s3595] ss:$2 sm:$0xf]
  %3598 = vrot.lane.b32.xlu0 %v3596, 32
  %v3599 = vpop.permute.xlu0 %3598
  %3601 = vst.msk [vmem:[#allocation3 + $0x1a] sm:$0xf] %vm3502, %v3599
  %s3602 = scalar_lea.vmem [#allocation8], 81
  %v3603 = vld [vmem:[%s3602] ss:$2 sm:$0xf]
  %3605 = vrot.lane.b32.xlu0 %v3603, 16
  %v3606 = vpop.permute.xlu0 %3605
  %3608 = vst.msk [vmem:[#allocation3 + $0x1e] sm:$0xf] %vm3510, %v3606
  %s3609 = scalar_lea.vmem [#allocation8], 82
  %v3610 = vld [vmem:[%s3609] ss:$2 sm:$0xf]
  %3611 = vst.msk [vmem:[#allocation3 + $0x1f] sm:$0xf] %vm3514, %v3610
  %s3612 = scalar_lea.vmem [#allocation8], 90
  %v3613 = vld [vmem:[%s3612] ss:$2 sm:$0xf]
  %3615 = vrot.lane.b32.xlu0 %v3613, 48
  %v3616 = vpop.permute.xlu0 %3615
  %3618 = vst.msk [vmem:[#allocation3 + $0x1e] sm:$0xf] %vm3494, %v3616
  %s3619 = scalar_lea.vmem [#allocation8], 91
  %v3620 = vld [vmem:[%s3619] ss:$2 sm:$0xf]
  %3622 = vrot.lane.b32.xlu0 %v3620, 32
  %v3623 = vpop.permute.xlu0 %3622
  %3625 = vst.msk [vmem:[#allocation3 + $0x1f] sm:$0xf] %vm3502, %v3623
  %s3626 = scalar_lea.vmem [#allocation8], 99
  %v3627 = vld [vmem:[%s3626] ss:$2 sm:$0xf]
  %3629 = vrot.lane.b32.xlu0 %v3627, 16
  %v3630 = vpop.permute.xlu0 %3629
  %3632 = vst.msk [vmem:[#allocation3 + $0x23] sm:$0xf] %vm3510, %v3630
  %s3633 = scalar_lea.vmem [#allocation8], 100
  %v3634 = vld [vmem:[%s3633] ss:$2 sm:$0xf]
  %3635 = vst.msk [vmem:[#allocation3 + $0x24] sm:$0xf] %vm3514, %v3634
  %s3636 = scalar_lea.vmem [#allocation8], 108
  %v3637 = vld [vmem:[%s3636] ss:$2 sm:$0xf]
  %3639 = vrot.lane.b32.xlu0 %v3637, 48
  %v3640 = vpop.permute.xlu0 %3639
  %3642 = vst.msk [vmem:[#allocation3 + $0x23] sm:$0xf] %vm3494, %v3640
  %s3643 = scalar_lea.vmem [#allocation8], 109
  %v3644 = vld [vmem:[%s3643] ss:$2 sm:$0xf]
  %3646 = vrot.lane.b32.xlu0 %v3644, 32
  %v3647 = vpop.permute.xlu0 %3646
  %3649 = vst.msk [vmem:[#allocation3 + $0x24] sm:$0xf] %vm3502, %v3647
  %s3650 = scalar_lea.vmem [#allocation8], 117
  %v3651 = vld [vmem:[%s3650] ss:$2 sm:$0xf]
  %3653 = vrot.lane.b32.xlu0 %v3651, 16
  %v3654 = vpop.permute.xlu0 %3653
  %3656 = vst.msk [vmem:[#allocation3 + $0x28] sm:$0xf] %vm3510, %v3654
  %s3657 = scalar_lea.vmem [#allocation8], 118
  %v3658 = vld [vmem:[%s3657] ss:$2 sm:$0xf]
  %3659 = vst.msk [vmem:[#allocation3 + $0x29] sm:$0xf] %vm3514, %v3658
  %s3660 = scalar_lea.vmem [#allocation8], 126
  %v3661 = vld [vmem:[%s3660] ss:$2 sm:$0xf]
  %3663 = vrot.lane.b32.xlu0 %v3661, 48
  %v3664 = vpop.permute.xlu0 %3663
  %3666 = vst.msk [vmem:[#allocation3 + $0x28] sm:$0xf] %vm3494, %v3664
  %s3667 = scalar_lea.vmem [#allocation8], 127
  %v3668 = vld [vmem:[%s3667] ss:$2 sm:$0xf]
  %3670 = vrot.lane.b32.xlu0 %v3668, 32
  %v3671 = vpop.permute.xlu0 %3670
  %3673 = vst.msk [vmem:[#allocation3 + $0x29] sm:$0xf] %vm3502, %v3671
  %s3674 = scalar_lea.vmem [#allocation8], 135
  %v3675 = vld [vmem:[%s3674] ss:$2 sm:$0xf]
  %3677 = vrot.lane.b32.xlu0 %v3675, 16
  %v3678 = vpop.permute.xlu0 %3677
  %3680 = vst.msk [vmem:[#allocation3 + $0x2d] sm:$0xf] %vm3510, %v3678
  %s3681 = scalar_lea.vmem [#allocation8], 136
  %v3682 = vld [vmem:[%s3681] ss:$2 sm:$0xf]
  %3683 = vst.msk [vmem:[#allocation3 + $0x2e] sm:$0xf] %vm3514, %v3682
  %v3684 = vld [vmem:[#allocation3] sm:$0xff]
  %v3685 = vld [vmem:[#allocation3 + $0x8] sm:$0xff]
  %v3686 = vld [vmem:[#allocation3 + $0x10] sm:$0xf]
  %3687 = vst.msk [vmem:[#allocation6] sm:$0xff] %vm63, %v3684
  %3688 = vst.msk [vmem:[#allocation6 + $0x10] sm:$0xff] %vm63, %v3685
  %vm3689 = vcmask 519168
  %3690 = vst.msk [vmem:[#allocation6 + $0x20] sm:$0xf] %vm3689, %v3686
  %v3691 = vld [vmem:[#allocation3 + $0x19] sm:$0xff]
  %v3692 = vld [vmem:[#allocation3 + $0x21] sm:$0xff]
  %v3693 = vld [vmem:[#allocation3 + $0x29] sm:$0xf]
  %vm3697 = vcmask 1043456
  %v3698 = vrot.slane %v3691, 4
  %v3699 = vrot.slane %v3692, 4
  %v3700 = vsel %vm3697, %v3698, %v3699
  %v3701 = vrot.slane %v3693, 4
  %v3702 = vsel %vm3697, %v3699, %v3701
  %vm3706 = vcmask 523268
  %3707 = vst.msk [vmem:[#allocation6 + $0x20] sm:$0xf0] %vm3706, %v3698
  %3708 = vst.msk [vmem:[#allocation6 + $0x30] sm:$0xff] %vm63, %v3700
  %3709 = vst.msk [vmem:[#allocation6 + $0x40] sm:$0xff] %vm63, %v3702
  %v3710 = vld [vmem:[#allocation3 + $0x1] sm:$0xff]
  %v3711 = vld [vmem:[#allocation3 + $0x9] sm:$0xff]
  %v3712 = vld [vmem:[#allocation3 + $0x11] sm:$0xf]
  %3716 = vrot.lane.b32.xlu0 %v3710, 64
  %v3717 = vpop.permute.xlu0 %3716
  %3718 = vrot.lane.b32.xlu0 %v3711, 64
  %v3719 = vpop.permute.xlu0 %3718
  %3720 = vrot.lane.b32.xlu0 %v3712, 64
  %v3721 = vpop.permute.xlu0 %3720
  %vm3725 = vcmask 1048064
  %3726 = vst.msk [vmem:[#allocation6] sm:$0xff] %vm3725, %v3717
  %3727 = vst.msk [vmem:[#allocation6 + $0x10] sm:$0xff] %vm3725, %v3719
  %vm3728 = vcmask 1043968
  %3729 = vst.msk [vmem:[#allocation6 + $0x20] sm:$0xf] %vm3728, %v3721
  %v3730 = vld [vmem:[#allocation3 + $0x1a] sm:$0xff]
  %v3731 = vld [vmem:[#allocation3 + $0x22] sm:$0xff]
  %v3732 = vld [vmem:[#allocation3 + $0x2a] sm:$0xf]
  %v3736 = vrot.slane %v3730, 4
  %v3737 = vrot.slane %v3731, 4
  %v3738 = vsel %vm3697, %v3736, %v3737
  %v3739 = vrot.slane %v3732, 4
  %v3740 = vsel %vm3697, %v3737, %v3739
  %3741 = vrot.lane.b32.xlu0 %v3736, 64
  %v3742 = vpop.permute.xlu0 %3741
  %3743 = vrot.lane.b32.xlu0 %v3738, 64
  %v3744 = vpop.permute.xlu0 %3743
  %3745 = vrot.lane.b32.xlu0 %v3740, 64
  %v3746 = vpop.permute.xlu0 %3745
  %vm3750 = vcmask 1048068
  %3751 = vst.msk [vmem:[#allocation6 + $0x20] sm:$0xf0] %vm3750, %v3742
  %3752 = vst.msk [vmem:[#allocation6 + $0x30] sm:$0xff] %vm3725, %v3744
  %3753 = vst.msk [vmem:[#allocation6 + $0x40] sm:$0xff] %vm3725, %v3746
  %v3754 = vld [vmem:[#allocation3 + $0x5] sm:$0xff]
  %v3755 = vld [vmem:[#allocation3 + $0xd] sm:$0xff]
  %v3756 = vld [vmem:[#allocation3 + $0x15] sm:$0xf]
  %3757 = vst.msk [vmem:[#allocation6 + $0x8] sm:$0xff] %vm63, %v3754
  %3758 = vst.msk [vmem:[#allocation6 + $0x18] sm:$0xff] %vm63, %v3755
  %3759 = vst.msk [vmem:[#allocation6 + $0x28] sm:$0xf] %vm3689, %v3756
  %v3760 = vld [vmem:[#allocation3 + $0x1e] sm:$0xff]
  %v3761 = vld [vmem:[#allocation3 + $0x26] sm:$0xff]
  %v3762 = vld [vmem:[#allocation3 + $0x2e] sm:$0xf]
  %v3766 = vrot.slane %v3760, 4
  %v3767 = vrot.slane %v3761, 4
  %v3768 = vsel %vm3697, %v3766, %v3767
  %v3769 = vrot.slane %v3762, 4
  %v3770 = vsel %vm3697, %v3767, %v3769
  %3774 = vst.msk [vmem:[#allocation6 + $0x28] sm:$0xf0] %vm3706, %v3766
  %3775 = vst.msk [vmem:[#allocation6 + $0x38] sm:$0xff] %vm63, %v3768
  %3776 = vst.msk [vmem:[#allocation6 + $0x48] sm:$0xff] %vm63, %v3770
  %v3777 = vld [vmem:[#allocation3 + $0x6] sm:$0xff]
  %v3778 = vld [vmem:[#allocation3 + $0xe] sm:$0xff]
  %v3779 = vld [vmem:[#allocation3 + $0x16] sm:$0xf]
  %3783 = vrot.lane.b32.xlu0 %v3777, 64
  %v3784 = vpop.permute.xlu0 %3783
  %3785 = vrot.lane.b32.xlu0 %v3778, 64
  %v3786 = vpop.permute.xlu0 %3785
  %3787 = vrot.lane.b32.xlu0 %v3779, 64
  %v3788 = vpop.permute.xlu0 %3787
  %3792 = vst.msk [vmem:[#allocation6 + $0x8] sm:$0xff] %vm3725, %v3784
  %3793 = vst.msk [vmem:[#allocation6 + $0x18] sm:$0xff] %vm3725, %v3786
  %3794 = vst.msk [vmem:[#allocation6 + $0x28] sm:$0xf] %vm3728, %v3788
  %v3795 = vld [vmem:[#allocation3 + $0x1f] sm:$0xff]
  %v3796 = vld [vmem:[#allocation3 + $0x27] sm:$0xff]
  %v3797 = vld [vmem:[#allocation3 + $0x2f] sm:$0xf]
  %v3801 = vrot.slane %v3795, 4
  %v3802 = vrot.slane %v3796, 4
  %v3803 = vsel %vm3697, %v3801, %v3802
  %v3804 = vrot.slane %v3797, 4
  %v3805 = vsel %vm3697, %v3802, %v3804
  %3806 = vrot.lane.b32.xlu0 %v3801, 64
  %v3807 = vpop.permute.xlu0 %3806
  %3808 = vrot.lane.b32.xlu0 %v3803, 64
  %v3809 = vpop.permute.xlu0 %3808
  %3810 = vrot.lane.b32.xlu0 %v3805, 64
  %v3811 = vpop.permute.xlu0 %3810
  %3815 = vst.msk [vmem:[#allocation6 + $0x28] sm:$0xf0] %vm3750, %v3807
  %3816 = vst.msk [vmem:[#allocation6 + $0x38] sm:$0xff] %vm3725, %v3809
  %3817 = vst.msk [vmem:[#allocation6 + $0x48] sm:$0xff] %vm3725, %v3811
  %v3818 = vld [vmem:[#allocation6] sm:$0xff]
  %v3819 = vld [vmem:[#allocation6 + $0x8] sm:$0xff]
  %v3820 = vld [vmem:[#allocation6 + $0x10] sm:$0xff]
  %v3821 = vld [vmem:[#allocation6 + $0x18] sm:$0xff]
  %v3822 = vld [vmem:[#allocation6 + $0x20] sm:$0xff]
  %v3823 = vld [vmem:[#allocation6 + $0x28] sm:$0xff]
  %v3824 = vld [vmem:[#allocation6 + $0x30] sm:$0xff]
  %v3825 = vld [vmem:[#allocation6 + $0x38] sm:$0xff]
  %v3826 = vld [vmem:[#allocation6 + $0x40] sm:$0xff]
  %v3827 = vld [vmem:[#allocation6 + $0x48] sm:$0xff]
  %v3828 = vld [vmem:[%s3] sm:$0xff]
  %v3829 = vld [vmem:[%s3 + $0x8] sm:$0xff]
  %v3830 = vld [vmem:[%s3 + $0x10] sm:$0xff]
  %v3831 = vld [vmem:[%s3 + $0x18] sm:$0xff]
  %v3832 = vld [vmem:[%s3 + $0x20] sm:$0xff]
  %v3833 = vld [vmem:[%s3 + $0x28] sm:$0xff]
  %v3834 = vld [vmem:[%s3 + $0x30] sm:$0xff]
  %v3835 = vld [vmem:[%s3 + $0x38] sm:$0xff]
  %v3836 = vld [vmem:[%s3 + $0x40] sm:$0xff]
  %v3837 = vld [vmem:[%s3 + $0x48] sm:$0xff]
  %v3838 = vld [vmem:[%s3 + $0x50] sm:$0xff]
  %v3839 = vld [vmem:[%s3 + $0x58] sm:$0xff]
  %v3840 = vld [vmem:[%s3 + $0x60] sm:$0xff]
  %v3841 = vld [vmem:[%s3 + $0x68] sm:$0xff]
  %v3842 = vld [vmem:[%s3 + $0x70] sm:$0xff]
  %v3843 = vld [vmem:[%s3 + $0x78] sm:$0xff]
  %v3844 = vld [vmem:[%s3 + $0x80] sm:$0xff]
  %v3845 = vld [vmem:[%s3 + $0x88] sm:$0xff]
  %v3846 = vld [vmem:[%s3 + $0x90] sm:$0xff]
  %v3847 = vld [vmem:[%s3 + $0x98] sm:$0xff]
  %v3848 = vld [vmem:[%s3 + $0xa0] sm:$0xff]
  %v3849 = vld [vmem:[%s3 + $0xa8] sm:$0xff]
  %v3850 = vld [vmem:[%s3 + $0xb0] sm:$0xff]
  %v3851 = vld [vmem:[%s3 + $0xb8] sm:$0xff]
  %v3852 = vld [vmem:[%s3 + $0xc0] sm:$0xff]
  %v3853 = vld [vmem:[%s3 + $0xc8] sm:$0xff]
  %v3854 = vld [vmem:[%s3 + $0xd0] sm:$0xff]
  %v3855 = vld [vmem:[%s3 + $0xd8] sm:$0xff]
  %v3856 = vld [vmem:[%s3 + $0xe0] sm:$0xff]
  %v3857 = vld [vmem:[%s3 + $0xe8] sm:$0xff]
  %v3858 = vld [vmem:[%s3 + $0xf0] sm:$0xff]
  %v3859 = vld [vmem:[%s3 + $0xf8] sm:$0xff]
  %3860 = vmatprep.subr.mxu0 0.0
  %3861 = vmatpush1.msra.mxu0 %v3828
  %3862 = vmatprep.subr.mxu0 0.0
  %3863 = vmatpush1.msra.mxu0 %v3829
  %3864 = vmatprep.subr.mxu0 0.0
  %3865 = vmatpush1.msra.mxu0 %v3830
  %3866 = vmatprep.subr.mxu0 0.0
  %3867 = vmatpush1.msra.mxu0 %v3831
  %3868 = vmatprep.subr.mxu0 0.0
  %3869 = vmatpush1.msra.mxu0 %v3832
  %3870 = vmatprep.subr.mxu0 0.0
  %3871 = vmatpush1.msra.mxu0 %v3833
  %3872 = vmatprep.subr.mxu0 0.0
  %3873 = vmatpush1.msra.mxu0 %v3834
  %3874 = vmatprep.subr.mxu0 0.0
  %3875 = vmatpush1.msra.mxu0 %v3835
  %3876 = vmatprep.subr.mxu0 0.0
  %3877 = vmatpush1.msra.mxu0 %v3836
  %3878 = vmatprep.subr.mxu0 0.0
  %3879 = vmatpush1.msra.mxu0 %v3837
  %3880 = vmatprep.subr.mxu0 0.0
  %3881 = vmatpush1.msra.mxu0 %v3838
  %3882 = vmatprep.subr.mxu0 0.0
  %3883 = vmatpush1.msra.mxu0 %v3839
  %3884 = vmatprep.subr.mxu0 0.0
  %3885 = vmatpush1.msra.mxu0 %v3840
  %3886 = vmatprep.subr.mxu0 0.0
  %3887 = vmatpush1.msra.mxu0 %v3841
  %3888 = vmatprep.subr.mxu0 0.0
  %3889 = vmatpush1.msra.mxu0 %v3842
  %3890 = vmatprep.subr.mxu0 0.0
  %3891 = vmatpush1.msra.mxu0 %v3843
  %3892 = vmatprep.subr.mxu0 0.0
  %3893 = vmatpush1.msra.mxu0 %v3844
  %3894 = vmatprep.subr.mxu0 0.0
  %3895 = vmatpush1.msra.mxu0 %v3845
  %3896 = vmatprep.subr.mxu0 0.0
  %3897 = vmatpush1.msra.mxu0 %v3846
  %3898 = vmatprep.subr.mxu0 0.0
  %3899 = vmatpush1.msra.mxu0 %v3847
  %3900 = vmatprep.subr.mxu0 0.0
  %3901 = vmatpush1.msra.mxu0 %v3848
  %3902 = vmatprep.subr.mxu0 0.0
  %3903 = vmatpush1.msra.mxu0 %v3849
  %3904 = vmatprep.subr.mxu0 0.0
  %3905 = vmatpush1.msra.mxu0 %v3850
  %3906 = vmatprep.subr.mxu0 0.0
  %3907 = vmatpush1.msra.mxu0 %v3851
  %3908 = vmatprep.subr.mxu0 0.0
  %3909 = vmatpush1.msra.mxu0 %v3852
  %3910 = vmatprep.subr.mxu0 0.0
  %3911 = vmatpush1.msra.mxu0 %v3853
  %3912 = vmatprep.subr.mxu0 0.0
  %3913 = vmatpush1.msra.mxu0 %v3854
  %3914 = vmatprep.subr.mxu0 0.0
  %3915 = vmatpush1.msra.mxu0 %v3855
  %3916 = vmatprep.subr.mxu0 0.0
  %3917 = vmatpush1.msra.mxu0 %v3856
  %3918 = vmatprep.subr.mxu0 0.0
  %3919 = vmatpush1.msra.mxu0 %v3857
  %3920 = vmatprep.subr.mxu0 0.0
  %3921 = vmatpush1.msra.mxu0 %v3858
  %3922 = vmatprep.subr.mxu0 0.0
  %3923 = vmatpush1.msra.mxu0 %v3859
  %3924 = vmatprep.mubr.f32.mxu0 %v3819
  %3925 = vmatmul.mubr.f32.gmra.mrb[0].mxu0 %v3818
  %v3926 = vpop.f32.mrb[0].mxu0
  %v3927 = vadd.f32 0.0, %v3926
  %v3928 = vpop.f32.mrb[0].mxu0
  %3929 = vmatprep.mubr.f32.mxu0 %v3821
  %3930 = vmatmul.mubr.f32.gmra.mrb[0].mxu0 %v3820
  %v3931 = vpop.f32.mrb[0].mxu0
  %v3932 = vadd.f32 0.0, %v3931
  %v3933 = vpop.f32.mrb[0].mxu0
  %3934 = vmatprep.mubr.f32.mxu0 %v3823
  %3935 = vmatmul.mubr.f32.gmra.mrb[0].mxu0 %v3822
  %v3936 = vpop.f32.mrb[0].mxu0
  %v3937 = vadd.f32 0.0, %v3936
  %v3938 = vpop.f32.mrb[0].mxu0
  %3939 = vmatprep.mubr.f32.mxu0 %v3825
  %3940 = vmatmul.mubr.f32.gmra.mrb[0].mxu0 %v3824
  %v3941 = vpop.f32.mrb[0].mxu0
  %v3942 = vadd.f32 0.0, %v3941
  %v3943 = vpop.f32.mrb[0].mxu0
  %3944 = vmatprep.mubr.f32.mxu0 %v3827
  %3945 = vmatmul.mubr.f32.gmra.mrb[0].mxu0 %v3826
  %v3946 = vpop.f32.mrb[0].mxu0
  %v3947 = vadd.f32 0.0, %v3946
  %v3948 = vpop.f32.mrb[0].mxu0
  %3949 = vdwg.mxu0
  %v3950 = vld [vmem:[%s11] sm:$0xff]
  %v3951 = vld [vmem:[%s11 + $0x8] sm:$0xff]
  %v3952 = vld [vmem:[%s11 + $0x10] sm:$0xff]
  %v3953 = vld [vmem:[%s11 + $0x18] sm:$0xff]
  %v3954 = vld [vmem:[%s11 + $0x20] sm:$0xff]
  %3956 = vset.pattern.permute.xlu0 0
  %3957 = vperm.xlu0 %3956, %v3950
  %v3958 = vpop.permute.xlu0 %3957
  %3961 = vset.pattern.permute.xlu0 0
  %3962 = vperm.xlu0 %3961, %v3951
  %v3963 = vpop.permute.xlu0 %3962
  %3966 = vset.pattern.permute.xlu0 0
  %3967 = vperm.xlu0 %3966, %v3952
  %v3968 = vpop.permute.xlu0 %3967
  %3971 = vset.pattern.permute.xlu0 0
  %3972 = vperm.xlu0 %3971, %v3953
  %v3973 = vpop.permute.xlu0 %3972
  %3976 = vset.pattern.permute.xlu0 0
  %3977 = vperm.xlu0 %3976, %v3954
  %v3978 = vpop.permute.xlu0 %3977
  %v3980 = vmul.f32 %v3927, %v3958
  %v3981 = vmul.f32 %v3932, %v3963
  %v3982 = vmul.f32 %v3937, %v3968
  %v3983 = vmul.f32 %v3942, %v3973
  %v3984 = vmul.f32 %v3947, %v3978
  %v3985 = vsel %vm41, %v3980, 0.0
  %v3986 = vsel %vm41, %v3981, 0.0
  %v3987 = vadd.f32 %v3985, %v3986
  %v3988 = vsel %vm41, %v3982, 0.0
  %v3989 = vadd.f32 %v3987, %v3988
  %v3990 = vsel %vm41, %v3983, 0.0
  %v3991 = vadd.f32 %v3989, %v3990
  %v3992 = vsel %vm41, %v3984, 0.0
  %v3993 = vadd.f32 %v3991, %v3992
  %v3994 = vrot.slane %v3993, 4
  %v3995 = vadd.f32 %v3993, %v3994
  %v3996 = vrot.slane %v3995, 2
  %v3997 = vadd.f32 %v3995, %v3996
  %v3998 = vrot.slane %v3997, 1
  %v3999 = vadd.f32 %v3997, %v3998
  %v4000 = vmul.f32 %v3999, 0.03125
  %v4001 = vmul.f32 %v3980, %v3927
  %v4002 = vmul.f32 %v3981, %v3932
  %v4003 = vmul.f32 %v3982, %v3937
  %v4004 = vmul.f32 %v3983, %v3942
  %v4005 = vmul.f32 %v3984, %v3947
  %v4006 = vsel %vm41, %v4001, 0.0
  %v4007 = vsel %vm41, %v4002, 0.0
  %v4008 = vadd.f32 %v4006, %v4007
  %v4009 = vsel %vm41, %v4003, 0.0
  %v4010 = vadd.f32 %v4008, %v4009
  %v4011 = vsel %vm41, %v4004, 0.0
  %v4012 = vadd.f32 %v4010, %v4011
  %v4013 = vsel %vm41, %v4005, 0.0
  %v4014 = vadd.f32 %v4012, %v4013
  %v4015 = vrot.slane %v4014, 4
  %v4016 = vadd.f32 %v4014, %v4015
  %v4017 = vrot.slane %v4016, 2
  %v4018 = vadd.f32 %v4016, %v4017
  %v4019 = vrot.slane %v4018, 1
  %v4020 = vadd.f32 %v4018, %v4019
  %v4021 = vmul.f32 %v4020, 0.03125
  %v4022 = vld [vmem:[%s8] sm:$0x1]
  %v4023 = vmul.f32 %v4000, %v4000
  %v4024 = vsub.f32 %v4021, %v4023
  %v4025 = vadd.f32 %v4024, 1e-05
  %v4026 = vrsqrt.pop %v4025
  %v4027 = vmul.f32 %v4022, %v4026
  %v4028 = vld [vmem:[%s9] sm:$0x1]
  %v4029 = vmul.f32 %v4000, %v4027
  %v4030 = vsub.f32 %v4028, %v4029
  %v4032 = vlaneseq
  %v4033 = vshrl.u32 %v4032, 7
  %v4034 = vsub.s32 0, %v4033
  %v4035 = vrot.slane %v4027, %v4034
  %v4037 = vmul.f32 %v3927, %v4035
  %v4038 = vmul.f32 %v3932, %v4035
  %v4039 = vmul.f32 %v3937, %v4035
  %v4040 = vmul.f32 %v3942, %v4035
  %v4041 = vmul.f32 %v3947, %v4035
  %v4043 = vlaneseq
  %v4044 = vshrl.u32 %v4043, 7
  %v4045 = vsub.s32 0, %v4044
  %v4046 = vrot.slane %v4030, %v4045
  %v4048 = vadd.f32 %v4037, %v4046
  %v4049 = vadd.f32 %v4038, %v4046
  %v4050 = vadd.f32 %v4039, %v4046
  %v4051 = vadd.f32 %v4040, %v4046
  %v4052 = vadd.f32 %v4041, %v4046
  %vm4053 = vcmp.gt.f32.partialorder %v4048, 0.0
  %vm4054 = vcmp.gt.f32.partialorder %v4049, 0.0
  %vm4055 = vcmp.gt.f32.partialorder %v4050, 0.0
  %vm4056 = vcmp.gt.f32.partialorder %v4051, 0.0
  %vm4057 = vcmp.gt.f32.partialorder %v4052, 0.0
  %v4058 = vmul.f32 %v4048, 0.2
  %v4059 = vmul.f32 %v4049, 0.2
  %v4060 = vmul.f32 %v4050, 0.2
  %v4061 = vmul.f32 %v4051, 0.2
  %v4062 = vmul.f32 %v4052, 0.2
  %v4063 = vsel %vm4053, %v4048, %v4058
  %v4064 = vsel %vm4054, %v4049, %v4059
  %v4065 = vsel %vm4055, %v4050, %v4060
  %v4066 = vsel %vm4056, %v4051, %v4061
  %v4067 = vsel %vm4057, %v4052, %v4062
  %v4068 = vld [vmem:[%s4] sm:$0xff]
  %v4069 = vld [vmem:[%s4 + $0x8] sm:$0xff]
  %v4070 = vld [vmem:[%s4 + $0x10] sm:$0xff]
  %v4071 = vld [vmem:[%s4 + $0x18] sm:$0xff]
  %v4072 = vld [vmem:[%s4 + $0x20] sm:$0xff]
  %v4073 = vmul.f32 %v4063, %v4068
  %v4074 = vmul.f32 %v4064, %v4069
  %v4075 = vmul.f32 %v4065, %v4070
  %v4076 = vmul.f32 %v4066, %v4071
  %v4077 = vmul.f32 %v4067, %v4072
  %v4078 = vld [vmem:[%s5] sm:$0x3]
  %vm4079 = vcmask 326656
  %v4081 = vsel %vm4079, %v4078, 0
  %4083 = vmatprep.subr.mxu0 0.0
  %4084 = vmatpush1.msra.mxu0 %v4073
  %4085 = vmatprep.subr.mxu0 0.0
  %4086 = vmatpush1.msra.mxu0 %v4074
  %4087 = vmatprep.subr.mxu0 0.0
  %4088 = vmatpush1.msra.mxu0 %v4075
  %4089 = vmatprep.subr.mxu0 0.0
  %4090 = vmatpush1.msra.mxu0 %v4076
  %4091 = vmatprep.subr.mxu0 0.0
  %4092 = vmatpush1.msra.mxu0 %v4077
  %4093 = vmatprep.subr.mxu0 0.0
  %4094 = vmatpush1.msra.mxu0 0.0
  %4095 = vmatprep.subr.mxu0 0.0
  %4096 = vmatpush1.msra.mxu0 0.0
  %4097 = vmatprep.subr.mxu0 0.0
  %4098 = vmatpush1.msra.mxu0 0.0
  %4099 = vmatprep.subr.mxu0 0.0
  %4100 = vmatpush1.msra.mxu0 0.0
  %4101 = vmatprep.subr.mxu0 0.0
  %4102 = vmatpush1.msra.mxu0 0.0
  %4103 = vmatprep.subr.mxu0 0.0
  %4104 = vmatpush1.msra.mxu0 0.0
  %4105 = vmatprep.subr.mxu0 0.0
  %4106 = vmatpush1.msra.mxu0 0.0
  %4107 = vmatprep.subr.mxu0 0.0
  %4108 = vmatpush1.msra.mxu0 0.0
  %4109 = vmatprep.subr.mxu0 0.0
  %4110 = vmatpush1.msra.mxu0 0.0
  %4111 = vmatprep.subr.mxu0 0.0
  %4112 = vmatpush1.msra.mxu0 0.0
  %4113 = vmatprep.subr.mxu0 0.0
  %4114 = vmatpush1.msra.mxu0 0.0
  %4115 = vmatprep.subr.mxu0 0.0
  %4116 = vmatpush1.msra.mxu0 0.0
  %4117 = vmatprep.subr.mxu0 0.0
  %4118 = vmatpush1.msra.mxu0 0.0
  %4119 = vmatprep.subr.mxu0 0.0
  %4120 = vmatpush1.msra.mxu0 0.0
  %4121 = vmatprep.subr.mxu0 0.0
  %4122 = vmatpush1.msra.mxu0 0.0
  %4123 = vmatprep.subr.mxu0 0.0
  %4124 = vmatpush1.msra.mxu0 0.0
  %4125 = vmatprep.subr.mxu0 0.0
  %4126 = vmatpush1.msra.mxu0 0.0
  %4127 = vmatprep.subr.mxu0 0.0
  %4128 = vmatpush1.msra.mxu0 0.0
  %4129 = vmatprep.subr.mxu0 0.0
  %4130 = vmatpush1.msra.mxu0 0.0
  %4131 = vmatprep.subr.mxu0 0.0
  %4132 = vmatpush1.msra.mxu0 0.0
  %4133 = vmatprep.subr.mxu0 0.0
  %4134 = vmatpush1.msra.mxu0 0.0
  %4135 = vmatprep.subr.mxu0 0.0
  %4136 = vmatpush1.msra.mxu0 0.0
  %4137 = vmatprep.subr.mxu0 0.0
  %4138 = vmatpush1.msra.mxu0 0.0
  %4139 = vmatprep.subr.mxu0 0.0
  %4140 = vmatpush1.msra.mxu0 0.0
  %4141 = vmatprep.subr.mxu0 0.0
  %4142 = vmatpush1.msra.mxu0 0.0
  %4143 = vmatprep.subr.mxu0 0.0
  %4144 = vmatpush1.msra.mxu0 0.0
  %4145 = vmatprep.subr.mxu0 0.0
  %4146 = vmatpush1.msra.mxu0 0.0
  %4147 = vmatprep.mubr.f32.mxu0 0.0
  %4148 = vmatmul.mubr.f32.gmra.mrb[0].mxu0 %v4081
  %v4149 = vpop.f32.mrb[0].mxu0
  %v4150 = vadd.f32 0.0, %v4149
  %v4151 = vpop.f32.mrb[0].mxu0
  %4152 = vdwg.mxu0
  %vm4153 = vcmask 254976
  %v4154 = vsel %vm4153, %v4150, 0.0
  %4155 = vadd.xlane.f32.xlu0 %v4154
  %v4156 = vpop.xlane.xlu0 %4155
  %v4157 = vxor.u32 %v4156, 2147483648
  %v4158 = vmul.f32 %v4157, 1.442695
  %v4159 = vpow.pop %v4158
  %v4160 = vadd.f32 %v4159, 1.0
  %v4161 = vrcp.pop %v4160
  %v4162 = vmul.f32 1.0, %v4161
  %vm4163 = vcmask 1024
  %4164 = vst.msk [vmem:[%s12] sm:$0x3] %vm4163, %v4162
  // Predicated region
  $region50: #{_lambda_.1} parent=0 // pred_check
    _
  $region51: #{_lambda_.1} parent=0 // pred_check_branch
    %4166 = sbr.rel (0) target = $region53
  $region52: #{_lambda_.1} parent=0 // pred_region
    _
  $region53: #{_lambda_.1} parent=0 // pred_fallthru
    _
  // Predicated region
  $region54: #{_lambda_.1} parent=0 // pred_check
    _
  $region55: #{_lambda_.1} parent=0 // pred_check_branch
    %4168 = sbr.rel (0) target = $region57
  $region56: #{_lambda_.1} parent=0 // pred_region
    _
  $region57: #{_lambda_.1} parent=0 // pred_fallthru
    _

</llo_original>
